<compile_context>
chip_gen: v7x
topology: tpu7x:2x2x1
jax: 0.10.0
libtpu: 0.0.40
codegen_flags: <defaults>
</compile_context>

<pallas_src>
import jax
import jax.numpy as jnp
import numpy as np
from jax.experimental import pallas as pl
from jax.experimental.pallas import tpu as pltpu

_NEG_BIG = -1e30  # "minus infinity" that stays NaN-free through exp/sub


def _round_up(x, m):
    return ((x + m - 1) // m) * m


def _const_index_map(ndim):
    zeros = (0,) * ndim

    def imap(*_):
        return zeros

    return imap


def _choose_vocab_tiling(n_vocab, max_tile_v, num_vocab_splits):
    """Pick (tile_v, v_pad, n_split) minimizing padding waste."""
    assert max_tile_v % 128 == 0
    n_tiles_min = -(-n_vocab // max_tile_v)
    n_split = num_vocab_splits if n_tiles_min >= num_vocab_splits else 1
    n_tiles = _round_up(n_tiles_min, n_split)
    tile_v = _round_up(-(-n_vocab // n_tiles), 128)
    v_pad = tile_v * n_tiles
    return tile_v, v_pad, n_split


def _make_kernel(*, num_layers, hidden_dim, embed_dim, batch_pad, t_actual,
                 t_pad, tile_v):
    L, H, E = num_layers, hidden_dim, embed_dim
    B, T, TP = batch_pad, t_actual, t_pad
    f32 = jnp.float32
    bf16 = jnp.bfloat16

    def sigmoid(z):
        # exp goes to the EUP; exact (non-approx) reciprocal for the divide.
        return pl.reciprocal(1.0 + jnp.exp(-z))

    def run_gates(gates, c_prev):
        # PyTorch LSTM gate order: i, f, g, o
        i = sigmoid(gates[:, 0:H])
        f = sigmoid(gates[:, H:2 * H])
        g = jnp.tanh(gates[:, 2 * H:3 * H])
        o = sigmoid(gates[:, 3 * H:4 * H])
        c_new = f * c_prev + i * g
        h_new = o * jnp.tanh(c_new)
        return h_new, c_new

    def kernel(*refs):
        (vis_r, sem_r, emb_r, h0_r, c0_r,
         W_r, Ul_r, bl_r, wl_r,
         wih0v_r, wih0s_r, wih0e_r, whh_r) = refs[0:13]
        idx = 13
        if L > 1:
            wihup_r = refs[idx]
            idx += 1
        ball_r, tww_r, twb_r, lgw_r, lgb_r = refs[idx:idx + 5]
        idx += 5
        logit_r, lse_r, hout_r, cout_r = refs[idx:idx + 4]
        idx += 4
        word_sc, m_sc, s_sc = refs[idx:idx + 3]

        v = pl.program_id(1)          # vocab-tile position within this core
        nv = pl.num_programs(1)

        # ---------- phase 1 (first tile per core): attention + LSTM + to_word
        @pl.when(v == 0)
        def _prologue():
            vis = vis_r[...]                       # (B, TP, H) f32
            sem = sem_r[...]                       # (B, H)
            emb = emb_r[...]                       # (B, E)
            h_prev0 = h0_r[0]                      # (B, H) == last_states[0][0]
            c_prev0 = c0_r[0]

            # additive attention over the T visual slots
            Wh = jnp.dot(h_prev0, W_r[...].astype(f32),
                         preferred_element_type=f32)                      # (B, H)
            vis2 = vis.reshape(B * TP, H)          # TP % 8 == 0 -> layout preserving
            U2 = jnp.dot(vis2, Ul_r[...].astype(f32),
                         preferred_element_type=f32)
            pre = jnp.tanh(Wh[:, None, :] + U2.reshape(B, TP, H) + bl_r[...])
            # scores via VPU multiply + lane reduction (avoid an N=1 MXU matmul)
            scores = jnp.sum(pre * wl_r[...].astype(f32), axis=-1,
                             keepdims=True)                               # (B, TP, 1)
            if TP > T:  # mask zero-padded time slots
                tpos = jax.lax.broadcasted_iota(jnp.int32, (B, TP, 1), 1)
                scores = jnp.where(tpos < T, scores, _NEG_BIG)
            m = jnp.max(scores, axis=1, keepdims=True)
            e = jnp.exp(scores - m)
            inv = pl.reciprocal(jnp.sum(e, axis=1, keepdims=True))
            attn_w = e * inv                                              # softmax(dim=1)
            attn_visual = jnp.sum(attn_w * vis, axis=1)                   # (B, H)

            # LSTM layer 0: input = concat([attn_visual, sem, emb]) -> 3 matmuls
            gates0 = (jnp.dot(attn_visual, wih0v_r[...].astype(f32),
                              preferred_element_type=f32)
                      + jnp.dot(sem, wih0s_r[...].astype(f32),
                                preferred_element_type=f32)
                      + jnp.dot(emb, wih0e_r[...].astype(f32),
                                preferred_element_type=f32)
                      + jnp.dot(h_prev0, whh_r[0].astype(f32),
                                preferred_element_type=f32)
                      + ball_r[0])
            h_l, c_l = run_gates(gates0, c_prev0)
            hout_r[0] = h_l
            cout_r[0] = c_l

            for l in range(1, L):
                gates = (jnp.dot(h_l, wihup_r[l - 1].astype(f32),
                                 preferred_element_type=f32)
                         + jnp.dot(h0_r[l], whh_r[l].astype(f32),
                                   preferred_element_type=f32)
                         + ball_r[l])
                h_l, c_l = run_gates(gates, c0_r[l])
                hout_r[l] = h_l
                cout_r[l] = c_l

            # to_word output reused by every vocab tile; bf16 once so the big
            # streamed matmul runs on the native bf16 x bf16 MXU path.
            word = (jnp.dot(h_l, tww_r[...].astype(f32),
                            preferred_element_type=f32) + twb_r[...])
            word_sc[...] = word.astype(bf16)
            # init online log-sum-exp state (per core)
            m_sc[...] = jnp.full(m_sc.shape, -jnp.inf, f32)
            s_sc[...] = jnp.zeros(s_sc.shape, f32)

        # ---------- phase 2 (every tile): logits + online max / sum-exp -------
        logits = (jnp.dot(word_sc[...], lgw_r[...],        # bf16 x bf16 -> f32
                          preferred_element_type=f32)
                  + lgb_r[...])                            # (B, tile_v)
        m_prev = m_sc[...]
        m_new = jnp.maximum(m_prev, jnp.max(logits, axis=-1, keepdims=True))
        s_sc[...] = (s_sc[...] * jnp.exp(m_prev - m_new)
                     + jnp.sum(jnp.exp(logits - m_new), axis=-1, keepdims=True))
        m_sc[...] = m_new
        logit_r[...] = logits                              # vocab-tiled output

        # ---------- phase 3 (last tile per core): emit the partial LSE --------
        @pl.when(v == nv - 1)
        def _epilogue():
            lse_r[...] = m_sc[...] + jnp.log(s_sc[...])

    return kernel


# ----------------------------------------------------------------------------
# Parameter construction / one-time kernel-side preparation
# ----------------------------------------------------------------------------
def init_params(key, hidden_dim, semantics_dim, num_layers, embed_dim, n_vocab):
    H, E, V = hidden_dim, embed_dim, n_vocab
    ks = jax.random.split(key, 6 + 4 * num_layers)
    k = 1.0 / np.sqrt(H)
    p = {}
    p['W'] = jax.random.uniform(ks[0], (H, H), jnp.float32, -k, k)
    p['Ul'] = jax.random.uniform(ks[1], (H, H), jnp.float32, -k, k)
    p['bl'] = jnp.ones((H,), jnp.float32)                      # torch.ones(hidden_dim)
    p['wl'] = jax.random.uniform(ks[2], (1, H), jnp.float32, -k, k)
    p['to_word_w'] = jax.random.uniform(ks[3], (E, H), jnp.float32, -k, k)
    p['to_word_b'] = jax.random.uniform(ks[4], (E,), jnp.float32, -k, k)
    p['logit_w'] = jax.random.uniform(ks[5], (V, E), jnp.float32, -0.1, 0.1)
    p['logit_b'] = jnp.zeros((V,), jnp.float32)
    lstm = []
    for l in range(num_layers):
        in_l = 2 * H + E if l == 0 else H
        kk = ks[6 + 4 * l: 6 + 4 * l + 4]
        lstm.append(dict(
            w_ih=jax.random.uniform(kk[0], (4 * H, in_l), jnp.float32, -k, k),
            w_hh=jax.random.uniform(kk[1], (4 * H, H), jnp.float32, -k, k),
            b_ih=jax.random.uniform(kk[2], (4 * H,), jnp.float32, -k, k),
            b_hh=jax.random.uniform(kk[3], (4 * H,), jnp.float32, -k, k)))
    p['lstm'] = lstm
    return p


def quantize_params(params):
    """Round weight matrices to bf16 (the streaming dtype) once, up front."""
    def q(x):
        return x.astype(jnp.bfloat16).astype(jnp.float32)
    out = dict(params)
    for k in ('W', 'Ul', 'wl', 'to_word_w', 'logit_w'):
        out[k] = q(params[k])
    out['lstm'] = [dict(w_ih=q(lp['w_ih']), w_hh=q(lp['w_hh']),
                        b_ih=lp['b_ih'], b_hh=lp['b_hh'])
                   for lp in params['lstm']]
    return out


def prepare_kernel_params(params, *, hidden_dim, embed_dim, n_vocab, num_layers,
                          max_tile_v=8192, num_vocab_splits=2):
    """One-time: transposes, bias fusion, bf16 casts, vocab padding.

    max_tile_v: largest vocab tile (multiple of 128). 8192 amortizes the
    ~0.35 us per-grid-step cost on all generations; lower it if VMEM-tight.
    num_vocab_splits: how many TensorCores to split the vocab stream across
    (used only when there are at least that many tiles).
    """
    H, E, V, L = hidden_dim, embed_dim, n_vocab, num_layers
    bf16, f32 = jnp.bfloat16, jnp.float32
    tile_v, v_pad, n_split = _choose_vocab_tiling(V, max_tile_v, num_vocab_splits)

    wih0_t = params['lstm'][0]['w_ih'].T.astype(f32)            # (2H+E, 4H)
    prepped = {
        'W_t': params['W'].T.astype(bf16),
        'Ul_t': params['Ul'].T.astype(bf16),
        'bl': params['bl'].reshape(1, H).astype(f32),
        'wl_row': params['wl'].reshape(1, H).astype(bf16),
        'wih0_v': wih0_t[:H].astype(bf16),
        'wih0_s': wih0_t[H:2 * H].astype(bf16),
        'wih0_e': wih0_t[2 * H:].astype(bf16),
        'whh_all': jnp.stack([params['lstm'][l]['w_hh'].T
                              for l in range(L)]).astype(bf16),   # (L, H, 4H)
        'b_all': jnp.stack([(params['lstm'][l]['b_ih']
                             + params['lstm'][l]['b_hh']).reshape(1, 4 * H)
                            for l in range(L)]).astype(f32),      # (L, 1, 4H)
        'to_word_w_t': params['to_word_w'].T.astype(bf16),
        'to_word_b': params['to_word_b'].reshape(1, E).astype(f32),
        'logit_w_t': jnp.pad(params['logit_w'].T,
                             ((0, 0), (0, v_pad - V))).astype(bf16),
        'logit_b': jnp.pad(params['logit_b'].reshape(1, V),
                           ((0, 0), (0, v_pad - V)),
                           constant_values=_NEG_BIG).astype(f32),
    }
    if L > 1:
        prepped['wih_up'] = jnp.stack([params['lstm'][l]['w_ih'].T
                                       for l in range(1, L)]).astype(bf16)
    meta = dict(H=H, E=E, V=V, L=L, tile_v=tile_v, v_pad=v_pad, n_split=n_split)
    return prepped, meta


# ----------------------------------------------------------------------------
# Forward wrapper
# ----------------------------------------------------------------------------
def fusion_decoder_forward(prepped, meta, vis, sem, emb, h0, c0):
    H, E, V, L = meta['H'], meta['E'], meta['V'], meta['L']
    tile_v, v_pad, n_split = meta['tile_v'], meta['v_pad'], meta['n_split']
    f32 = jnp.float32
    B, T, _ = vis.shape
    assert sem.shape[-1] == H, \
        "semantics_feats width must equal hidden_dim (torch concat -> 2H+E)"

    B_pad = _round_up(B, 8)
    T_pad = _round_up(T, 8)

    vis_p = jnp.pad(vis.astype(f32), ((0, B_pad - B), (0, T_pad - T), (0, 0)))
    sem_p = jnp.pad(sem.astype(f32), ((0, B_pad - B), (0, 0)))
    emb_p = jnp.pad(emb.astype(f32), ((0, B_pad - B), (0, 0)))
    h0_p = jnp.pad(h0.astype(f32), ((0, 0), (0, B_pad - B), (0, 0)))
    c0_p = jnp.pad(c0.astype(f32), ((0, 0), (0, B_pad - B), (0, 0)))

    resident_inputs = [vis_p, sem_p, emb_p, h0_p, c0_p,
                       prepped['W_t'], prepped['Ul_t'], prepped['bl'],
                       prepped['wl_row'],
                       prepped['wih0_v'], prepped['wih0_s'], prepped['wih0_e'],
                       prepped['whh_all']]
    if L > 1:
        resident_inputs.append(prepped['wih_up'])
    resident_inputs += [prepped['b_all'], prepped['to_word_w_t'],
                        prepped['to_word_b']]
    inputs = resident_inputs + [prepped['logit_w_t'], prepped['logit_b']]

    num_tiles = v_pad // tile_v
    tiles_per_core = num_tiles // n_split
    assert tiles_per_core * n_split == num_tiles

    # Deeper prefetch on the vocab stream only when there are enough tiles.
    n_buf = 3 if tiles_per_core >= 3 else 2

    # Resident (constant-index) inputs: single-buffered -> halves their VMEM.
    in_specs = [pl.BlockSpec(x.shape, _const_index_map(x.ndim),
                             pipeline_mode=pl.Buffered(1))
                for x in resident_inputs]
    # Vocab-streamed tiles: deeper buffering so the stream keeps flowing while
    # the v==0 attention/LSTM prologue runs.
    in_specs.append(pl.BlockSpec((E, tile_v),
                                 lambda c, v: (0, c * tiles_per_core + v),
                                 pipeline_mode=pl.Buffered(n_buf)))
    in_specs.append(pl.BlockSpec((1, tile_v),
                                 lambda c, v: (0, c * tiles_per_core + v),
                                 pipeline_mode=pl.Buffered(n_buf)))

    out_shape = (jax.ShapeDtypeStruct((B_pad, v_pad), f32),          # raw logits
                 jax.ShapeDtypeStruct((n_split, B_pad, 1), f32),     # per-core LSE
                 jax.ShapeDtypeStruct((n_split, L, B_pad, H), f32),  # h (per core)
                 jax.ShapeDtypeStruct((n_split, L, B_pad, H), f32))  # c (per core)
    out_specs = (pl.BlockSpec((B_pad, tile_v),
                              lambda c, v: (0, c * tiles_per_core + v)),
                 pl.BlockSpec((None, B_pad, 1), lambda c, v: (c, 0, 0)),
                 pl.BlockSpec((None, L, B_pad, H), lambda c, v: (c, 0, 0, 0)),
                 pl.BlockSpec((None, L, B_pad, H), lambda c, v: (c, 0, 0, 0)))

    # --- VMEM budget (counts actual buffer multiplicities) -------------------
    def nbytes(x):
        return int(np.prod(x.shape)) * x.dtype.itemsize
    resident_bytes = sum(nbytes(x) for x in resident_inputs)          # Buffered(1)
    stream_bytes = n_buf * (E * tile_v * 2 + tile_v * 4)              # bf16 W + f32 b
    out_bytes = (2 * B_pad * tile_v * 4                               # logits tile x2
                 + 2 * (B_pad * 4 + 2 * L * B_pad * H * 4))           # lse + h + c
    scratch_bytes = B_pad * E * 2 + 2 * B_pad * 4
    vmem_limit = (resident_bytes + stream_bytes + out_bytes + scratch_bytes
                  + (4 << 20))
    vmem_limit = max(vmem_limit, 16 << 20)
    try:
        vmem_cap = int(pltpu.get_tpu_info().vmem_capacity_bytes)      # 64 MiB v7x
    except Exception:
        vmem_cap = 64 << 20
    vmem_limit = min(vmem_limit, vmem_cap)

    kernel = _make_kernel(num_layers=L, hidden_dim=H, embed_dim=E,
                          batch_pad=B_pad, t_actual=T, t_pad=T_pad,
                          tile_v=tile_v)

    logits_pad, lse_part, h_all, c_all = pl.pallas_call(
        kernel,
        out_shape=out_shape,
        grid=(n_split, tiles_per_core),
        in_specs=in_specs,
        out_specs=out_specs,
        scratch_shapes=[pltpu.VMEM((B_pad, E), jnp.bfloat16),  # bf16 word activation
                        pltpu.VMEM((B_pad, 1), f32),           # running max
                        pltpu.VMEM((B_pad, 1), f32)],          # running sum-exp
        compiler_params=pltpu.CompilerParams(
            dimension_semantics=("parallel", "arbitrary"),
            vmem_limit_bytes=int(vmem_limit)),
    )(*inputs)

    # Combine the per-core partial LSEs (safe logsumexp) and normalize in the
    # wrapper; padded vocab columns carried a -1e30 bias so they contribute 0.
    m_g = jnp.max(lse_part, axis=0)                                   # (B_pad, 1)
    lse = m_g + jnp.log(jnp.sum(jnp.exp(lse_part - m_g), axis=0))
    logp = logits_pad[:B, :V] - lse[:B]
    h_new = h_all[0, :, :B, :]
    c_new = c_all[0, :, :B, :]
    return logp, (h_new, c_new)


# ----------------------------------------------------------------------------
# Pure-JAX reference (mirrors the PyTorch forward, torch weight conventions)
# ----------------------------------------------------------------------------
def reference_forward(params, vis, sem, emb, h0, c0, num_layers):
    last_hidden = h0[0]
    Wh = last_hidden @ params['W'].T
    U_all = vis @ params['Ul'].T
    attn = jnp.tanh(Wh[:, None, :] + U_all + params['bl']) @ params['wl'].T
    attn = jax.nn.softmax(attn, axis=1)
    attn_visual = jnp.sum(attn * vis, axis=1)
    x = jnp.concatenate([attn_visual, sem, emb], axis=-1)
    hs, cs = [], []
    for l in range(num_layers):
        lp = params['lstm'][l]
        gates = x @ lp['w_ih'].T + lp['b_ih'] + h0[l] @ lp['w_hh'].T + lp['b_hh']
        i, f, g, o = jnp.split(gates, 4, axis=-1)
        i, f, o = jax.nn.sigmoid(i), jax.nn.sigmoid(f), jax.nn.sigmoid(o)
        g = jnp.tanh(g)
        c = f * c0[l] + i * g
        h = o * jnp.tanh(c)
        hs.append(h)
        cs.append(c)
        x = h
    out = x @ params['to_word_w'].T + params['to_word_b']
    # Match the kernel: the to_word activation is fed to the vocab projection
    # in bf16 (native bf16 x bf16 MXU path).
    out = out.astype(jnp.bfloat16).astype(jnp.float32)
    logits = out @ params['logit_w'].T + params['logit_b']
    return jax.nn.log_softmax(logits, axis=1), (jnp.stack(hs), jnp.stack(cs))


if __name__ == "__main__":
    # Small shapes consistent with the module (semantics width == hidden_dim
    # so the torch concat matches the LSTM input size 2*hidden + embed).
    # max_tile_v is capped at 128 here so the multi-tile / two-way-split vocab
    # streaming path is exercised even at this tiny vocab.
    hidden_dim, semantics_dim, num_layers, embed_dim, n_vocab = 32, 32, 2, 32, 500
    B, T = 2, 8

    key = jax.random.PRNGKey(0)
    pkey, dkey = jax.random.split(key)
    params = quantize_params(
        init_params(pkey, hidden_dim, semantics_dim, num_layers, embed_dim,
                    n_vocab))
    prepped, meta = prepare_kernel_params(
        params, hidden_dim=hidden_dim, embed_dim=embed_dim, n_vocab=n_vocab,
        num_layers=num_layers, max_tile_v=128, num_vocab_splits=2)

    k1, k2, k3, k4, k5 = jax.random.split(dkey, 5)
    vis = jax.random.normal(k1, (B, T, hidden_dim), jnp.float32)
    sem = jax.random.normal(k2, (B, hidden_dim), jnp.float32)
    emb = jax.random.normal(k3, (B, embed_dim), jnp.float32)
    h0 = jax.random.normal(k4, (num_layers, B, hidden_dim), jnp.float32)
    c0 = jax.random.normal(k5, (num_layers, B, hidden_dim), jnp.float32)

    fwd = jax.jit(lambda p, a, b, c, d, e: fusion_decoder_forward(
        p, meta, a, b, c, d, e))
    logp, (h_new, c_new) = fwd(prepped, vis, sem, emb, h0, c0)
    jax.block_until_ready((logp, h_new, c_new))

    ref_logp, (ref_h, ref_c) = reference_forward(
        params, vis, sem, emb, h0, c0, num_layers)
    np.testing.assert_allclose(np.asarray(logp), np.asarray(ref_logp),
                               atol=1e-4, rtol=1e-4)
    np.testing.assert_allclose(np.asarray(h_new), np.asarray(ref_h),
                               atol=1e-4, rtol=1e-4)
    np.testing.assert_allclose(np.asarray(c_new), np.asarray(ref_c),
                               atol=1e-4, rtol=1e-4)

    print("KERNEL_OK")
</pallas_src>

<mosaic_0001>
module attributes {stable_mosaic.version = 11 : i64} {
  func.func @kernel(%arg0: i32, %arg1: i32, %arg2: memref<8x8x32xf32, #tpu.memory_space<vmem>>, %arg3: memref<8x32xf32, #tpu.memory_space<vmem>>, %arg4: memref<8x32xf32, #tpu.memory_space<vmem>>, %arg5: memref<2x8x32xf32, #tpu.memory_space<vmem>>, %arg6: memref<2x8x32xf32, #tpu.memory_space<vmem>>, %arg7: memref<32x32xbf16, #tpu.memory_space<vmem>>, %arg8: memref<32x32xbf16, #tpu.memory_space<vmem>>, %arg9: memref<1x32xf32, #tpu.memory_space<vmem>>, %arg10: memref<1x32xbf16, #tpu.memory_space<vmem>>, %arg11: memref<32x128xbf16, #tpu.memory_space<vmem>>, %arg12: memref<32x128xbf16, #tpu.memory_space<vmem>>, %arg13: memref<32x128xbf16, #tpu.memory_space<vmem>>, %arg14: memref<2x32x128xbf16, #tpu.memory_space<vmem>>, %arg15: memref<1x32x128xbf16, #tpu.memory_space<vmem>>, %arg16: memref<2x1x128xf32, #tpu.memory_space<vmem>>, %arg17: memref<32x32xbf16, #tpu.memory_space<vmem>>, %arg18: memref<1x32xf32, #tpu.memory_space<vmem>>, %arg19: memref<32x128xbf16, #tpu.memory_space<vmem>>, %arg20: memref<1x128xf32, #tpu.memory_space<vmem>>, %arg21: memref<8x128xf32, #tpu.memory_space<vmem>>, %arg22: memref<1x8x1xf32, #tpu.memory_space<vmem>>, %arg23: memref<1x2x8x32xf32, #tpu.memory_space<vmem>>, %arg24: memref<1x2x8x32xf32, #tpu.memory_space<vmem>>, %arg25: memref<8x32xbf16, #tpu.memory_space<vmem>>, %arg26: memref<8x1xf32, #tpu.memory_space<vmem>>, %arg27: memref<8x1xf32, #tpu.memory_space<vmem>>) attributes {dimension_semantics = [#tpu.dimension_semantics<parallel>, #tpu.dimension_semantics<arbitrary>], iteration_bounds = array<i64: 2, 2>, scalar_prefetch = 0 : i64, scratch_operands = 3 : i64, tpu.core_type = #tpu.core_type<tc>, window_params = [{pipeline_mode = #tpu.pipeline_mode<synchronous>, transform_indices = @transform_0, window_bounds = array<i64: 8, 8, 32>}, {pipeline_mode = #tpu.pipeline_mode<synchronous>, transform_indices = @transform_1, window_bounds = array<i64: 8, 32>}, {pipeline_mode = #tpu.pipeline_mode<synchronous>, transform_indices = @transform_2, window_bounds = array<i64: 8, 32>}, {pipeline_mode = #tpu.pipeline_mode<synchronous>, transform_indices = @transform_3, window_bounds = array<i64: 2, 8, 32>}, {pipeline_mode = #tpu.pipeline_mode<synchronous>, transform_indices = @transform_4, window_bounds = array<i64: 2, 8, 32>}, {pipeline_mode = #tpu.pipeline_mode<synchronous>, transform_indices = @transform_5, window_bounds = array<i64: 32, 32>}, {pipeline_mode = #tpu.pipeline_mode<synchronous>, transform_indices = @transform_6, window_bounds = array<i64: 32, 32>}, {pipeline_mode = #tpu.pipeline_mode<synchronous>, transform_indices = @transform_7, window_bounds = array<i64: 1, 32>}, {pipeline_mode = #tpu.pipeline_mode<synchronous>, transform_indices = @transform_8, window_bounds = array<i64: 1, 32>}, {pipeline_mode = #tpu.pipeline_mode<synchronous>, transform_indices = @transform_9, window_bounds = array<i64: 32, 128>}, {pipeline_mode = #tpu.pipeline_mode<synchronous>, transform_indices = @transform_10, window_bounds = array<i64: 32, 128>}, {pipeline_mode = #tpu.pipeline_mode<synchronous>, transform_indices = @transform_11, window_bounds = array<i64: 32, 128>}, {pipeline_mode = #tpu.pipeline_mode<synchronous>, transform_indices = @transform_12, window_bounds = array<i64: 2, 32, 128>}, {pipeline_mode = #tpu.pipeline_mode<synchronous>, transform_indices = @transform_13, window_bounds = array<i64: 1, 32, 128>}, {pipeline_mode = #tpu.pipeline_mode<synchronous>, transform_indices = @transform_14, window_bounds = array<i64: 2, 1, 128>}, {pipeline_mode = #tpu.pipeline_mode<synchronous>, transform_indices = @transform_15, window_bounds = array<i64: 32, 32>}, {pipeline_mode = #tpu.pipeline_mode<synchronous>, transform_indices = @transform_16, window_bounds = array<i64: 1, 32>}, {pipeline_mode = #tpu.pipeline_mode<double_buffered>, transform_indices = @transform_17, window_bounds = array<i64: 32, 128>}, {pipeline_mode = #tpu.pipeline_mode<double_buffered>, transform_indices = @transform_18, window_bounds = array<i64: 1, 128>}, {transform_indices = @transform_19, window_bounds = array<i64: 8, 128>}, {transform_indices = @transform_20, window_bounds = array<i64: 1, 8, 1>}, {transform_indices = @transform_21, window_bounds = array<i64: 1, 2, 8, 32>}, {transform_indices = @transform_22, window_bounds = array<i64: 1, 2, 8, 32>}]} {
    %c0_i32 = arith.constant 0 : i32
    %0 = arith.cmpi eq, %arg1, %c0_i32 : i32
    %1 = arith.extui %0 : i1 to i32
    %c0_i32_0 = arith.constant 0 : i32
    %2 = arith.cmpi ne, %1, %c0_i32_0 : i32
    scf.if %2 {
      %c0_19 = arith.constant 0 : index
      %c0_20 = arith.constant 0 : index
      %c0_21 = arith.constant 0 : index
      %29 = vector.load %arg2[%c0_19, %c0_20, %c0_21] : memref<8x8x32xf32, #tpu.memory_space<vmem>>, vector<8x8x32xf32>
      %c0_22 = arith.constant 0 : index
      %c0_23 = arith.constant 0 : index
      %30 = vector.load %arg3[%c0_22, %c0_23] : memref<8x32xf32, #tpu.memory_space<vmem>>, vector<8x32xf32>
      %c0_24 = arith.constant 0 : index
      %c0_25 = arith.constant 0 : index
      %31 = vector.load %arg4[%c0_24, %c0_25] : memref<8x32xf32, #tpu.memory_space<vmem>>, vector<8x32xf32>
      %c0_26 = arith.constant 0 : index
      %c0_27 = arith.constant 0 : index
      %c0_28 = arith.constant 0 : index
      %32 = vector.load %arg5[%c0_26, %c0_27, %c0_28] : memref<2x8x32xf32, #tpu.memory_space<vmem>>, vector<1x8x32xf32>
      %33 = vector.shape_cast %32 : vector<1x8x32xf32> to vector<8x32xf32>
      %c0_29 = arith.constant 0 : index
      %c0_30 = arith.constant 0 : index
      %c0_31 = arith.constant 0 : index
      %34 = vector.load %arg6[%c0_29, %c0_30, %c0_31] : memref<2x8x32xf32, #tpu.memory_space<vmem>>, vector<1x8x32xf32>
      %35 = vector.shape_cast %34 : vector<1x8x32xf32> to vector<8x32xf32>
      %c0_32 = arith.constant 0 : index
      %c0_33 = arith.constant 0 : index
      %36 = vector.load %arg7[%c0_32, %c0_33] : memref<32x32xbf16, #tpu.memory_space<vmem>>, vector<32x32xbf16>
      %37 = arith.extf %36 : vector<32x32xbf16> to vector<32x32xf32>
      %cst_34 = arith.constant dense<0.000000e+00> : vector<8x32xf32>
      %38 = tpu.matmul %33, %37, %cst_34 {dimension_numbers = #tpu.dot_dimension_numbers<[1], [0], [0], [1], [0, 0, 1, 1], [], []>} : vector<8x32xf32>, vector<32x32xf32>, vector<8x32xf32> -> vector<8x32xf32>
      %39 = vector.shape_cast %29 : vector<8x8x32xf32> to vector<64x32xf32>
      %c0_35 = arith.constant 0 : index
      %c0_36 = arith.constant 0 : index
      %40 = vector.load %arg8[%c0_35, %c0_36] : memref<32x32xbf16, #tpu.memory_space<vmem>>, vector<32x32xbf16>
      %41 = arith.extf %40 : vector<32x32xbf16> to vector<32x32xf32>
      %cst_37 = arith.constant dense<0.000000e+00> : vector<64x32xf32>
      %42 = tpu.matmul %39, %41, %cst_37 {dimension_numbers = #tpu.dot_dimension_numbers<[1], [0], [0], [1], [0, 0, 1, 1], [], []>} : vector<64x32xf32>, vector<32x32xf32>, vector<64x32xf32> -> vector<64x32xf32>
      %43 = vector.shape_cast %38 : vector<8x32xf32> to vector<8x1x32xf32>
      %44 = vector.shape_cast %42 : vector<64x32xf32> to vector<8x8x32xf32>
      %45 = vector.broadcast %43 : vector<8x1x32xf32> to vector<8x8x32xf32>
      %46 = arith.addf %45, %44 : vector<8x8x32xf32>
      %c0_38 = arith.constant 0 : index
      %c0_39 = arith.constant 0 : index
      %47 = vector.load %arg9[%c0_38, %c0_39] : memref<1x32xf32, #tpu.memory_space<vmem>>, vector<1x32xf32>
      %48 = vector.shape_cast %47 : vector<1x32xf32> to vector<1x1x32xf32>
      %49 = vector.broadcast %48 : vector<1x1x32xf32> to vector<8x8x32xf32>
      %50 = arith.addf %46, %49 : vector<8x8x32xf32>
      %51 = math.tanh %50 : vector<8x8x32xf32>
      %c0_40 = arith.constant 0 : index
      %c0_41 = arith.constant 0 : index
      %52 = vector.load %arg10[%c0_40, %c0_41] : memref<1x32xbf16, #tpu.memory_space<vmem>>, vector<1x32xbf16>
      %53 = arith.extf %52 : vector<1x32xbf16> to vector<1x32xf32>
      %54 = vector.shape_cast %53 : vector<1x32xf32> to vector<1x1x32xf32>
      %55 = vector.broadcast %54 : vector<1x1x32xf32> to vector<8x8x32xf32>
      %56 = arith.mulf %51, %55 : vector<8x8x32xf32>
      %cst_42 = arith.constant dense<0.000000e+00> : vector<8x8xf32>
      %57 = vector.multi_reduction <add>, %56, %cst_42 [2] : vector<8x8x32xf32> to vector<8x8xf32>
      %58 = vector.shape_cast %57 : vector<8x8xf32> to vector<8x8x1xf32>
      %cst_43 = arith.constant dense<0xFF800000> : vector<8x1xf32>
      %59 = vector.multi_reduction <maximumf>, %58, %cst_43 [1] : vector<8x8x1xf32> to vector<8x1xf32>
      %60 = vector.shape_cast %59 : vector<8x1xf32> to vector<8x1x1xf32>
      %61 = vector.broadcast %60 : vector<8x1x1xf32> to vector<8x8x1xf32>
      %62 = arith.subf %58, %61 : vector<8x8x1xf32>
      %63 = math.exp %62 : vector<8x8x1xf32>
      %cst_44 = arith.constant dense<0.000000e+00> : vector<8x1xf32>
      %64 = vector.multi_reduction <add>, %63, %cst_44 [1] : vector<8x8x1xf32> to vector<8x1xf32>
      %65 = vector.shape_cast %64 : vector<8x1xf32> to vector<8x1x1xf32>
      %66 = tpu.reciprocal %65 : vector<8x1x1xf32> -> vector<8x1x1xf32>
      %67 = vector.broadcast %66 : vector<8x1x1xf32> to vector<8x8x1xf32>
      %68 = arith.mulf %63, %67 : vector<8x8x1xf32>
      %69 = vector.broadcast %68 : vector<8x8x1xf32> to vector<8x8x32xf32>
      %70 = arith.mulf %69, %29 : vector<8x8x32xf32>
      %cst_45 = arith.constant dense<0.000000e+00> : vector<8x32xf32>
      %71 = vector.multi_reduction <add>, %70, %cst_45 [1] : vector<8x8x32xf32> to vector<8x32xf32>
      %c0_46 = arith.constant 0 : index
      %c0_47 = arith.constant 0 : index
      %72 = vector.load %arg11[%c0_46, %c0_47] : memref<32x128xbf16, #tpu.memory_space<vmem>>, vector<32x128xbf16>
      %73 = arith.extf %72 : vector<32x128xbf16> to vector<32x128xf32>
      %cst_48 = arith.constant dense<0.000000e+00> : vector<8x128xf32>
      %74 = tpu.matmul %71, %73, %cst_48 {dimension_numbers = #tpu.dot_dimension_numbers<[1], [0], [0], [1], [0, 0, 1, 1], [], []>} : vector<8x32xf32>, vector<32x128xf32>, vector<8x128xf32> -> vector<8x128xf32>
      %c0_49 = arith.constant 0 : index
      %c0_50 = arith.constant 0 : index
      %75 = vector.load %arg12[%c0_49, %c0_50] : memref<32x128xbf16, #tpu.memory_space<vmem>>, vector<32x128xbf16>
      %76 = arith.extf %75 : vector<32x128xbf16> to vector<32x128xf32>
      %cst_51 = arith.constant dense<0.000000e+00> : vector<8x128xf32>
      %77 = tpu.matmul %30, %76, %cst_51 {dimension_numbers = #tpu.dot_dimension_numbers<[1], [0], [0], [1], [0, 0, 1, 1], [], []>} : vector<8x32xf32>, vector<32x128xf32>, vector<8x128xf32> -> vector<8x128xf32>
      %78 = arith.addf %74, %77 : vector<8x128xf32>
      %c0_52 = arith.constant 0 : index
      %c0_53 = arith.constant 0 : index
      %79 = vector.load %arg13[%c0_52, %c0_53] : memref<32x128xbf16, #tpu.memory_space<vmem>>, vector<32x128xbf16>
      %80 = arith.extf %79 : vector<32x128xbf16> to vector<32x128xf32>
      %cst_54 = arith.constant dense<0.000000e+00> : vector<8x128xf32>
      %81 = tpu.matmul %31, %80, %cst_54 {dimension_numbers = #tpu.dot_dimension_numbers<[1], [0], [0], [1], [0, 0, 1, 1], [], []>} : vector<8x32xf32>, vector<32x128xf32>, vector<8x128xf32> -> vector<8x128xf32>
      %82 = arith.addf %78, %81 : vector<8x128xf32>
      %c0_55 = arith.constant 0 : index
      %c0_56 = arith.constant 0 : index
      %c0_57 = arith.constant 0 : index
      %83 = vector.load %arg14[%c0_55, %c0_56, %c0_57] : memref<2x32x128xbf16, #tpu.memory_space<vmem>>, vector<1x32x128xbf16>
      %84 = vector.shape_cast %83 : vector<1x32x128xbf16> to vector<32x128xbf16>
      %85 = arith.extf %84 : vector<32x128xbf16> to vector<32x128xf32>
      %cst_58 = arith.constant dense<0.000000e+00> : vector<8x128xf32>
      %86 = tpu.matmul %33, %85, %cst_58 {dimension_numbers = #tpu.dot_dimension_numbers<[1], [0], [0], [1], [0, 0, 1, 1], [], []>} : vector<8x32xf32>, vector<32x128xf32>, vector<8x128xf32> -> vector<8x128xf32>
      %87 = arith.addf %82, %86 : vector<8x128xf32>
      %c0_59 = arith.constant 0 : index
      %c0_60 = arith.constant 0 : index
      %c0_61 = arith.constant 0 : index
      %88 = vector.load %arg16[%c0_59, %c0_60, %c0_61] : memref<2x1x128xf32, #tpu.memory_space<vmem>>, vector<1x1x128xf32>
      %89 = vector.shape_cast %88 : vector<1x1x128xf32> to vector<1x128xf32>
      %90 = vector.broadcast %89 : vector<1x128xf32> to vector<8x128xf32>
      %91 = arith.addf %87, %90 : vector<8x128xf32>
      %92 = vector.extract_strided_slice %91 {offsets = [0, 0], sizes = [8, 32], strides = [1, 1]} : vector<8x128xf32> to vector<8x32xf32>
      %cst_62 = arith.constant 0.000000e+00 : f32
      %93 = vector.broadcast %cst_62 : f32 to vector<8x32xf32>
      %94 = arith.subf %93, %92 : vector<8x32xf32>
      %95 = math.exp %94 : vector<8x32xf32>
      %cst_63 = arith.constant 1.000000e+00 : f32
      %96 = vector.broadcast %cst_63 : f32 to vector<8x32xf32>
      %97 = arith.addf %96, %95 : vector<8x32xf32>
      %98 = tpu.reciprocal %97 : vector<8x32xf32> -> vector<8x32xf32>
      %99 = vector.extract_strided_slice %91 {offsets = [0, 32], sizes = [8, 32], strides = [1, 1]} : vector<8x128xf32> to vector<8x32xf32>
      %cst_64 = arith.constant 0.000000e+00 : f32
      %100 = vector.broadcast %cst_64 : f32 to vector<8x32xf32>
      %101 = arith.subf %100, %99 : vector<8x32xf32>
      %102 = math.exp %101 : vector<8x32xf32>
      %cst_65 = arith.constant 1.000000e+00 : f32
      %103 = vector.broadcast %cst_65 : f32 to vector<8x32xf32>
      %104 = arith.addf %103, %102 : vector<8x32xf32>
      %105 = tpu.reciprocal %104 : vector<8x32xf32> -> vector<8x32xf32>
      %106 = vector.extract_strided_slice %91 {offsets = [0, 64], sizes = [8, 32], strides = [1, 1]} : vector<8x128xf32> to vector<8x32xf32>
      %107 = math.tanh %106 : vector<8x32xf32>
      %108 = vector.extract_strided_slice %91 {offsets = [0, 96], sizes = [8, 32], strides = [1, 1]} : vector<8x128xf32> to vector<8x32xf32>
      %cst_66 = arith.constant 0.000000e+00 : f32
      %109 = vector.broadcast %cst_66 : f32 to vector<8x32xf32>
      %110 = arith.subf %109, %108 : vector<8x32xf32>
      %111 = math.exp %110 : vector<8x32xf32>
      %cst_67 = arith.constant 1.000000e+00 : f32
      %112 = vector.broadcast %cst_67 : f32 to vector<8x32xf32>
      %113 = arith.addf %112, %111 : vector<8x32xf32>
      %114 = tpu.reciprocal %113 : vector<8x32xf32> -> vector<8x32xf32>
      %115 = arith.mulf %105, %35 : vector<8x32xf32>
      %116 = arith.mulf %98, %107 : vector<8x32xf32>
      %117 = arith.addf %115, %116 : vector<8x32xf32>
      %118 = math.tanh %117 : vector<8x32xf32>
      %119 = arith.mulf %114, %118 : vector<8x32xf32>
      %c0_68 = arith.constant 0 : index
      %c0_69 = arith.constant 0 : index
      %c0_70 = arith.constant 0 : index
      %c0_71 = arith.constant 0 : index
      %120 = vector.load %arg23[%c0_68, %c0_69, %c0_70, %c0_71] : memref<1x2x8x32xf32, #tpu.memory_space<vmem>>, vector<1x1x8x32xf32>
      %121 = vector.shape_cast %120 : vector<1x1x8x32xf32> to vector<8x32xf32>
      %122 = vector.shape_cast %119 : vector<8x32xf32> to vector<1x1x8x32xf32>
      tpu.vector_store %arg23[%c0_68, %c0_69, %c0_70, %c0_71], %122 {strides = array<i32>} : memref<1x2x8x32xf32, #tpu.memory_space<vmem>>, vector<1x1x8x32xf32>,
      %c0_72 = arith.constant 0 : index
      %c0_73 = arith.constant 0 : index
      %c0_74 = arith.constant 0 : index
      %c0_75 = arith.constant 0 : index
      %123 = vector.load %arg24[%c0_72, %c0_73, %c0_74, %c0_75] : memref<1x2x8x32xf32, #tpu.memory_space<vmem>>, vector<1x1x8x32xf32>
      %124 = vector.shape_cast %123 : vector<1x1x8x32xf32> to vector<8x32xf32>
      %125 = vector.shape_cast %117 : vector<8x32xf32> to vector<1x1x8x32xf32>
      tpu.vector_store %arg24[%c0_72, %c0_73, %c0_74, %c0_75], %125 {strides = array<i32>} : memref<1x2x8x32xf32, #tpu.memory_space<vmem>>, vector<1x1x8x32xf32>,
      %c0_76 = arith.constant 0 : index
      %c0_77 = arith.constant 0 : index
      %c0_78 = arith.constant 0 : index
      %126 = vector.load %arg15[%c0_76, %c0_77, %c0_78] : memref<1x32x128xbf16, #tpu.memory_space<vmem>>, vector<1x32x128xbf16>
      %127 = vector.shape_cast %126 : vector<1x32x128xbf16> to vector<32x128xbf16>
      %128 = arith.extf %127 : vector<32x128xbf16> to vector<32x128xf32>
      %cst_79 = arith.constant dense<0.000000e+00> : vector<8x128xf32>
      %129 = tpu.matmul %119, %128, %cst_79 {dimension_numbers = #tpu.dot_dimension_numbers<[1], [0], [0], [1], [0, 0, 1, 1], [], []>} : vector<8x32xf32>, vector<32x128xf32>, vector<8x128xf32> -> vector<8x128xf32>
      %c1 = arith.constant 1 : index
      %c0_80 = arith.constant 0 : index
      %c0_81 = arith.constant 0 : index
      %130 = vector.load %arg5[%c1, %c0_80, %c0_81] : memref<2x8x32xf32, #tpu.memory_space<vmem>>, vector<1x8x32xf32>
      %131 = vector.shape_cast %130 : vector<1x8x32xf32> to vector<8x32xf32>
      %c1_82 = arith.constant 1 : index
      %c0_83 = arith.constant 0 : index
      %c0_84 = arith.constant 0 : index
      %132 = vector.load %arg14[%c1_82, %c0_83, %c0_84] : memref<2x32x128xbf16, #tpu.memory_space<vmem>>, vector<1x32x128xbf16>
      %133 = vector.shape_cast %132 : vector<1x32x128xbf16> to vector<32x128xbf16>
      %134 = arith.extf %133 : vector<32x128xbf16> to vector<32x128xf32>
      %cst_85 = arith.constant dense<0.000000e+00> : vector<8x128xf32>
      %135 = tpu.matmul %131, %134, %cst_85 {dimension_numbers = #tpu.dot_dimension_numbers<[1], [0], [0], [1], [0, 0, 1, 1], [], []>} : vector<8x32xf32>, vector<32x128xf32>, vector<8x128xf32> -> vector<8x128xf32>
      %136 = arith.addf %129, %135 : vector<8x128xf32>
      %c1_86 = arith.constant 1 : index
      %c0_87 = arith.constant 0 : index
      %c0_88 = arith.constant 0 : index
      %137 = vector.load %arg16[%c1_86, %c0_87, %c0_88] : memref<2x1x128xf32, #tpu.memory_space<vmem>>, vector<1x1x128xf32>
      %138 = vector.shape_cast %137 : vector<1x1x128xf32> to vector<1x128xf32>
      %139 = vector.broadcast %138 : vector<1x128xf32> to vector<8x128xf32>
      %140 = arith.addf %136, %139 : vector<8x128xf32>
      %c1_89 = arith.constant 1 : index
      %c0_90 = arith.constant 0 : index
      %c0_91 = arith.constant 0 : index
      %141 = vector.load %arg6[%c1_89, %c0_90, %c0_91] : memref<2x8x32xf32, #tpu.memory_space<vmem>>, vector<1x8x32xf32>
      %142 = vector.shape_cast %141 : vector<1x8x32xf32> to vector<8x32xf32>
      %143 = vector.extract_strided_slice %140 {offsets = [0, 0], sizes = [8, 32], strides = [1, 1]} : vector<8x128xf32> to vector<8x32xf32>
      %cst_92 = arith.constant 0.000000e+00 : f32
      %144 = vector.broadcast %cst_92 : f32 to vector<8x32xf32>
      %145 = arith.subf %144, %143 : vector<8x32xf32>
      %146 = math.exp %145 : vector<8x32xf32>
      %cst_93 = arith.constant 1.000000e+00 : f32
      %147 = vector.broadcast %cst_93 : f32 to vector<8x32xf32>
      %148 = arith.addf %147, %146 : vector<8x32xf32>
      %149 = tpu.reciprocal %148 : vector<8x32xf32> -> vector<8x32xf32>
      %150 = vector.extract_strided_slice %140 {offsets = [0, 32], sizes = [8, 32], strides = [1, 1]} : vector<8x128xf32> to vector<8x32xf32>
      %cst_94 = arith.constant 0.000000e+00 : f32
      %151 = vector.broadcast %cst_94 : f32 to vector<8x32xf32>
      %152 = arith.subf %151, %150 : vector<8x32xf32>
      %153 = math.exp %152 : vector<8x32xf32>
      %cst_95 = arith.constant 1.000000e+00 : f32
      %154 = vector.broadcast %cst_95 : f32 to vector<8x32xf32>
      %155 = arith.addf %154, %153 : vector<8x32xf32>
      %156 = tpu.reciprocal %155 : vector<8x32xf32> -> vector<8x32xf32>
      %157 = vector.extract_strided_slice %140 {offsets = [0, 64], sizes = [8, 32], strides = [1, 1]} : vector<8x128xf32> to vector<8x32xf32>
      %158 = math.tanh %157 : vector<8x32xf32>
      %159 = vector.extract_strided_slice %140 {offsets = [0, 96], sizes = [8, 32], strides = [1, 1]} : vector<8x128xf32> to vector<8x32xf32>
      %cst_96 = arith.constant 0.000000e+00 : f32
      %160 = vector.broadcast %cst_96 : f32 to vector<8x32xf32>
      %161 = arith.subf %160, %159 : vector<8x32xf32>
      %162 = math.exp %161 : vector<8x32xf32>
      %cst_97 = arith.constant 1.000000e+00 : f32
      %163 = vector.broadcast %cst_97 : f32 to vector<8x32xf32>
      %164 = arith.addf %163, %162 : vector<8x32xf32>
      %165 = tpu.reciprocal %164 : vector<8x32xf32> -> vector<8x32xf32>
      %166 = arith.mulf %156, %142 : vector<8x32xf32>
      %167 = arith.mulf %149, %158 : vector<8x32xf32>
      %168 = arith.addf %166, %167 : vector<8x32xf32>
      %169 = math.tanh %168 : vector<8x32xf32>
      %170 = arith.mulf %165, %169 : vector<8x32xf32>
      %c0_98 = arith.constant 0 : index
      %c1_99 = arith.constant 1 : index
      %c0_100 = arith.constant 0 : index
      %c0_101 = arith.constant 0 : index
      %171 = vector.load %arg23[%c0_98, %c1_99, %c0_100, %c0_101] : memref<1x2x8x32xf32, #tpu.memory_space<vmem>>, vector<1x1x8x32xf32>
      %172 = vector.shape_cast %171 : vector<1x1x8x32xf32> to vector<8x32xf32>
      %173 = vector.shape_cast %170 : vector<8x32xf32> to vector<1x1x8x32xf32>
      tpu.vector_store %arg23[%c0_98, %c1_99, %c0_100, %c0_101], %173 {strides = array<i32>} : memref<1x2x8x32xf32, #tpu.memory_space<vmem>>, vector<1x1x8x32xf32>,
      %c0_102 = arith.constant 0 : index
      %c1_103 = arith.constant 1 : index
      %c0_104 = arith.constant 0 : index
      %c0_105 = arith.constant 0 : index
      %174 = vector.load %arg24[%c0_102, %c1_103, %c0_104, %c0_105] : memref<1x2x8x32xf32, #tpu.memory_space<vmem>>, vector<1x1x8x32xf32>
      %175 = vector.shape_cast %174 : vector<1x1x8x32xf32> to vector<8x32xf32>
      %176 = vector.shape_cast %168 : vector<8x32xf32> to vector<1x1x8x32xf32>
      tpu.vector_store %arg24[%c0_102, %c1_103, %c0_104, %c0_105], %176 {strides = array<i32>} : memref<1x2x8x32xf32, #tpu.memory_space<vmem>>, vector<1x1x8x32xf32>,
      %c0_106 = arith.constant 0 : index
      %c0_107 = arith.constant 0 : index
      %177 = vector.load %arg17[%c0_106, %c0_107] : memref<32x32xbf16, #tpu.memory_space<vmem>>, vector<32x32xbf16>
      %178 = arith.extf %177 : vector<32x32xbf16> to vector<32x32xf32>
      %cst_108 = arith.constant dense<0.000000e+00> : vector<8x32xf32>
      %179 = tpu.matmul %170, %178, %cst_108 {dimension_numbers = #tpu.dot_dimension_numbers<[1], [0], [0], [1], [0, 0, 1, 1], [], []>} : vector<8x32xf32>, vector<32x32xf32>, vector<8x32xf32> -> vector<8x32xf32>
      %c0_109 = arith.constant 0 : index
      %c0_110 = arith.constant 0 : index
      %180 = vector.load %arg18[%c0_109, %c0_110] : memref<1x32xf32, #tpu.memory_space<vmem>>, vector<1x32xf32>
      %181 = vector.broadcast %180 : vector<1x32xf32> to vector<8x32xf32>
      %182 = arith.addf %179, %181 : vector<8x32xf32>
      %183 = arith.truncf %182 : vector<8x32xf32> to vector<8x32xbf16>
      %c0_111 = arith.constant 0 : index
      %c0_112 = arith.constant 0 : index
      %184 = vector.load %arg25[%c0_111, %c0_112] : memref<8x32xbf16, #tpu.memory_space<vmem>>, vector<8x32xbf16>
      tpu.vector_store %arg25[%c0_111, %c0_112], %183 {strides = array<i32>} : memref<8x32xbf16, #tpu.memory_space<vmem>>, vector<8x32xbf16>,
      %cst_113 = arith.constant 0xFF800000 : f32
      %185 = vector.broadcast %cst_113 : f32 to vector<8x1xf32>
      %c0_114 = arith.constant 0 : index
      %c0_115 = arith.constant 0 : index
      %186 = vector.load %arg26[%c0_114, %c0_115] : memref<8x1xf32, #tpu.memory_space<vmem>>, vector<8x1xf32>
      tpu.vector_store %arg26[%c0_114, %c0_115], %185 {strides = array<i32>} : memref<8x1xf32, #tpu.memory_space<vmem>>, vector<8x1xf32>,
      %cst_116 = arith.constant 0.000000e+00 : f32
      %187 = vector.broadcast %cst_116 : f32 to vector<8x1xf32>
      %c0_117 = arith.constant 0 : index
      %c0_118 = arith.constant 0 : index
      %188 = vector.load %arg27[%c0_117, %c0_118] : memref<8x1xf32, #tpu.memory_space<vmem>>, vector<8x1xf32>
      tpu.vector_store %arg27[%c0_117, %c0_118], %187 {strides = array<i32>} : memref<8x1xf32, #tpu.memory_space<vmem>>, vector<8x1xf32>,
    } else {
    }
    %c0 = arith.constant 0 : index
    %c0_1 = arith.constant 0 : index
    %3 = vector.load %arg25[%c0, %c0_1] : memref<8x32xbf16, #tpu.memory_space<vmem>>, vector<8x32xbf16>
    %c0_2 = arith.constant 0 : index
    %c0_3 = arith.constant 0 : index
    %4 = vector.load %arg19[%c0_2, %c0_3] : memref<32x128xbf16, #tpu.memory_space<vmem>>, vector<32x128xbf16>
    %cst = arith.constant dense<0.000000e+00> : vector<8x128xf32>
    %5 = tpu.matmul %3, %4, %cst {dimension_numbers = #tpu.dot_dimension_numbers<[1], [0], [0], [1], [0, 0, 1, 1], [], []>} : vector<8x32xbf16>, vector<32x128xbf16>, vector<8x128xf32> -> vector<8x128xf32>
    %c0_4 = arith.constant 0 : index
    %c0_5 = arith.constant 0 : index
    %6 = vector.load %arg20[%c0_4, %c0_5] : memref<1x128xf32, #tpu.memory_space<vmem>>, vector<1x128xf32>
    %7 = vector.broadcast %6 : vector<1x128xf32> to vector<8x128xf32>
    %8 = arith.addf %5, %7 : vector<8x128xf32>
    %c0_6 = arith.constant 0 : index
    %c0_7 = arith.constant 0 : index
    %9 = vector.load %arg26[%c0_6, %c0_7] : memref<8x1xf32, #tpu.memory_space<vmem>>, vector<8x1xf32>
    %cst_8 = arith.constant dense<0xFF800000> : vector<8xf32>
    %10 = vector.multi_reduction <maximumf>, %8, %cst_8 [1] : vector<8x128xf32> to vector<8xf32>
    %11 = vector.shape_cast %10 : vector<8xf32> to vector<8x1xf32>
    %12 = arith.maximumf %9, %11 : vector<8x1xf32>
    %c0_9 = arith.constant 0 : index
    %c0_10 = arith.constant 0 : index
    %13 = vector.load %arg27[%c0_9, %c0_10] : memref<8x1xf32, #tpu.memory_space<vmem>>, vector<8x1xf32>
    %14 = arith.subf %9, %12 : vector<8x1xf32>
    %15 = math.exp %14 : vector<8x1xf32>
    %16 = arith.mulf %13, %15 : vector<8x1xf32>
    %17 = vector.broadcast %12 : vector<8x1xf32> to vector<8x128xf32>
    %18 = arith.subf %8, %17 : vector<8x128xf32>
    %19 = math.exp %18 : vector<8x128xf32>
    %cst_11 = arith.constant dense<0.000000e+00> : vector<8xf32>
    %20 = vector.multi_reduction <add>, %19, %cst_11 [1] : vector<8x128xf32> to vector<8xf32>
    %21 = vector.shape_cast %20 : vector<8xf32> to vector<8x1xf32>
    %22 = arith.addf %16, %21 : vector<8x1xf32>
    %c0_12 = arith.constant 0 : index
    %c0_13 = arith.constant 0 : index
    %23 = vector.load %arg27[%c0_12, %c0_13] : memref<8x1xf32, #tpu.memory_space<vmem>>, vector<8x1xf32>
    tpu.vector_store %arg27[%c0_12, %c0_13], %22 {strides = array<i32>} : memref<8x1xf32, #tpu.memory_space<vmem>>, vector<8x1xf32>,
    %c0_14 = arith.constant 0 : index
    %c0_15 = arith.constant 0 : index
    %24 = vector.load %arg26[%c0_14, %c0_15] : memref<8x1xf32, #tpu.memory_space<vmem>>, vector<8x1xf32>
    tpu.vector_store %arg26[%c0_14, %c0_15], %12 {strides = array<i32>} : memref<8x1xf32, #tpu.memory_space<vmem>>, vector<8x1xf32>,
    %c0_16 = arith.constant 0 : index
    %c0_17 = arith.constant 0 : index
    %25 = vector.load %arg21[%c0_16, %c0_17] : memref<8x128xf32, #tpu.memory_space<vmem>>, vector<8x128xf32>
    tpu.vector_store %arg21[%c0_16, %c0_17], %8 {strides = array<i32>} : memref<8x128xf32, #tpu.memory_space<vmem>>, vector<8x128xf32>,
    %c1_i32 = arith.constant 1 : i32
    %26 = arith.cmpi eq, %arg1, %c1_i32 : i32
    %27 = arith.extui %26 : i1 to i32
    %c0_i32_18 = arith.constant 0 : i32
    %28 = arith.cmpi ne, %27, %c0_i32_18 : i32
    scf.if %28 {
      %c0_19 = arith.constant 0 : index
      %c0_20 = arith.constant 0 : index
      %29 = vector.load %arg26[%c0_19, %c0_20] : memref<8x1xf32, #tpu.memory_space<vmem>>, vector<8x1xf32>
      %c0_21 = arith.constant 0 : index
      %c0_22 = arith.constant 0 : index
      %30 = vector.load %arg27[%c0_21, %c0_22] : memref<8x1xf32, #tpu.memory_space<vmem>>, vector<8x1xf32>
      %31 = math.log %30 : vector<8x1xf32>
      %32 = arith.addf %29, %31 : vector<8x1xf32>
      %c0_23 = arith.constant 0 : index
      %c0_24 = arith.constant 0 : index
      %c0_25 = arith.constant 0 : index
      %33 = vector.load %arg22[%c0_23, %c0_24, %c0_25] : memref<1x8x1xf32, #tpu.memory_space<vmem>>, vector<1x8x1xf32>
      %34 = vector.shape_cast %33 : vector<1x8x1xf32> to vector<8x1xf32>
      %35 = vector.shape_cast %32 : vector<8x1xf32> to vector<1x8x1xf32>
      tpu.vector_store %arg22[%c0_23, %c0_24, %c0_25], %35 {strides = array<i32>} : memref<1x8x1xf32, #tpu.memory_space<vmem>>, vector<1x8x1xf32>,
    } else {
    }
    return
  }
  func.func @transform_0(%arg0: i32, %arg1: i32) -> (i32, i32, i32) {
    %c0_i32 = arith.constant 0 : i32
    %c0_i32_0 = arith.constant 0 : i32
    %c0_i32_1 = arith.constant 0 : i32
    %c0_i32_2 = arith.constant 0 : i32
    return %c0_i32, %c0_i32_0, %c0_i32_1 : i32, i32, i32
  }
  func.func @transform_1(%arg0: i32, %arg1: i32) -> (i32, i32) {
    %c0_i32 = arith.constant 0 : i32
    %c0_i32_0 = arith.constant 0 : i32
    %c0_i32_1 = arith.constant 0 : i32
    return %c0_i32, %c0_i32_0 : i32, i32
  }
  func.func @transform_2(%arg0: i32, %arg1: i32) -> (i32, i32) {
    %c0_i32 = arith.constant 0 : i32
    %c0_i32_0 = arith.constant 0 : i32
    %c0_i32_1 = arith.constant 0 : i32
    return %c0_i32, %c0_i32_0 : i32, i32
  }
  func.func @transform_3(%arg0: i32, %arg1: i32) -> (i32, i32, i32) {
    %c0_i32 = arith.constant 0 : i32
    %c0_i32_0 = arith.constant 0 : i32
    %c0_i32_1 = arith.constant 0 : i32
    %c0_i32_2 = arith.constant 0 : i32
    return %c0_i32, %c0_i32_0, %c0_i32_1 : i32, i32, i32
  }
  func.func @transform_4(%arg0: i32, %arg1: i32) -> (i32, i32, i32) {
    %c0_i32 = arith.constant 0 : i32
    %c0_i32_0 = arith.constant 0 : i32
    %c0_i32_1 = arith.constant 0 : i32
    %c0_i32_2 = arith.constant 0 : i32
    return %c0_i32, %c0_i32_0, %c0_i32_1 : i32, i32, i32
  }
  func.func @transform_5(%arg0: i32, %arg1: i32) -> (i32, i32) {
    %c0_i32 = arith.constant 0 : i32
    %c0_i32_0 = arith.constant 0 : i32
    %c0_i32_1 = arith.constant 0 : i32
    return %c0_i32, %c0_i32_0 : i32, i32
  }
  func.func @transform_6(%arg0: i32, %arg1: i32) -> (i32, i32) {
    %c0_i32 = arith.constant 0 : i32
    %c0_i32_0 = arith.constant 0 : i32
    %c0_i32_1 = arith.constant 0 : i32
    return %c0_i32, %c0_i32_0 : i32, i32
  }
  func.func @transform_7(%arg0: i32, %arg1: i32) -> (i32, i32) {
    %c0_i32 = arith.constant 0 : i32
    %c0_i32_0 = arith.constant 0 : i32
    %c0_i32_1 = arith.constant 0 : i32
    return %c0_i32, %c0_i32_0 : i32, i32
  }
  func.func @transform_8(%arg0: i32, %arg1: i32) -> (i32, i32) {
    %c0_i32 = arith.constant 0 : i32
    %c0_i32_0 = arith.constant 0 : i32
    %c0_i32_1 = arith.constant 0 : i32
    return %c0_i32, %c0_i32_0 : i32, i32
  }
  func.func @transform_9(%arg0: i32, %arg1: i32) -> (i32, i32) {
    %c0_i32 = arith.constant 0 : i32
    %c0_i32_0 = arith.constant 0 : i32
    %c0_i32_1 = arith.constant 0 : i32
    return %c0_i32, %c0_i32_0 : i32, i32
  }
  func.func @transform_10(%arg0: i32, %arg1: i32) -> (i32, i32) {
    %c0_i32 = arith.constant 0 : i32
    %c0_i32_0 = arith.constant 0 : i32
    %c0_i32_1 = arith.constant 0 : i32
    return %c0_i32, %c0_i32_0 : i32, i32
  }
  func.func @transform_11(%arg0: i32, %arg1: i32) -> (i32, i32) {
    %c0_i32 = arith.constant 0 : i32
    %c0_i32_0 = arith.constant 0 : i32
    %c0_i32_1 = arith.constant 0 : i32
    return %c0_i32, %c0_i32_0 : i32, i32
  }
  func.func @transform_12(%arg0: i32, %arg1: i32) -> (i32, i32, i32) {
    %c0_i32 = arith.constant 0 : i32
    %c0_i32_0 = arith.constant 0 : i32
    %c0_i32_1 = arith.constant 0 : i32
    %c0_i32_2 = arith.constant 0 : i32
    return %c0_i32, %c0_i32_0, %c0_i32_1 : i32, i32, i32
  }
  func.func @transform_13(%arg0: i32, %arg1: i32) -> (i32, i32, i32) {
    %c0_i32 = arith.constant 0 : i32
    %c0_i32_0 = arith.constant 0 : i32
    %c0_i32_1 = arith.constant 0 : i32
    %c0_i32_2 = arith.constant 0 : i32
    return %c0_i32, %c0_i32_0, %c0_i32_1 : i32, i32, i32
  }
  func.func @transform_14(%arg0: i32, %arg1: i32) -> (i32, i32, i32) {
    %c0_i32 = arith.constant 0 : i32
    %c0_i32_0 = arith.constant 0 : i32
    %c0_i32_1 = arith.constant 0 : i32
    %c0_i32_2 = arith.constant 0 : i32
    return %c0_i32, %c0_i32_0, %c0_i32_1 : i32, i32, i32
  }
  func.func @transform_15(%arg0: i32, %arg1: i32) -> (i32, i32) {
    %c0_i32 = arith.constant 0 : i32
    %c0_i32_0 = arith.constant 0 : i32
    %c0_i32_1 = arith.constant 0 : i32
    return %c0_i32, %c0_i32_0 : i32, i32
  }
  func.func @transform_16(%arg0: i32, %arg1: i32) -> (i32, i32) {
    %c0_i32 = arith.constant 0 : i32
    %c0_i32_0 = arith.constant 0 : i32
    %c0_i32_1 = arith.constant 0 : i32
    return %c0_i32, %c0_i32_0 : i32, i32
  }
  func.func @transform_17(%arg0: i32, %arg1: i32) -> (i32, i32) {
    %c2_i32 = arith.constant 2 : i32
    %0 = arith.muli %arg0, %c2_i32 : i32
    %1 = arith.addi %0, %arg1 : i32
    %c0_i32 = arith.constant 0 : i32
    %c0_i32_0 = arith.constant 0 : i32
    return %c0_i32, %1 : i32, i32
  }
  func.func @transform_18(%arg0: i32, %arg1: i32) -> (i32, i32) {
    %c2_i32 = arith.constant 2 : i32
    %0 = arith.muli %arg0, %c2_i32 : i32
    %1 = arith.addi %0, %arg1 : i32
    %c0_i32 = arith.constant 0 : i32
    %c0_i32_0 = arith.constant 0 : i32
    return %c0_i32, %1 : i32, i32
  }
  func.func @transform_19(%arg0: i32, %arg1: i32) -> (i32, i32) {
    %c2_i32 = arith.constant 2 : i32
    %0 = arith.muli %arg0, %c2_i32 : i32
    %1 = arith.addi %0, %arg1 : i32
    %c0_i32 = arith.constant 0 : i32
    %c0_i32_0 = arith.constant 0 : i32
    return %c0_i32, %1 : i32, i32
  }
  func.func @transform_20(%arg0: i32, %arg1: i32) -> (i32, i32, i32) {
    %c0_i32 = arith.constant 0 : i32
    %c0_i32_0 = arith.constant 0 : i32
    %c0_i32_1 = arith.constant 0 : i32
    return %arg0, %c0_i32, %c0_i32_0 : i32, i32, i32
  }
  func.func @transform_21(%arg0: i32, %arg1: i32) -> (i32, i32, i32, i32) {
    %c0_i32 = arith.constant 0 : i32
    %c0_i32_0 = arith.constant 0 : i32
    %c0_i32_1 = arith.constant 0 : i32
    %c0_i32_2 = arith.constant 0 : i32
    return %arg0, %c0_i32, %c0_i32_0, %c0_i32_1 : i32, i32, i32, i32
  }
  func.func @transform_22(%arg0: i32, %arg1: i32) -> (i32, i32, i32, i32) {
    %c0_i32 = arith.constant 0 : i32
    %c0_i32_0 = arith.constant 0 : i32
    %c0_i32_1 = arith.constant 0 : i32
    %c0_i32_2 = arith.constant 0 : i32
    return %arg0, %c0_i32, %c0_i32_0, %c0_i32_1 : i32, i32, i32, i32
  }
}

</mosaic_0001>

<llo_original>
// kernel: _lambda_.1
$region0: #{_lambda_.1}
  #allocation0 [shape = 'u32[]', space=smem, size = 0x4, offset = 0x4, fixed_abs, tag = 'smem constant byte address 0x4 - core index']
  #allocation1 [shape = 'u32[144,128]{1,0:T(1,128)}', space=vmem, size = 0x12000, scoped, tag = 'internal scratch']
  #allocation2 [shape = 'bf16[8,32]{1,0:T(8,128)(2,1)}', space=vmem, size = 0x800, scoped, tag = 'scratch operand']
  #allocation3 [shape = 'f32[8,1]{1,0:T(8,128)}', space=vmem, size = 0x1000, scoped, tag = 'scratch operand']
  #allocation4 [shape = 'f32[8,1]{1,0:T(8,128)}', space=vmem, size = 0x1000, scoped, tag = 'scratch operand']
  %s0 = inlined_call_operand.vmem [shape: f32[8,8,32], index: 0, kind: input, shape index: {}]
  %s1 = inlined_call_operand.vmem [shape: f32[8,32], index: 1, kind: input, shape index: {}]
  %s2 = inlined_call_operand.vmem [shape: f32[8,32], index: 2, kind: input, shape index: {}]
  %s3 = inlined_call_operand.vmem [shape: f32[2,8,32], index: 3, kind: input, shape index: {}]
  %s4 = inlined_call_operand.vmem [shape: f32[2,8,32], index: 4, kind: input, shape index: {}]
  %s5 = inlined_call_operand.vmem [shape: bf16[32,32], index: 5, kind: input, shape index: {}]
  %s6 = inlined_call_operand.vmem [shape: bf16[32,32], index: 6, kind: input, shape index: {}]
  %s7 = inlined_call_operand.hbm [shape: f32[1,32], index: 7, kind: input, shape index: {}]
  %s8 = inlined_call_operand.vmem [shape: bf16[1,32], index: 8, kind: input, shape index: {}]
  %s9 = inlined_call_operand.vmem [shape: bf16[32,128], index: 9, kind: input, shape index: {}]
  %s10 = inlined_call_operand.vmem [shape: bf16[32,128], index: 10, kind: input, shape index: {}]
  %s11 = inlined_call_operand.hbm [shape: bf16[32,128], index: 11, kind: input, shape index: {}]
  %s12 = inlined_call_operand.vmem [shape: bf16[2,32,128], index: 12, kind: input, shape index: {}]
  %s13 = inlined_call_operand.hbm [shape: bf16[1,32,128], index: 13, kind: input, shape index: {}]
  %s14 = inlined_call_operand.hbm [shape: f32[2,1,128], index: 14, kind: input, shape index: {}]
  %s15 = inlined_call_operand.hbm [shape: bf16[32,32], index: 15, kind: input, shape index: {}]
  %s16 = inlined_call_operand.hbm [shape: f32[1,32], index: 16, kind: input, shape index: {}]
  %s17 = inlined_call_operand.vmem [shape: bf16[32,512], index: 17, kind: input, shape index: {}]
  %s18 = inlined_call_operand.hbm [shape: f32[1,512], index: 18, kind: input, shape index: {}]
  %s19 = inlined_call_operand.vmem [shape: f32[8,512], index: 19, kind: output, shape index: {0}]
  %s20 = inlined_call_operand.vmem [shape: f32[2,8,1], index: 20, kind: output, shape index: {1}]
  %s21 = inlined_call_operand.vmem [shape: f32[2,2,8,32], index: 21, kind: output, shape index: {2}]
  %s22 = inlined_call_operand.vmem [shape: f32[2,2,8,32], index: 22, kind: output, shape index: {3}]
  %23 = xla_tuple %s19, %s20, %s21, %s22
  %s24 = sld [smem:[#allocation0]]
  $region210: #{_lambda_.1} parent=0
    _
  %s26 = ssub.s32 1, %s24
  %s27 = scalar_select 0, %s26, %s24
  $region1: #{_lambda_.1} parent=0
    #allocation5 [shape = 'u8[512]{0}', space=vmem, size = 0x400, scoped, tag = 'input window, operand 7, single buffered']
    #allocation6 [shape = 's32[2]{0}', space=sflag, size = 0x8, scoped, tag = 'scoped memory for _lambda_.1']
    #allocation7 [shape = 'u8[8192]{0}', space=vmem, size = 0x2000, scoped, tag = 'input window, operand 11, single buffered']
    #allocation8 [shape = 's32[1]{0}', space=sflag, size = 0x4, scoped, tag = 'scoped memory for _lambda_.1']
    #allocation9 [shape = 'u8[8192]{0}', space=vmem, size = 0x2000, scoped, tag = 'input window, operand 13, single buffered']
    #allocation10 [shape = 'u8[1024]{0}', space=vmem, size = 0x400, scoped, tag = 'input window, operand 14, single buffered']
    #allocation11 [shape = 's32[1]{0}', space=sflag, size = 0x4, scoped, tag = 'scoped memory for _lambda_.1']
    #allocation12 [shape = 'u8[8192]{0}', space=vmem, size = 0x2000, scoped, tag = 'input window, operand 15, single buffered']
    #allocation13 [shape = 'u8[512]{0}', space=vmem, size = 0x400, scoped, tag = 'input window, operand 16, single buffered']
    #allocation14 [shape = 's32[1]{0}', space=sflag, size = 0x4, scoped, tag = 'scoped memory for _lambda_.1']
    #allocation15 [shape = 'u8[16384]{0}', space=vmem, size = 0x4000, scoped, tag = 'input window, operand 17']
    #allocation16 [shape = 'u8[1024]{0}', space=vmem, size = 0x400, scoped, tag = 'input window, operand 18']
    %28 = vsyncpa [#allocation6], 0
    %29 = vsyncpa [#allocation8], 0
    %30 = vsyncpa [#allocation11], 0
    %31 = vsyncpa [#allocation14], 0
    loop: start=0, step=1, limit=6
    $region2: #{_lambda_.1} parent=1 // loop_pre_header
      _
    $region3: #{_lambda_.1} parent=1 // loop_header
      %s33 = sphi 0, %s37
      %p34 = scmp.ge.s32.totalorder %s33, 6
      %s40 = sphi 0, %s52
      %s41 = sphi 0, %s48
      %s42 = sphi 0, %s40
      %s43 = sphi 0, %s41
      %s44 = sphi 0, %s42
      %s45 = sphi 0, %s43
      %s53 = sphi 0, %s53
      %s55 = sphi 0, %s53
      %s56 = sphi 0, %s55
      %s70 = sphi 0, %s56
      %s74 = sphi 0, %s74
      %s76 = sphi 0, %s74
      %s77 = sphi 0, %s76
      %s91 = sphi 0, %s77
      %s95 = sphi 0, %s95
      %s97 = sphi 0, %s95
      %s98 = sphi 0, %s97
      %s112 = sphi 0, %s98
      %s116 = sphi 0, %s116
      %s118 = sphi 0, %s116
      %s119 = sphi 0, %s118
      %s133 = sphi 0, %s119
      %s137 = sphi 0, %s137
      %s139 = sphi 0, %s137
      %s140 = sphi 0, %s139
      %s154 = sphi 0, %s140
      %s158 = sphi 0, %s158
      %s160 = sphi 0, %s158
      %s161 = sphi 0, %s160
      %s175 = sphi 0, %s161
      %s179 = sphi 0, %s179
      %s181 = sphi 0, %s179
      %s182 = sphi 0, %s181
      %s196 = sphi 0, %s182
      %s200 = sphi 0, %s200
      %s202 = sphi 0, %s200
      %s203 = sphi 0, %s202
      %s217 = sphi 0, %s203
      %s221 = sphi 0, %s221
      %s223 = sphi 0, %s221
      %s224 = sphi 0, %s223
      %s238 = sphi 0, %s224
      %s242 = sphi 0, %s242
      %s244 = sphi 0, %s242
      %s245 = sphi 0, %s244
      %s259 = sphi 0, %s245
      %s263 = sphi 0, %s263
      %s265 = sphi 0, %s263
      %s266 = sphi 0, %s265
      %s280 = sphi 0, %s266
      %s284 = sphi 0, %s284
      %s286 = sphi 0, %s284
      %s287 = sphi 0, %s286
      %s301 = sphi 0, %s287
      %s305 = sphi 0, %s305
      %s307 = sphi 0, %s305
      %s308 = sphi 0, %s307
      %s322 = sphi 0, %s308
      %s326 = sphi 0, %s326
      %s328 = sphi 0, %s326
      %s329 = sphi 0, %s328
      %s343 = sphi 0, %s329
      %s347 = sphi 0, %s347
      %s349 = sphi 0, %s347
      %s350 = sphi 0, %s349
      %s364 = sphi 0, %s350
      %s368 = sphi 0, %s368
      %s370 = sphi 0, %s368
      %s371 = sphi 0, %s370
      %s385 = sphi 0, %s371
      %s389 = sphi 0, %s389
      %s391 = sphi 0, %s389
      %s392 = sphi 0, %s391
      %s406 = sphi 0, %s392
      %s416 = sphi 0, %s418
      %s419 = sphi 0, %s416
      %s420 = sphi 0, %s419
      %s436 = sphi 0, %s420
      %s446 = sphi 0, %s448
      %s449 = sphi 0, %s446
      %s450 = sphi 0, %s449
      %s466 = sphi 0, %s450
      %s476 = sphi 0, %s478
      %s479 = sphi 0, %s476
      %s480 = sphi 0, %s479
      %s496 = sphi 0, %s480
      %s502 = sphi 0, %s504
      %s505 = sphi 0, %s502
      %s506 = sphi 0, %s505
      %s522 = sphi 0, %s506
      %s528 = sphi 0, %s530
      %s531 = sphi 0, %s528
      %s532 = sphi 0, %s531
      %s548 = sphi 0, %s532
      %s554 = sphi 0, %s556
      %s557 = sphi 0, %s554
      %s558 = sphi 0, %s557
      %s574 = sphi 0, %s558
    $region4: #{_lambda_.1} parent=1 // loop_header_branch
      %36 = sbr.rel (%p34) target = $region8
    $region5: #{_lambda_.1} parent=1 // loop_body
      %s38 = ssub.s32 %s33, 1
      %s39 = ssub.s32 %s33, 2
      %s46 = sadd.s32 1, %s41
      %p47 = scmp.ge.s32.totalorder %s46, 2
      %s48 = scalar_select %p47, 0, %s46
      %s49 = sadd.s32 1, %s40
      %s50 = scalar_select %p47, %s49, %s40
      %p51 = scmp.ge.s32.totalorder %s50, 2
      %s52 = scalar_select %p51, 0, %s50
      %s54 = sadd.s32 %s53, 1
      %p57 = scmp.eq.s32.totalorder %s33, 3
      %p58 = scmp.ne.s32.totalorder %s53, %s55
      %p59 = scmp.eq.s32.totalorder %s33, 0
      %p60 = por %p58, %p59
      %p61 = scmp.ne.s32.totalorder %s53, %s55
      %p62 = scmp.eq.s32.totalorder %s38, 3
      %p63 = por %p61, %p62
      %p64 = scmp.ne.s32.totalorder %s55, %s56
      %p65 = scmp.eq.s32.totalorder %s38, 0
      %p66 = por %p64, %p65
      %p67 = scmp.ne.s32.totalorder %s55, %s56
      %p68 = scmp.eq.s32.totalorder %s39, 3
      %p69 = por %p67, %p68
      %p71 = scmp.ne.s32.totalorder %s56, %s70
      %p72 = scmp.eq.s32.totalorder %s39, 0
      %p73 = por %p71, %p72
      %s75 = sadd.s32 %s74, 1
      %p78 = scmp.eq.s32.totalorder %s33, 3
      %p79 = scmp.ne.s32.totalorder %s74, %s76
      %p80 = scmp.eq.s32.totalorder %s33, 0
      %p81 = por %p79, %p80
      %p82 = scmp.ne.s32.totalorder %s74, %s76
      %p83 = scmp.eq.s32.totalorder %s38, 3
      %p84 = por %p82, %p83
      %p85 = scmp.ne.s32.totalorder %s76, %s77
      %p86 = scmp.eq.s32.totalorder %s38, 0
      %p87 = por %p85, %p86
      %p88 = scmp.ne.s32.totalorder %s76, %s77
      %p89 = scmp.eq.s32.totalorder %s39, 3
      %p90 = por %p88, %p89
      %p92 = scmp.ne.s32.totalorder %s77, %s91
      %p93 = scmp.eq.s32.totalorder %s39, 0
      %p94 = por %p92, %p93
      %s96 = sadd.s32 %s95, 1
      %p99 = scmp.eq.s32.totalorder %s33, 3
      %p100 = scmp.ne.s32.totalorder %s95, %s97
      %p101 = scmp.eq.s32.totalorder %s33, 0
      %p102 = por %p100, %p101
      %p103 = scmp.ne.s32.totalorder %s95, %s97
      %p104 = scmp.eq.s32.totalorder %s38, 3
      %p105 = por %p103, %p104
      %p106 = scmp.ne.s32.totalorder %s97, %s98
      %p107 = scmp.eq.s32.totalorder %s38, 0
      %p108 = por %p106, %p107
      %p109 = scmp.ne.s32.totalorder %s97, %s98
      %p110 = scmp.eq.s32.totalorder %s39, 3
      %p111 = por %p109, %p110
      %p113 = scmp.ne.s32.totalorder %s98, %s112
      %p114 = scmp.eq.s32.totalorder %s39, 0
      %p115 = por %p113, %p114
      %s117 = sadd.s32 %s116, 1
      %p120 = scmp.eq.s32.totalorder %s33, 3
      %p121 = scmp.ne.s32.totalorder %s116, %s118
      %p122 = scmp.eq.s32.totalorder %s33, 0
      %p123 = por %p121, %p122
      %p124 = scmp.ne.s32.totalorder %s116, %s118
      %p125 = scmp.eq.s32.totalorder %s38, 3
      %p126 = por %p124, %p125
      %p127 = scmp.ne.s32.totalorder %s118, %s119
      %p128 = scmp.eq.s32.totalorder %s38, 0
      %p129 = por %p127, %p128
      %p130 = scmp.ne.s32.totalorder %s118, %s119
      %p131 = scmp.eq.s32.totalorder %s39, 3
      %p132 = por %p130, %p131
      %p134 = scmp.ne.s32.totalorder %s119, %s133
      %p135 = scmp.eq.s32.totalorder %s39, 0
      %p136 = por %p134, %p135
      %s138 = sadd.s32 %s137, 1
      %p141 = scmp.eq.s32.totalorder %s33, 3
      %p142 = scmp.ne.s32.totalorder %s137, %s139
      %p143 = scmp.eq.s32.totalorder %s33, 0
      %p144 = por %p142, %p143
      %p145 = scmp.ne.s32.totalorder %s137, %s139
      %p146 = scmp.eq.s32.totalorder %s38, 3
      %p147 = por %p145, %p146
      %p148 = scmp.ne.s32.totalorder %s139, %s140
      %p149 = scmp.eq.s32.totalorder %s38, 0
      %p150 = por %p148, %p149
      %p151 = scmp.ne.s32.totalorder %s139, %s140
      %p152 = scmp.eq.s32.totalorder %s39, 3
      %p153 = por %p151, %p152
      %p155 = scmp.ne.s32.totalorder %s140, %s154
      %p156 = scmp.eq.s32.totalorder %s39, 0
      %p157 = por %p155, %p156
      %s159 = sadd.s32 %s158, 1
      %p162 = scmp.eq.s32.totalorder %s33, 3
      %p163 = scmp.ne.s32.totalorder %s158, %s160
      %p164 = scmp.eq.s32.totalorder %s33, 0
      %p165 = por %p163, %p164
      %p166 = scmp.ne.s32.totalorder %s158, %s160
      %p167 = scmp.eq.s32.totalorder %s38, 3
      %p168 = por %p166, %p167
      %p169 = scmp.ne.s32.totalorder %s160, %s161
      %p170 = scmp.eq.s32.totalorder %s38, 0
      %p171 = por %p169, %p170
      %p172 = scmp.ne.s32.totalorder %s160, %s161
      %p173 = scmp.eq.s32.totalorder %s39, 3
      %p174 = por %p172, %p173
      %p176 = scmp.ne.s32.totalorder %s161, %s175
      %p177 = scmp.eq.s32.totalorder %s39, 0
      %p178 = por %p176, %p177
      %s180 = sadd.s32 %s179, 1
      %p183 = scmp.eq.s32.totalorder %s33, 3
      %p184 = scmp.ne.s32.totalorder %s179, %s181
      %p185 = scmp.eq.s32.totalorder %s33, 0
      %p186 = por %p184, %p185
      %p187 = scmp.ne.s32.totalorder %s179, %s181
      %p188 = scmp.eq.s32.totalorder %s38, 3
      %p189 = por %p187, %p188
      %p190 = scmp.ne.s32.totalorder %s181, %s182
      %p191 = scmp.eq.s32.totalorder %s38, 0
      %p192 = por %p190, %p191
      %p193 = scmp.ne.s32.totalorder %s181, %s182
      %p194 = scmp.eq.s32.totalorder %s39, 3
      %p195 = por %p193, %p194
      %p197 = scmp.ne.s32.totalorder %s182, %s196
      %p198 = scmp.eq.s32.totalorder %s39, 0
      %p199 = por %p197, %p198
      %s201 = sadd.s32 %s200, 1
      %p204 = scmp.eq.s32.totalorder %s33, 3
      %p205 = scmp.ne.s32.totalorder %s200, %s202
      %p206 = scmp.eq.s32.totalorder %s33, 0
      %p207 = por %p205, %p206
      %p208 = scmp.ne.s32.totalorder %s200, %s202
      %p209 = scmp.eq.s32.totalorder %s38, 3
      %p210 = por %p208, %p209
      %p211 = scmp.ne.s32.totalorder %s202, %s203
      %p212 = scmp.eq.s32.totalorder %s38, 0
      %p213 = por %p211, %p212
      %p214 = scmp.ne.s32.totalorder %s202, %s203
      %p215 = scmp.eq.s32.totalorder %s39, 3
      %p216 = por %p214, %p215
      %p218 = scmp.ne.s32.totalorder %s203, %s217
      %p219 = scmp.eq.s32.totalorder %s39, 0
      %p220 = por %p218, %p219
      %s222 = sadd.s32 %s221, 1
      %p225 = scmp.eq.s32.totalorder %s33, 3
      %p226 = scmp.ne.s32.totalorder %s221, %s223
      %p227 = scmp.eq.s32.totalorder %s33, 0
      %p228 = por %p226, %p227
      %p229 = scmp.ne.s32.totalorder %s221, %s223
      %p230 = scmp.eq.s32.totalorder %s38, 3
      %p231 = por %p229, %p230
      %p232 = scmp.ne.s32.totalorder %s223, %s224
      %p233 = scmp.eq.s32.totalorder %s38, 0
      %p234 = por %p232, %p233
      %p235 = scmp.ne.s32.totalorder %s223, %s224
      %p236 = scmp.eq.s32.totalorder %s39, 3
      %p237 = por %p235, %p236
      %p239 = scmp.ne.s32.totalorder %s224, %s238
      %p240 = scmp.eq.s32.totalorder %s39, 0
      %p241 = por %p239, %p240
      %s243 = sadd.s32 %s242, 1
      %p246 = scmp.eq.s32.totalorder %s33, 3
      %p247 = scmp.ne.s32.totalorder %s242, %s244
      %p248 = scmp.eq.s32.totalorder %s33, 0
      %p249 = por %p247, %p248
      %p250 = scmp.ne.s32.totalorder %s242, %s244
      %p251 = scmp.eq.s32.totalorder %s38, 3
      %p252 = por %p250, %p251
      %p253 = scmp.ne.s32.totalorder %s244, %s245
      %p254 = scmp.eq.s32.totalorder %s38, 0
      %p255 = por %p253, %p254
      %p256 = scmp.ne.s32.totalorder %s244, %s245
      %p257 = scmp.eq.s32.totalorder %s39, 3
      %p258 = por %p256, %p257
      %p260 = scmp.ne.s32.totalorder %s245, %s259
      %p261 = scmp.eq.s32.totalorder %s39, 0
      %p262 = por %p260, %p261
      %s264 = sadd.s32 %s263, 1
      %p267 = scmp.eq.s32.totalorder %s33, 3
      %p268 = scmp.ne.s32.totalorder %s263, %s265
      %p269 = scmp.eq.s32.totalorder %s33, 0
      %p270 = por %p268, %p269
      %p271 = scmp.ne.s32.totalorder %s263, %s265
      %p272 = scmp.eq.s32.totalorder %s38, 3
      %p273 = por %p271, %p272
      %p274 = scmp.ne.s32.totalorder %s265, %s266
      %p275 = scmp.eq.s32.totalorder %s38, 0
      %p276 = por %p274, %p275
      %p277 = scmp.ne.s32.totalorder %s265, %s266
      %p278 = scmp.eq.s32.totalorder %s39, 3
      %p279 = por %p277, %p278
      %p281 = scmp.ne.s32.totalorder %s266, %s280
      %p282 = scmp.eq.s32.totalorder %s39, 0
      %p283 = por %p281, %p282
      %s285 = sadd.s32 %s284, 1
      %p288 = scmp.eq.s32.totalorder %s33, 3
      %p289 = scmp.ne.s32.totalorder %s284, %s286
      %p290 = scmp.eq.s32.totalorder %s33, 0
      %p291 = por %p289, %p290
      %p292 = scmp.ne.s32.totalorder %s284, %s286
      %p293 = scmp.eq.s32.totalorder %s38, 3
      %p294 = por %p292, %p293
      %p295 = scmp.ne.s32.totalorder %s286, %s287
      %p296 = scmp.eq.s32.totalorder %s38, 0
      %p297 = por %p295, %p296
      %p298 = scmp.ne.s32.totalorder %s286, %s287
      %p299 = scmp.eq.s32.totalorder %s39, 3
      %p300 = por %p298, %p299
      %p302 = scmp.ne.s32.totalorder %s287, %s301
      %p303 = scmp.eq.s32.totalorder %s39, 0
      %p304 = por %p302, %p303
      %s306 = sadd.s32 %s305, 1
      %p309 = scmp.eq.s32.totalorder %s33, 3
      %p310 = scmp.ne.s32.totalorder %s305, %s307
      %p311 = scmp.eq.s32.totalorder %s33, 0
      %p312 = por %p310, %p311
      %p313 = scmp.ne.s32.totalorder %s305, %s307
      %p314 = scmp.eq.s32.totalorder %s38, 3
      %p315 = por %p313, %p314
      %p316 = scmp.ne.s32.totalorder %s307, %s308
      %p317 = scmp.eq.s32.totalorder %s38, 0
      %p318 = por %p316, %p317
      %p319 = scmp.ne.s32.totalorder %s307, %s308
      %p320 = scmp.eq.s32.totalorder %s39, 3
      %p321 = por %p319, %p320
      %p323 = scmp.ne.s32.totalorder %s308, %s322
      %p324 = scmp.eq.s32.totalorder %s39, 0
      %p325 = por %p323, %p324
      %s327 = sadd.s32 %s326, 1
      %p330 = scmp.eq.s32.totalorder %s33, 3
      %p331 = scmp.ne.s32.totalorder %s326, %s328
      %p332 = scmp.eq.s32.totalorder %s33, 0
      %p333 = por %p331, %p332
      %p334 = scmp.ne.s32.totalorder %s326, %s328
      %p335 = scmp.eq.s32.totalorder %s38, 3
      %p336 = por %p334, %p335
      %p337 = scmp.ne.s32.totalorder %s328, %s329
      %p338 = scmp.eq.s32.totalorder %s38, 0
      %p339 = por %p337, %p338
      %p340 = scmp.ne.s32.totalorder %s328, %s329
      %p341 = scmp.eq.s32.totalorder %s39, 3
      %p342 = por %p340, %p341
      %p344 = scmp.ne.s32.totalorder %s329, %s343
      %p345 = scmp.eq.s32.totalorder %s39, 0
      %p346 = por %p344, %p345
      %s348 = sadd.s32 %s347, 1
      %p351 = scmp.eq.s32.totalorder %s33, 3
      %p352 = scmp.ne.s32.totalorder %s347, %s349
      %p353 = scmp.eq.s32.totalorder %s33, 0
      %p354 = por %p352, %p353
      %p355 = scmp.ne.s32.totalorder %s347, %s349
      %p356 = scmp.eq.s32.totalorder %s38, 3
      %p357 = por %p355, %p356
      %p358 = scmp.ne.s32.totalorder %s349, %s350
      %p359 = scmp.eq.s32.totalorder %s38, 0
      %p360 = por %p358, %p359
      %p361 = scmp.ne.s32.totalorder %s349, %s350
      %p362 = scmp.eq.s32.totalorder %s39, 3
      %p363 = por %p361, %p362
      %p365 = scmp.ne.s32.totalorder %s350, %s364
      %p366 = scmp.eq.s32.totalorder %s39, 0
      %p367 = por %p365, %p366
      %s369 = sadd.s32 %s368, 1
      %p372 = scmp.eq.s32.totalorder %s33, 3
      %p373 = scmp.ne.s32.totalorder %s368, %s370
      %p374 = scmp.eq.s32.totalorder %s33, 0
      %p375 = por %p373, %p374
      %p376 = scmp.ne.s32.totalorder %s368, %s370
      %p377 = scmp.eq.s32.totalorder %s38, 3
      %p378 = por %p376, %p377
      %p379 = scmp.ne.s32.totalorder %s370, %s371
      %p380 = scmp.eq.s32.totalorder %s38, 0
      %p381 = por %p379, %p380
      %p382 = scmp.ne.s32.totalorder %s370, %s371
      %p383 = scmp.eq.s32.totalorder %s39, 3
      %p384 = por %p382, %p383
      %p386 = scmp.ne.s32.totalorder %s371, %s385
      %p387 = scmp.eq.s32.totalorder %s39, 0
      %p388 = por %p386, %p387
      %s390 = sadd.s32 %s389, 1
      %p393 = scmp.eq.s32.totalorder %s33, 3
      %p394 = scmp.ne.s32.totalorder %s389, %s391
      %p395 = scmp.eq.s32.totalorder %s33, 0
      %p396 = por %p394, %p395
      %p397 = scmp.ne.s32.totalorder %s389, %s391
      %p398 = scmp.eq.s32.totalorder %s38, 3
      %p399 = por %p397, %p398
      %p400 = scmp.ne.s32.totalorder %s391, %s392
      %p401 = scmp.eq.s32.totalorder %s38, 0
      %p402 = por %p400, %p401
      %p403 = scmp.ne.s32.totalorder %s391, %s392
      %p404 = scmp.eq.s32.totalorder %s39, 3
      %p405 = por %p403, %p404
      %p407 = scmp.ne.s32.totalorder %s392, %s406
      %p408 = scmp.eq.s32.totalorder %s39, 0
      %p409 = por %p407, %p408
      %s410 = smul.u32 %s40, 2
      %s411 = sadd.s32 %s410, %s41
      %s412 = smul.u32 %s52, 2
      %s413 = sadd.s32 %s412, %s48
      %s414 = ssub.s32 %s411, %s413
      %p415 = scmp.eq.s32.totalorder %s414, 0
      %s417 = sadd.s32 %s416, 1
      %s418 = scalar_select %p415, %s416, %s417
      %p421 = pneg %p415
      %p422 = scmp.eq.s32.totalorder %s33, 3
      %p423 = por %p421, %p422
      %p424 = scmp.ne.s32.totalorder %s416, %s419
      %p425 = scmp.eq.s32.totalorder %s33, 0
      %p426 = por %p424, %p425
      %p427 = scmp.ne.s32.totalorder %s416, %s419
      %p428 = scmp.eq.s32.totalorder %s38, 3
      %p429 = por %p427, %p428
      %p430 = scmp.ne.s32.totalorder %s419, %s420
      %p431 = scmp.eq.s32.totalorder %s38, 0
      %p432 = por %p430, %p431
      %p433 = scmp.ne.s32.totalorder %s419, %s420
      %p434 = scmp.eq.s32.totalorder %s39, 3
      %p435 = por %p433, %p434
      %p437 = scmp.ne.s32.totalorder %s420, %s436
      %p438 = scmp.eq.s32.totalorder %s39, 0
      %p439 = por %p437, %p438
      %s440 = smul.u32 %s40, 2
      %s441 = sadd.s32 %s440, %s41
      %s442 = smul.u32 %s52, 2
      %s443 = sadd.s32 %s442, %s48
      %s444 = ssub.s32 %s441, %s443
      %p445 = scmp.eq.s32.totalorder %s444, 0
      %s447 = sadd.s32 %s446, 1
      %s448 = scalar_select %p445, %s446, %s447
      %p451 = pneg %p445
      %p452 = scmp.eq.s32.totalorder %s33, 3
      %p453 = por %p451, %p452
      %p454 = scmp.ne.s32.totalorder %s446, %s449
      %p455 = scmp.eq.s32.totalorder %s33, 0
      %p456 = por %p454, %p455
      %p457 = scmp.ne.s32.totalorder %s446, %s449
      %p458 = scmp.eq.s32.totalorder %s38, 3
      %p459 = por %p457, %p458
      %p460 = scmp.ne.s32.totalorder %s449, %s450
      %p461 = scmp.eq.s32.totalorder %s38, 0
      %p462 = por %p460, %p461
      %p463 = scmp.ne.s32.totalorder %s449, %s450
      %p464 = scmp.eq.s32.totalorder %s39, 3
      %p465 = por %p463, %p464
      %p467 = scmp.ne.s32.totalorder %s450, %s466
      %p468 = scmp.eq.s32.totalorder %s39, 0
      %p469 = por %p467, %p468
      %s470 = smul.u32 %s40, 2
      %s471 = sadd.s32 %s470, %s41
      %s472 = smul.u32 %s52, 2
      %s473 = sadd.s32 %s472, %s48
      %s474 = ssub.s32 %s471, %s473
      %p475 = scmp.eq.s32.totalorder %s474, 0
      %s477 = sadd.s32 %s476, 1
      %s478 = scalar_select %p475, %s476, %s477
      %p481 = pneg %p475
      %p482 = scmp.eq.s32.totalorder %s33, 3
      %p483 = por %p481, %p482
      %p484 = scmp.ne.s32.totalorder %s476, %s479
      %p485 = scmp.eq.s32.totalorder %s33, 0
      %p486 = por %p484, %p485
      %p487 = scmp.ne.s32.totalorder %s476, %s479
      %p488 = scmp.eq.s32.totalorder %s38, 3
      %p489 = por %p487, %p488
      %p490 = scmp.ne.s32.totalorder %s479, %s480
      %p491 = scmp.eq.s32.totalorder %s38, 0
      %p492 = por %p490, %p491
      %p493 = scmp.ne.s32.totalorder %s479, %s480
      %p494 = scmp.eq.s32.totalorder %s39, 3
      %p495 = por %p493, %p494
      %p497 = scmp.ne.s32.totalorder %s480, %s496
      %p498 = scmp.eq.s32.totalorder %s39, 0
      %p499 = por %p497, %p498
      %s500 = ssub.s32 %s40, %s52
      %p501 = scmp.eq.s32.totalorder %s500, 0
      %s503 = sadd.s32 %s502, 1
      %s504 = scalar_select %p501, %s502, %s503
      %p507 = pneg %p501
      %p508 = scmp.eq.s32.totalorder %s33, 3
      %p509 = por %p507, %p508
      %p510 = scmp.ne.s32.totalorder %s502, %s505
      %p511 = scmp.eq.s32.totalorder %s33, 0
      %p512 = por %p510, %p511
      %p513 = scmp.ne.s32.totalorder %s502, %s505
      %p514 = scmp.eq.s32.totalorder %s38, 3
      %p515 = por %p513, %p514
      %p516 = scmp.ne.s32.totalorder %s505, %s506
      %p517 = scmp.eq.s32.totalorder %s38, 0
      %p518 = por %p516, %p517
      %p519 = scmp.ne.s32.totalorder %s505, %s506
      %p520 = scmp.eq.s32.totalorder %s39, 3
      %p521 = por %p519, %p520
      %p523 = scmp.ne.s32.totalorder %s506, %s522
      %p524 = scmp.eq.s32.totalorder %s39, 0
      %p525 = por %p523, %p524
      %s526 = ssub.s32 %s40, %s52
      %p527 = scmp.eq.s32.totalorder %s526, 0
      %s529 = sadd.s32 %s528, 1
      %s530 = scalar_select %p527, %s528, %s529
      %p533 = pneg %p527
      %p534 = scmp.eq.s32.totalorder %s33, 3
      %p535 = por %p533, %p534
      %p536 = scmp.ne.s32.totalorder %s528, %s531
      %p537 = scmp.eq.s32.totalorder %s33, 0
      %p538 = por %p536, %p537
      %p539 = scmp.ne.s32.totalorder %s528, %s531
      %p540 = scmp.eq.s32.totalorder %s38, 3
      %p541 = por %p539, %p540
      %p542 = scmp.ne.s32.totalorder %s531, %s532
      %p543 = scmp.eq.s32.totalorder %s38, 0
      %p544 = por %p542, %p543
      %p545 = scmp.ne.s32.totalorder %s531, %s532
      %p546 = scmp.eq.s32.totalorder %s39, 3
      %p547 = por %p545, %p546
      %p549 = scmp.ne.s32.totalorder %s532, %s548
      %p550 = scmp.eq.s32.totalorder %s39, 0
      %p551 = por %p549, %p550
      %s552 = ssub.s32 %s40, %s52
      %p553 = scmp.eq.s32.totalorder %s552, 0
      %s555 = sadd.s32 %s554, 1
      %s556 = scalar_select %p553, %s554, %s555
      %p559 = pneg %p553
      %p560 = scmp.eq.s32.totalorder %s33, 3
      %p561 = por %p559, %p560
      %p562 = scmp.ne.s32.totalorder %s554, %s557
      %p563 = scmp.eq.s32.totalorder %s33, 0
      %p564 = por %p562, %p563
      %p565 = scmp.ne.s32.totalorder %s554, %s557
      %p566 = scmp.eq.s32.totalorder %s38, 3
      %p567 = por %p565, %p566
      %p568 = scmp.ne.s32.totalorder %s557, %s558
      %p569 = scmp.eq.s32.totalorder %s38, 0
      %p570 = por %p568, %p569
      %p571 = scmp.ne.s32.totalorder %s557, %s558
      %p572 = scmp.eq.s32.totalorder %s39, 3
      %p573 = por %p571, %p572
      %p575 = scmp.ne.s32.totalorder %s558, %s574
      %p576 = scmp.eq.s32.totalorder %s39, 0
      %p577 = por %p575, %p576
      %p578 = scmp.le.s32.totalorder 1, %s33
      %p579 = scmp.lt.s32.totalorder %s33, 5
      %p580 = pnand %p578, %p579
      %p581 = pneg %p580
      // Predicated region
      $region9: #{_lambda_.1} parent=5 // pred_check
        _
      $region10: #{_lambda_.1} parent=5 // pred_check_branch
        %583 = sbr.rel (%p580) target = $region12
      $region11: #{_lambda_.1} parent=5 // pred_region
        %s584 = ssub.s32 %s33, 1
        // Predicated region
        $region13: #{_lambda_.1} parent=11 // pred_check
          %p585 = pneg %p66
        $region14: #{_lambda_.1} parent=11 // pred_check_branch
          %587 = sbr.rel (%p585) target = $region16
        $region15: #{_lambda_.1} parent=11 // pred_region
          _
        $region16: #{_lambda_.1} parent=11 // pred_fallthru
          _
        // Predicated region
        $region17: #{_lambda_.1} parent=11 // pred_check
          %p588 = pneg %p87
        $region18: #{_lambda_.1} parent=11 // pred_check_branch
          %590 = sbr.rel (%p588) target = $region20
        $region19: #{_lambda_.1} parent=11 // pred_region
          _
        $region20: #{_lambda_.1} parent=11 // pred_fallthru
          _
        // Predicated region
        $region21: #{_lambda_.1} parent=11 // pred_check
          %p591 = pneg %p108
        $region22: #{_lambda_.1} parent=11 // pred_check_branch
          %593 = sbr.rel (%p591) target = $region24
        $region23: #{_lambda_.1} parent=11 // pred_region
          _
        $region24: #{_lambda_.1} parent=11 // pred_fallthru
          _
        // Predicated region
        $region25: #{_lambda_.1} parent=11 // pred_check
          %p594 = pneg %p129
        $region26: #{_lambda_.1} parent=11 // pred_check_branch
          %596 = sbr.rel (%p594) target = $region28
        $region27: #{_lambda_.1} parent=11 // pred_region
          _
        $region28: #{_lambda_.1} parent=11 // pred_fallthru
          _
        // Predicated region
        $region29: #{_lambda_.1} parent=11 // pred_check
          %p597 = pneg %p150
        $region30: #{_lambda_.1} parent=11 // pred_check_branch
          %599 = sbr.rel (%p597) target = $region32
        $region31: #{_lambda_.1} parent=11 // pred_region
          _
        $region32: #{_lambda_.1} parent=11 // pred_fallthru
          _
        // Predicated region
        $region33: #{_lambda_.1} parent=11 // pred_check
          %p600 = pneg %p171
        $region34: #{_lambda_.1} parent=11 // pred_check_branch
          %602 = sbr.rel (%p600) target = $region36
        $region35: #{_lambda_.1} parent=11 // pred_region
          _
        $region36: #{_lambda_.1} parent=11 // pred_fallthru
          _
        // Predicated region
        $region37: #{_lambda_.1} parent=11 // pred_check
          %p603 = pneg %p192
        $region38: #{_lambda_.1} parent=11 // pred_check_branch
          %605 = sbr.rel (%p603) target = $region40
        $region39: #{_lambda_.1} parent=11 // pred_region
          _
        $region40: #{_lambda_.1} parent=11 // pred_fallthru
          _
        // Predicated region
        $region41: #{_lambda_.1} parent=11 // pred_check
          %p606 = pneg %p213
        $region42: #{_lambda_.1} parent=11 // pred_check_branch
          %608 = sbr.rel (%p606) target = $region44
        $region43: #{_lambda_.1} parent=11 // pred_region
          %s610 = ssub.s32 16, 16
          %611 = vsyncadd [#allocation6], %s610
          %s613 = sshll.u32 [#allocation5], 4
          %s614 = int_to_ptr.vmem [resolvable:$true] %s613
          %616 = dma.hbm_to_vmem [thread:$0]  %s7, 16, %s614, [#allocation6]
        $region44: #{_lambda_.1} parent=11 // pred_fallthru
          _
        // Predicated region
        $region45: #{_lambda_.1} parent=11 // pred_check
          %p617 = pneg %p234
        $region46: #{_lambda_.1} parent=11 // pred_check_branch
          %619 = sbr.rel (%p617) target = $region48
        $region47: #{_lambda_.1} parent=11 // pred_region
          _
        $region48: #{_lambda_.1} parent=11 // pred_fallthru
          _
        // Predicated region
        $region49: #{_lambda_.1} parent=11 // pred_check
          %p620 = pneg %p255
        $region50: #{_lambda_.1} parent=11 // pred_check_branch
          %622 = sbr.rel (%p620) target = $region52
        $region51: #{_lambda_.1} parent=11 // pred_region
          _
        $region52: #{_lambda_.1} parent=11 // pred_fallthru
          _
        // Predicated region
        $region53: #{_lambda_.1} parent=11 // pred_check
          %p623 = pneg %p276
        $region54: #{_lambda_.1} parent=11 // pred_check_branch
          %625 = sbr.rel (%p623) target = $region56
        $region55: #{_lambda_.1} parent=11 // pred_region
          _
        $region56: #{_lambda_.1} parent=11 // pred_fallthru
          _
        // Predicated region
        $region57: #{_lambda_.1} parent=11 // pred_check
          %p626 = pneg %p297
        $region58: #{_lambda_.1} parent=11 // pred_check_branch
          %628 = sbr.rel (%p626) target = $region60
        $region59: #{_lambda_.1} parent=11 // pred_region
          %s630 = ssub.s32 256, 256
          %631 = vsyncadd [#allocation8], %s630
          %s632 = sshll.u32 [#allocation7], 4
          %s633 = int_to_ptr.vmem [resolvable:$true] %s632
          %638 = dma.hbm_to_vmem [thread:$0]  %s11, 256, %s633, [#allocation8], 64, 64, 4
        $region60: #{_lambda_.1} parent=11 // pred_fallthru
          _
        // Predicated region
        $region61: #{_lambda_.1} parent=11 // pred_check
          %p639 = pneg %p318
        $region62: #{_lambda_.1} parent=11 // pred_check_branch
          %641 = sbr.rel (%p639) target = $region64
        $region63: #{_lambda_.1} parent=11 // pred_region
          _
        $region64: #{_lambda_.1} parent=11 // pred_fallthru
          _
        // Predicated region
        $region65: #{_lambda_.1} parent=11 // pred_check
          %p642 = pneg %p339
        $region66: #{_lambda_.1} parent=11 // pred_check_branch
          %644 = sbr.rel (%p642) target = $region68
        $region67: #{_lambda_.1} parent=11 // pred_region
          %s646 = ssub.s32 256, 256
          %647 = vsyncadd [#allocation8], %s646
          %s648 = sshll.u32 [#allocation9], 4
          %s649 = int_to_ptr.vmem [resolvable:$true] %s648
          %654 = dma.hbm_to_vmem [thread:$0]  %s13, 256, %s649, [#allocation8], 64, 64, 4
        $region68: #{_lambda_.1} parent=11 // pred_fallthru
          _
        // Predicated region
        $region69: #{_lambda_.1} parent=11 // pred_check
          %p655 = pneg %p360
        $region70: #{_lambda_.1} parent=11 // pred_check_branch
          %657 = sbr.rel (%p655) target = $region72
        $region71: #{_lambda_.1} parent=11 // pred_region
          %s659 = ssub.s32 32, 32
          %660 = vsyncadd [#allocation11], %s659
          %s661 = sshll.u32 [#allocation10], 4
          %s662 = int_to_ptr.vmem [resolvable:$true] %s661
          %667 = dma.hbm_to_vmem [thread:$0]  %s14, 32, %s662, [#allocation11], 16, 16, 1
        $region72: #{_lambda_.1} parent=11 // pred_fallthru
          _
        // Predicated region
        $region73: #{_lambda_.1} parent=11 // pred_check
          %p668 = pneg %p381
        $region74: #{_lambda_.1} parent=11 // pred_check_branch
          %670 = sbr.rel (%p668) target = $region76
        $region75: #{_lambda_.1} parent=11 // pred_region
          %s672 = ssub.s32 256, 256
          %673 = vsyncadd [#allocation11], %s672
          %s674 = sshll.u32 [#allocation12], 4
          %s675 = int_to_ptr.vmem [resolvable:$true] %s674
          %680 = dma.hbm_to_vmem [thread:$0]  %s15, 256, %s675, [#allocation11], 64, 64, 4
        $region76: #{_lambda_.1} parent=11 // pred_fallthru
          _
        // Predicated region
        $region77: #{_lambda_.1} parent=11 // pred_check
          %p681 = pneg %p402
        $region78: #{_lambda_.1} parent=11 // pred_check_branch
          %683 = sbr.rel (%p681) target = $region80
        $region79: #{_lambda_.1} parent=11 // pred_region
          %s685 = ssub.s32 16, 16
          %686 = vsyncadd [#allocation14], %s685
          %s688 = sshll.u32 [#allocation13], 4
          %s689 = int_to_ptr.vmem [resolvable:$true] %s688
          %691 = dma.hbm_to_vmem [thread:$0]  %s16, 16, %s689, [#allocation14]
        $region80: #{_lambda_.1} parent=11 // pred_fallthru
          _
      $region12: #{_lambda_.1} parent=5 // pred_fallthru
        _
      %p692 = scmp.lt.s32.totalorder %s33, 4
      // Predicated region
      $region81: #{_lambda_.1} parent=5 // pred_check
        %p693 = pneg %p692
      $region82: #{_lambda_.1} parent=5 // pred_check_branch
        %695 = sbr.rel (%p693) target = $region84
      $region83: #{_lambda_.1} parent=5 // pred_region
        // Predicated region
        $region85: #{_lambda_.1} parent=83 // pred_check
          %p696 = pneg %p426
        $region86: #{_lambda_.1} parent=83 // pred_check_branch
          %698 = sbr.rel (%p696) target = $region88
        $region87: #{_lambda_.1} parent=83 // pred_region
          %s699 = sand.u32 %s416, 1
          %s700 = sand.u32 %s416, 1
          %s701 = smul.addr %s700, 16
          %s702 = scalar_lea.vmem [#allocation15], %s701
          %s703 = smul.u32 %s40, 2
          %s704 = sadd.s32 %s703, %s41
          %s705 = smul.addr %s704, 4
          %s706 = scalar_lea.vmem %s17, %s705
          // Predicated region
          $region89: #{_lambda_.1} parent=87 // pred_check
            _
          $region90: #{_lambda_.1} parent=87 // pred_check_branch
            %708 = sbr.rel (0) target = $region92
          $region91: #{_lambda_.1} parent=87 // pred_region
            // Predicated region
            $region93: #{_lambda_.1} parent=91 // pred_check
              _
            $region94: #{_lambda_.1} parent=91 // pred_check_branch
              %710 = sbr.rel target = $region96
            $region95: #{_lambda_.1} parent=91 // pred_region
              // Predicated region
              $region108: #{_lambda_.1} parent=95 // pred_check
                _
              $region109: #{_lambda_.1} parent=95 // pred_check_branch
                %731 = sbr.rel (0) target = $region111
              $region110: #{_lambda_.1} parent=95 // pred_region
                loop: start=0, step=1, limit=1
                $region112: #{_lambda_.1} parent=110 // loop_pre_header
                  _
                $region113: #{_lambda_.1} parent=110 // loop_header
                  %s733 = sphi 0, %s737
                  %p734 = scmp.ge.s32.totalorder %s733, 1
                  %s738 = sphi %s706, %s706
                  %s739 = sphi %s702, %s702
                $region114: #{_lambda_.1} parent=110 // loop_header_branch
                  %736 = sbr.rel (%p734) target = $region118
                $region115: #{_lambda_.1} parent=110 // loop_body
                  _
                $region116: #{_lambda_.1} parent=110 // loop_footer
                  %s737 = sadd.s32 1, %s733
                $region117: #{_lambda_.1} parent=110 // loop_footer_branch
                  %732 = sbr.rel target = $region113
                $region118: #{_lambda_.1} parent=110 // loop_exit
                  _
                loop: start=0, step=1, limit=1
                $region119: #{_lambda_.1} parent=110 // loop_pre_header
                  _
                $region120: #{_lambda_.1} parent=110 // loop_header
                  %s742 = sphi 0, %s746
                  %p743 = scmp.ge.s32.totalorder %s742, 1
                  %s747 = sphi %s706, %s706
                  %s748 = sphi %s702, %s702
                $region121: #{_lambda_.1} parent=110 // loop_header_branch
                  %745 = sbr.rel (%p743) target = $region125
                $region122: #{_lambda_.1} parent=110 // loop_body
                  %v749 = vld [vmem:[%s747] sm:$0xf]
                  %750 = vst [vmem:[%s748] sm:$0xf] %v749
                  %v751 = vld [vmem:[%s747 + $0x10] sm:$0xf]
                  %752 = vst [vmem:[%s748 + $0x4] sm:$0xf] %v751
                  %v753 = vld [vmem:[%s747 + $0x20] sm:$0xf]
                  %754 = vst [vmem:[%s748 + $0x8] sm:$0xf] %v753
                  %v755 = vld [vmem:[%s747 + $0x30] sm:$0xf]
                  %756 = vst [vmem:[%s748 + $0xc] sm:$0xf] %v755
                $region123: #{_lambda_.1} parent=110 // loop_footer
                  %s746 = sadd.s32 1, %s742
                $region124: #{_lambda_.1} parent=110 // loop_footer_branch
                  %741 = sbr.rel target = $region120
                $region125: #{_lambda_.1} parent=110 // loop_exit
                  _
              $region111: #{_lambda_.1} parent=95 // pred_fallthru
                _
            $region96: #{_lambda_.1} parent=91 // pred_fallthru
              _
            // Predicated region
            $region97: #{_lambda_.1} parent=91 // pred_check
              _
            $region98: #{_lambda_.1} parent=91 // pred_check_branch
              %712 = sbr.rel (0) target = $region100
            $region99: #{_lambda_.1} parent=91 // pred_region
              loop: start=0, step=1, limit=1
              $region101: #{_lambda_.1} parent=99 // loop_pre_header
                _
              $region102: #{_lambda_.1} parent=99 // loop_header
                %s715 = sphi 0, %s719
                %p716 = scmp.ge.s32.totalorder %s715, 1
                %s720 = sphi %s706, %s706
                %s721 = sphi %s702, %s702
              $region103: #{_lambda_.1} parent=99 // loop_header_branch
                %718 = sbr.rel (%p716) target = $region107
              $region104: #{_lambda_.1} parent=99 // loop_body
                %v722 = vld [vmem:[%s720] sm:$0xf]
                %723 = vst [vmem:[%s721] sm:$0xf] %v722
                %v724 = vld [vmem:[%s720 + $0x10] sm:$0xf]
                %725 = vst [vmem:[%s721 + $0x4] sm:$0xf] %v724
                %v726 = vld [vmem:[%s720 + $0x20] sm:$0xf]
                %727 = vst [vmem:[%s721 + $0x8] sm:$0xf] %v726
                %v728 = vld [vmem:[%s720 + $0x30] sm:$0xf]
                %729 = vst [vmem:[%s721 + $0xc] sm:$0xf] %v728
              $region105: #{_lambda_.1} parent=99 // loop_footer
                %s719 = sadd.s32 1, %s715
              $region106: #{_lambda_.1} parent=99 // loop_footer_branch
                %714 = sbr.rel target = $region102
              $region107: #{_lambda_.1} parent=99 // loop_exit
                _
            $region100: #{_lambda_.1} parent=91 // pred_fallthru
              _
          $region92: #{_lambda_.1} parent=87 // pred_fallthru
            _
          %757 = vnop
        $region88: #{_lambda_.1} parent=83 // pred_fallthru
          _
        // Predicated region
        $region126: #{_lambda_.1} parent=83 // pred_check
          %p758 = pneg %p456
        $region127: #{_lambda_.1} parent=83 // pred_check_branch
          %760 = sbr.rel (%p758) target = $region129
        $region128: #{_lambda_.1} parent=83 // pred_region
          %s761 = sand.u32 %s33, 1
          %s762 = scalar_lea.sflag [#allocation6], %s761
          %s763 = sand.u32 %s446, 1
          %s764 = scalar_lea.vmem [#allocation16], %s763
          %s765 = smul.u32 %s40, 2
          %s766 = sadd.s32 %s765, %s41
          %s768 = ssub.s32 16, 16
          %769 = vsyncadd %s762, %s768
          %s770 = smul.addr %s766, 16
          %s771 = scalar_lea.hbm %s18, %s770
          %s773 = sshll.u32 %s764, 4
          %s774 = int_to_ptr.vmem [resolvable:$true] %s773
          %776 = dma.hbm_to_vmem [thread:$0]  %s771, 16, %s774, %s762
        $region129: #{_lambda_.1} parent=83 // pred_fallthru
          _
      $region84: #{_lambda_.1} parent=5 // pred_fallthru
        _
      %p777 = scmp.le.s32.totalorder 1, %s33
      %p778 = scmp.lt.s32.totalorder %s33, 5
      %p779 = pnand %p777, %p778
      %p780 = pneg %p779
      // Predicated region
      $region130: #{_lambda_.1} parent=5 // pred_check
        _
      $region131: #{_lambda_.1} parent=5 // pred_check_branch
        %782 = sbr.rel (%p779) target = $region133
      $region132: #{_lambda_.1} parent=5 // pred_region
        %s783 = ssub.s32 %s33, 1
        // Predicated region
        $region134: #{_lambda_.1} parent=132 // pred_check
          %p784 = pneg %p213
        $region135: #{_lambda_.1} parent=132 // pred_check_branch
          %786 = sbr.rel (%p784) target = $region137
        $region136: #{_lambda_.1} parent=132 // pred_region
          %787 = dma.done [#allocation6], 16
        $region137: #{_lambda_.1} parent=132 // pred_fallthru
          _
        // Predicated region
        $region138: #{_lambda_.1} parent=132 // pred_check
          %p788 = pneg %p297
        $region139: #{_lambda_.1} parent=132 // pred_check_branch
          %790 = sbr.rel (%p788) target = $region141
        $region140: #{_lambda_.1} parent=132 // pred_region
          %791 = dma.done [#allocation8], 256
        $region141: #{_lambda_.1} parent=132 // pred_fallthru
          _
        // Predicated region
        $region142: #{_lambda_.1} parent=132 // pred_check
          %p792 = pneg %p339
        $region143: #{_lambda_.1} parent=132 // pred_check_branch
          %794 = sbr.rel (%p792) target = $region145
        $region144: #{_lambda_.1} parent=132 // pred_region
          %795 = dma.done [#allocation8], 256
        $region145: #{_lambda_.1} parent=132 // pred_fallthru
          _
        // Predicated region
        $region146: #{_lambda_.1} parent=132 // pred_check
          %p796 = pneg %p360
        $region147: #{_lambda_.1} parent=132 // pred_check_branch
          %798 = sbr.rel (%p796) target = $region149
        $region148: #{_lambda_.1} parent=132 // pred_region
          %799 = dma.done [#allocation11], 32
        $region149: #{_lambda_.1} parent=132 // pred_fallthru
          _
        // Predicated region
        $region150: #{_lambda_.1} parent=132 // pred_check
          %p800 = pneg %p381
        $region151: #{_lambda_.1} parent=132 // pred_check_branch
          %802 = sbr.rel (%p800) target = $region153
        $region152: #{_lambda_.1} parent=132 // pred_region
          %803 = dma.done [#allocation11], 256
        $region153: #{_lambda_.1} parent=132 // pred_fallthru
          _
        // Predicated region
        $region154: #{_lambda_.1} parent=132 // pred_check
          %p804 = pneg %p402
        $region155: #{_lambda_.1} parent=132 // pred_check_branch
          %806 = sbr.rel (%p804) target = $region157
        $region156: #{_lambda_.1} parent=132 // pred_region
          %807 = dma.done [#allocation14], 16
        $region157: #{_lambda_.1} parent=132 // pred_fallthru
          _
        %s808 = sand.u32 %s419, 1
        %s809 = sand.u32 %s419, 1
        %s810 = smul.addr %s809, 16
        %s811 = scalar_lea.vmem [#allocation15], %s810
        // Predicated region
        $region158: #{_lambda_.1} parent=132 // pred_check
          %p812 = pneg %p432
        $region159: #{_lambda_.1} parent=132 // pred_check_branch
          %814 = sbr.rel (%p812) target = $region161
        $region160: #{_lambda_.1} parent=132 // pred_region
          _
        $region161: #{_lambda_.1} parent=132 // pred_fallthru
          _
        %s815 = sand.u32 %s38, 1
        %s816 = scalar_lea.sflag [#allocation6], %s815
        %s817 = sand.u32 %s449, 1
        %s818 = scalar_lea.vmem [#allocation16], %s817
        // Predicated region
        $region162: #{_lambda_.1} parent=132 // pred_check
          %p819 = pneg %p462
        $region163: #{_lambda_.1} parent=132 // pred_check_branch
          %821 = sbr.rel (%p819) target = $region165
        $region164: #{_lambda_.1} parent=132 // pred_region
          %822 = dma.done %s816, 16
        $region165: #{_lambda_.1} parent=132 // pred_fallthru
          _
        %p823 = pneg %p66
        %p824 = pneg %p63
        %p825 = pneg %p87
        %p826 = pneg %p84
        %p827 = pneg %p108
        %p828 = pneg %p105
        %p829 = pneg %p129
        %p830 = pneg %p126
        %p831 = pneg %p150
        %p832 = pneg %p147
        %p833 = pneg %p171
        %p834 = pneg %p168
        %p835 = pneg %p192
        %p836 = pneg %p189
        %p837 = pneg %p213
        %p838 = pneg %p210
        %p839 = pneg %p234
        %p840 = pneg %p231
        %p841 = pneg %p255
        %p842 = pneg %p252
        %p843 = pneg %p276
        %p844 = pneg %p273
        %p845 = pneg %p297
        %p846 = pneg %p294
        %p847 = pneg %p318
        %p848 = pneg %p315
        %p849 = pneg %p339
        %p850 = pneg %p336
        %p851 = pneg %p360
        %p852 = pneg %p357
        %p853 = pneg %p381
        %p854 = pneg %p378
        %p855 = pneg %p402
        %p856 = pneg %p399
        %s857 = sand.u32 %s419, 1
        %s858 = sand.u32 %s419, 1
        %s859 = smul.addr %s858, 16
        %s860 = scalar_lea.vmem [#allocation15], %s859
        %p861 = pneg %p432
        %p862 = pneg %p429
        %s863 = sand.u32 %s38, 1
        %s864 = scalar_lea.sflag [#allocation6], %s863
        %s865 = sand.u32 %s449, 1
        %s866 = scalar_lea.vmem [#allocation16], %s865
        %p867 = pneg %p462
        %p868 = pneg %p459
        %p869 = pneg %p492
        %p870 = pneg %p489
        %s871 = smul.u32 %s42, 2
        %s872 = sadd.s32 %s871, %s43
        %p873 = scmp.lt.s32.totalorder %s872, 3
        %s874 = scalar_select %p873, %s872, 3
        %s875 = smul.addr %s874, 8
        %s876 = scalar_lea.vmem %s19, %s875
        %p877 = pneg %p518
        %p878 = pneg %p515
        %p879 = scmp.lt.s32.totalorder %s42, 1
        %s880 = scalar_select %p879, %s42, 1
        %s881 = smul.addr %s880, 8
        %s882 = scalar_lea.vmem %s20, %s881
        %p883 = pneg %p544
        %p884 = pneg %p541
        %p885 = scmp.lt.s32.totalorder %s42, 1
        %s886 = scalar_select %p885, %s42, 1
        %s887 = smul.addr %s886, 2
        %s888 = smul.addr %s887, 8
        %s889 = scalar_lea.vmem %s21, %s888
        %p890 = pneg %p570
        %p891 = pneg %p567
        %p892 = scmp.lt.s32.totalorder %s42, 1
        %s893 = scalar_select %p892, %s42, 1
        %s894 = smul.addr %s893, 2
        %s895 = smul.addr %s894, 8
        %s896 = scalar_lea.vmem %s22, %s895
        %s897 = smul.u32 %s42, 2
        %s898 = sadd.s32 %s897, %s43
        %s899 = smul.u32 %s42, 2
        %s900 = sadd.s32 %s899, %s43
        %s901 = smul.u32 %s42, 2
        %s902 = sadd.s32 %s901, %s43
        %p903 = scmp.lt.s32.totalorder %s902, 3
        %s904 = scalar_select %p903, %s902, 3
        %s905 = smul.addr %s904, 8
        %s906 = scalar_lea.vmem %s19, %s905
        %s907 = smul.u32 %s42, 2
        %s908 = sadd.s32 %s907, %s43
        %p909 = scmp.lt.s32.totalorder %s42, 1
        %s910 = scalar_select %p909, %s42, 1
        %s911 = smul.addr %s910, 8
        %s912 = scalar_lea.vmem %s20, %s911
        %p913 = scmp.lt.s32.totalorder %s42, 1
        %s914 = scalar_select %p913, %s42, 1
        %s915 = smul.addr %s914, 2
        %s916 = smul.addr %s915, 8
        %s917 = scalar_lea.vmem %s21, %s916
        %p918 = scmp.lt.s32.totalorder %s42, 1
        %s919 = scalar_select %p918, %s42, 1
        %s920 = smul.addr %s919, 2
        %s921 = smul.addr %s920, 8
        %s922 = scalar_lea.vmem %s22, %s921
        %p924 = scmp.eq.s32.totalorder %s43, 0
        // Predicated region
        $region166: #{_lambda_.1} parent=132 // pred_check
          %p925 = pneg %p924
        $region167: #{_lambda_.1} parent=132 // pred_check_branch
          %927 = sbr.rel (%p925) target = $region169
        $region168: #{_lambda_.1} parent=132 // pred_region
          %v928 = vld [vmem:[%s0] sm:$0xff]
          %v929 = vld [vmem:[%s0 + $0x8] sm:$0xff]
          %v930 = vld [vmem:[%s0 + $0x10] sm:$0xff]
          %v931 = vld [vmem:[%s0 + $0x18] sm:$0xff]
          %v932 = vld [vmem:[%s0 + $0x20] sm:$0xff]
          %v933 = vld [vmem:[%s0 + $0x28] sm:$0xff]
          %v934 = vld [vmem:[%s0 + $0x30] sm:$0xff]
          %v935 = vld [vmem:[%s0 + $0x38] sm:$0xff]
          %v936 = vld [vmem:[%s1] sm:$0xff]
          %v937 = vld [vmem:[%s2] sm:$0xff]
          %v938 = vld [vmem:[%s3] sm:$0xff]
          %v939 = vld [vmem:[%s4] sm:$0xff]
          %v940 = vld [vmem:[%s5] sm:$0xf]
          %v941 = vld [vmem:[%s5 + $0x4] sm:$0xf]
          %v942 = vld [vmem:[%s5 + $0x8] sm:$0xf]
          %v943 = vld [vmem:[%s5 + $0xc] sm:$0xf]
          %v944 = vunpack.c.l.bf16 %v940
          %v945 = vunpack.c.l.bf16 %v941
          %v946 = vunpack.c.l.bf16 %v942
          %v947 = vunpack.c.l.bf16 %v943
          %vm948 = vcmask 261120
          %v950 = vsel %vm948, %v938, 0
          %952 = vmatprep.subr.mxu0 0.0
          %953 = vmatpush1.msra.mxu0 %v944
          %954 = vmatprep.subr.mxu0 0.0
          %955 = vmatpush1.msra.mxu0 %v945
          %956 = vmatprep.subr.mxu0 0.0
          %957 = vmatpush1.msra.mxu0 %v946
          %958 = vmatprep.subr.mxu0 0.0
          %959 = vmatpush1.msra.mxu0 %v947
          %960 = vmatprep.subr.mxu0 0.0
          %961 = vmatpush1.msra.mxu0 0.0
          %962 = vmatprep.subr.mxu0 0.0
          %963 = vmatpush1.msra.mxu0 0.0
          %964 = vmatprep.subr.mxu0 0.0
          %965 = vmatpush1.msra.mxu0 0.0
          %966 = vmatprep.subr.mxu0 0.0
          %967 = vmatpush1.msra.mxu0 0.0
          %968 = vmatprep.subr.mxu0 0.0
          %969 = vmatpush1.msra.mxu0 0.0
          %970 = vmatprep.subr.mxu0 0.0
          %971 = vmatpush1.msra.mxu0 0.0
          %972 = vmatprep.subr.mxu0 0.0
          %973 = vmatpush1.msra.mxu0 0.0
          %974 = vmatprep.subr.mxu0 0.0
          %975 = vmatpush1.msra.mxu0 0.0
          %976 = vmatprep.subr.mxu0 0.0
          %977 = vmatpush1.msra.mxu0 0.0
          %978 = vmatprep.subr.mxu0 0.0
          %979 = vmatpush1.msra.mxu0 0.0
          %980 = vmatprep.subr.mxu0 0.0
          %981 = vmatpush1.msra.mxu0 0.0
          %982 = vmatprep.subr.mxu0 0.0
          %983 = vmatpush1.msra.mxu0 0.0
          %984 = vmatprep.subr.mxu0 0.0
          %985 = vmatpush1.msra.mxu0 0.0
          %986 = vmatprep.subr.mxu0 0.0
          %987 = vmatpush1.msra.mxu0 0.0
          %988 = vmatprep.subr.mxu0 0.0
          %989 = vmatpush1.msra.mxu0 0.0
          %990 = vmatprep.subr.mxu0 0.0
          %991 = vmatpush1.msra.mxu0 0.0
          %992 = vmatprep.subr.mxu0 0.0
          %993 = vmatpush1.msra.mxu0 0.0
          %994 = vmatprep.subr.mxu0 0.0
          %995 = vmatpush1.msra.mxu0 0.0
          %996 = vmatprep.subr.mxu0 0.0
          %997 = vmatpush1.msra.mxu0 0.0
          %998 = vmatprep.subr.mxu0 0.0
          %999 = vmatpush1.msra.mxu0 0.0
          %1000 = vmatprep.subr.mxu0 0.0
          %1001 = vmatpush1.msra.mxu0 0.0
          %1002 = vmatprep.subr.mxu0 0.0
          %1003 = vmatpush1.msra.mxu0 0.0
          %1004 = vmatprep.subr.mxu0 0.0
          %1005 = vmatpush1.msra.mxu0 0.0
          %1006 = vmatprep.subr.mxu0 0.0
          %1007 = vmatpush1.msra.mxu0 0.0
          %1008 = vmatprep.subr.mxu0 0.0
          %1009 = vmatpush1.msra.mxu0 0.0
          %1010 = vmatprep.subr.mxu0 0.0
          %1011 = vmatpush1.msra.mxu0 0.0
          %1012 = vmatprep.subr.mxu0 0.0
          %1013 = vmatpush1.msra.mxu0 0.0
          %1014 = vmatprep.subr.mxu0 0.0
          %1015 = vmatpush1.msra.mxu0 0.0
          %1016 = vmatprep.mubr.f32.mxu0 0.0
          %1017 = vmatmul.mubr.f32.gmra.mrb[0].mxu0 %v950
          %v1018 = vpop.f32.mrb[0].mxu0
          %v1019 = vadd.f32 0.0, %v1018
          %v1020 = vpop.f32.mrb[0].mxu0
          %1021 = vdwg.mxu0
          %v1022 = vld [vmem:[%s6] sm:$0xf]
          %v1023 = vld [vmem:[%s6 + $0x4] sm:$0xf]
          %v1024 = vld [vmem:[%s6 + $0x8] sm:$0xf]
          %v1025 = vld [vmem:[%s6 + $0xc] sm:$0xf]
          %v1026 = vunpack.c.l.bf16 %v1022
          %v1027 = vunpack.c.l.bf16 %v1023
          %v1028 = vunpack.c.l.bf16 %v1024
          %v1029 = vunpack.c.l.bf16 %v1025
          %v1031 = vsel %vm948, %v928, 0
          %v1034 = vsel %vm948, %v929, 0
          %v1037 = vsel %vm948, %v930, 0
          %v1040 = vsel %vm948, %v931, 0
          %v1043 = vsel %vm948, %v932, 0
          %v1046 = vsel %vm948, %v933, 0
          %v1049 = vsel %vm948, %v934, 0
          %v1052 = vsel %vm948, %v935, 0
          %1054 = vmatprep.subr.mxu0 0.0
          %1055 = vmatpush1.msra.mxu0 %v1026
          %1056 = vmatprep.subr.mxu0 0.0
          %1057 = vmatpush1.msra.mxu0 %v1027
          %1058 = vmatprep.subr.mxu0 0.0
          %1059 = vmatpush1.msra.mxu0 %v1028
          %1060 = vmatprep.subr.mxu0 0.0
          %1061 = vmatpush1.msra.mxu0 %v1029
          %1062 = vmatprep.subr.mxu0 0.0
          %1063 = vmatpush1.msra.mxu0 0.0
          %1064 = vmatprep.subr.mxu0 0.0
          %1065 = vmatpush1.msra.mxu0 0.0
          %1066 = vmatprep.subr.mxu0 0.0
          %1067 = vmatpush1.msra.mxu0 0.0
          %1068 = vmatprep.subr.mxu0 0.0
          %1069 = vmatpush1.msra.mxu0 0.0
          %1070 = vmatprep.subr.mxu0 0.0
          %1071 = vmatpush1.msra.mxu0 0.0
          %1072 = vmatprep.subr.mxu0 0.0
          %1073 = vmatpush1.msra.mxu0 0.0
          %1074 = vmatprep.subr.mxu0 0.0
          %1075 = vmatpush1.msra.mxu0 0.0
          %1076 = vmatprep.subr.mxu0 0.0
          %1077 = vmatpush1.msra.mxu0 0.0
          %1078 = vmatprep.subr.mxu0 0.0
          %1079 = vmatpush1.msra.mxu0 0.0
          %1080 = vmatprep.subr.mxu0 0.0
          %1081 = vmatpush1.msra.mxu0 0.0
          %1082 = vmatprep.subr.mxu0 0.0
          %1083 = vmatpush1.msra.mxu0 0.0
          %1084 = vmatprep.subr.mxu0 0.0
          %1085 = vmatpush1.msra.mxu0 0.0
          %1086 = vmatprep.subr.mxu0 0.0
          %1087 = vmatpush1.msra.mxu0 0.0
          %1088 = vmatprep.subr.mxu0 0.0
          %1089 = vmatpush1.msra.mxu0 0.0
          %1090 = vmatprep.subr.mxu0 0.0
          %1091 = vmatpush1.msra.mxu0 0.0
          %1092 = vmatprep.subr.mxu0 0.0
          %1093 = vmatpush1.msra.mxu0 0.0
          %1094 = vmatprep.subr.mxu0 0.0
          %1095 = vmatpush1.msra.mxu0 0.0
          %1096 = vmatprep.subr.mxu0 0.0
          %1097 = vmatpush1.msra.mxu0 0.0
          %1098 = vmatprep.subr.mxu0 0.0
          %1099 = vmatpush1.msra.mxu0 0.0
          %1100 = vmatprep.subr.mxu0 0.0
          %1101 = vmatpush1.msra.mxu0 0.0
          %1102 = vmatprep.subr.mxu0 0.0
          %1103 = vmatpush1.msra.mxu0 0.0
          %1104 = vmatprep.subr.mxu0 0.0
          %1105 = vmatpush1.msra.mxu0 0.0
          %1106 = vmatprep.subr.mxu0 0.0
          %1107 = vmatpush1.msra.mxu0 0.0
          %1108 = vmatprep.subr.mxu0 0.0
          %1109 = vmatpush1.msra.mxu0 0.0
          %1110 = vmatprep.subr.mxu0 0.0
          %1111 = vmatpush1.msra.mxu0 0.0
          %1112 = vmatprep.subr.mxu0 0.0
          %1113 = vmatpush1.msra.mxu0 0.0
          %1114 = vmatprep.subr.mxu0 0.0
          %1115 = vmatpush1.msra.mxu0 0.0
          %1116 = vmatprep.subr.mxu0 0.0
          %1117 = vmatpush1.msra.mxu0 0.0
          %1118 = vmatprep.mubr.f32.mxu0 0.0
          %1119 = vmatmul.mubr.f32.gmra.mrb[0].mxu0 %v1031
          %v1120 = vpop.f32.mrb[0].mxu0
          %v1121 = vadd.f32 0.0, %v1120
          %v1122 = vpop.f32.mrb[0].mxu0
          %1123 = vmatprep.mubr.f32.mxu0 0.0
          %1124 = vmatmul.mubr.f32.gmra.mrb[0].mxu0 %v1034
          %v1125 = vpop.f32.mrb[0].mxu0
          %v1126 = vadd.f32 0.0, %v1125
          %v1127 = vpop.f32.mrb[0].mxu0
          %1128 = vmatprep.mubr.f32.mxu0 0.0
          %1129 = vmatmul.mubr.f32.gmra.mrb[0].mxu0 %v1037
          %v1130 = vpop.f32.mrb[0].mxu0
          %v1131 = vadd.f32 0.0, %v1130
          %v1132 = vpop.f32.mrb[0].mxu0
          %1133 = vmatprep.mubr.f32.mxu0 0.0
          %1134 = vmatmul.mubr.f32.gmra.mrb[0].mxu0 %v1040
          %v1135 = vpop.f32.mrb[0].mxu0
          %v1136 = vadd.f32 0.0, %v1135
          %v1137 = vpop.f32.mrb[0].mxu0
          %1138 = vmatprep.mubr.f32.mxu0 0.0
          %1139 = vmatmul.mubr.f32.gmra.mrb[0].mxu0 %v1043
          %v1140 = vpop.f32.mrb[0].mxu0
          %v1141 = vadd.f32 0.0, %v1140
          %v1142 = vpop.f32.mrb[0].mxu0
          %1143 = vmatprep.mubr.f32.mxu0 0.0
          %1144 = vmatmul.mubr.f32.gmra.mrb[0].mxu0 %v1046
          %v1145 = vpop.f32.mrb[0].mxu0
          %v1146 = vadd.f32 0.0, %v1145
          %v1147 = vpop.f32.mrb[0].mxu0
          %1148 = vmatprep.mubr.f32.mxu0 0.0
          %1149 = vmatmul.mubr.f32.gmra.mrb[0].mxu0 %v1049
          %v1150 = vpop.f32.mrb[0].mxu0
          %v1151 = vadd.f32 0.0, %v1150
          %v1152 = vpop.f32.mrb[0].mxu0
          %1153 = vmatprep.mubr.f32.mxu0 0.0
          %1154 = vmatmul.mubr.f32.gmra.mrb[0].mxu0 %v1052
          %v1155 = vpop.f32.mrb[0].mxu0
          %v1156 = vadd.f32 0.0, %v1155
          %v1157 = vpop.f32.mrb[0].mxu0
          %1158 = vdwg.mxu0
          %v1160 = vcombine.high %v1019, %v1019
          %v1162 = vunpack.c.l.s4 1966171168
          %v1163 = vunpack.c.0.s8 %v1162
          %v1164 = vlaneseq
          %v1165 = vshrl.u32 %v1164, 7
          %v1166 = vsub.s32 %v1163, %v1165
          %v1167 = vrot.slane %v1019, %v1166
          %v1169 = vunpack.c.l.s4 1966171168
          %v1170 = vunpack.c.0.s8 %v1169
          %v1171 = vlaneseq
          %v1172 = vshrl.u32 %v1171, 7
          %v1173 = vsub.s32 %v1170, %v1172
          %v1174 = vrot.slane %v1160, %v1173
          %v1175 = vcombine.high %v1167, %v1167
          %v1176 = vcombine.high %v1174, %v1174
          %v1178 = vunpack.c.l.s4 1966171168
          %v1179 = vunpack.c.0.s8 %v1178
          %v1180 = vlaneseq
          %v1181 = vshrl.u32 %v1180, 7
          %v1182 = vsub.s32 %v1179, %v1181
          %v1183 = vrot.slane %v1167, %v1182
          %v1185 = vunpack.c.l.s4 1966171168
          %v1186 = vunpack.c.0.s8 %v1185
          %v1187 = vlaneseq
          %v1188 = vshrl.u32 %v1187, 7
          %v1189 = vsub.s32 %v1186, %v1188
          %v1190 = vrot.slane %v1174, %v1189
          %v1192 = vunpack.c.l.s4 1966171168
          %v1193 = vunpack.c.0.s8 %v1192
          %v1194 = vlaneseq
          %v1195 = vshrl.u32 %v1194, 7
          %v1196 = vsub.s32 %v1193, %v1195
          %v1197 = vrot.slane %v1175, %v1196
          %v1199 = vunpack.c.l.s4 1966171168
          %v1200 = vunpack.c.0.s8 %v1199
          %v1201 = vlaneseq
          %v1202 = vshrl.u32 %v1201, 7
          %v1203 = vsub.s32 %v1200, %v1202
          %v1204 = vrot.slane %v1176, %v1203
          %v1205 = vcombine.high %v1183, %v1183
          %v1206 = vcombine.high %v1190, %v1190
          %v1207 = vcombine.high %v1197, %v1197
          %v1208 = vcombine.high %v1204, %v1204
          %v1209 = vlaneseq
          %v1210 = vshrl.u32 %v1209, 7
          %v1211 = vsub.s32 0, %v1210
          %v1212 = vrot.slane %v1183, %v1211
          %v1213 = vlaneseq
          %v1214 = vshrl.u32 %v1213, 7
          %v1215 = vsub.s32 0, %v1214
          %v1216 = vrot.slane %v1197, %v1215
          %v1217 = vlaneseq
          %v1218 = vshrl.u32 %v1217, 7
          %v1219 = vsub.s32 0, %v1218
          %v1220 = vrot.slane %v1205, %v1219
          %v1221 = vlaneseq
          %v1222 = vshrl.u32 %v1221, 7
          %v1223 = vsub.s32 0, %v1222
          %v1224 = vrot.slane %v1207, %v1223
          %v1225 = vlaneseq
          %v1226 = vshrl.u32 %v1225, 7
          %v1227 = vsub.s32 0, %v1226
          %v1228 = vrot.slane %v1190, %v1227
          %v1229 = vlaneseq
          %v1230 = vshrl.u32 %v1229, 7
          %v1231 = vsub.s32 0, %v1230
          %v1232 = vrot.slane %v1204, %v1231
          %v1233 = vlaneseq
          %v1234 = vshrl.u32 %v1233, 7
          %v1235 = vsub.s32 0, %v1234
          %v1236 = vrot.slane %v1206, %v1235
          %v1237 = vlaneseq
          %v1238 = vshrl.u32 %v1237, 7
          %v1239 = vsub.s32 0, %v1238
          %v1240 = vrot.slane %v1208, %v1239
          %v1249 = vadd.f32 %v1212, %v1121
          %v1250 = vadd.f32 %v1216, %v1126
          %v1251 = vadd.f32 %v1220, %v1131
          %v1252 = vadd.f32 %v1224, %v1136
          %v1253 = vadd.f32 %v1228, %v1141
          %v1254 = vadd.f32 %v1232, %v1146
          %v1255 = vadd.f32 %v1236, %v1151
          %v1256 = vadd.f32 %v1240, %v1156
          %v1257 = vld [vmem:[#allocation5] sm:$0x1]
          %v1259 = vlaneseq
          %v1260 = vshrl.u32 %v1259, 7
          %v1261 = vsub.s32 0, %v1260
          %v1262 = vrot.slane %v1257, %v1261
          %v1264 = vadd.f32 %v1249, %v1262
          %v1265 = vadd.f32 %v1250, %v1262
          %v1266 = vadd.f32 %v1251, %v1262
          %v1267 = vadd.f32 %v1252, %v1262
          %v1268 = vadd.f32 %v1253, %v1262
          %v1269 = vadd.f32 %v1254, %v1262
          %v1270 = vadd.f32 %v1255, %v1262
          %v1271 = vadd.f32 %v1256, %v1262
          %v1272 = vtanh.pop %v1264
          %v1273 = vtanh.pop %v1265
          %v1274 = vtanh.pop %v1266
          %v1275 = vtanh.pop %v1267
          %v1276 = vtanh.pop %v1268
          %v1277 = vtanh.pop %v1269
          %v1278 = vtanh.pop %v1270
          %v1279 = vtanh.pop %v1271
          %v1280 = vld [vmem:[%s8] sm:$0x1]
          %v1281 = vunpack.c.l.bf16 %v1280
          %v1282 = vlaneseq
          %v1283 = vshrl.u32 %v1282, 7
          %v1284 = vsub.s32 0, %v1283
          %v1285 = vrot.slane %v1281, %v1284
          %v1286 = vmul.f32 %v1272, %v1285
          %v1287 = vmul.f32 %v1273, %v1285
          %v1288 = vmul.f32 %v1274, %v1285
          %v1289 = vmul.f32 %v1275, %v1285
          %v1290 = vmul.f32 %v1276, %v1285
          %v1291 = vmul.f32 %v1277, %v1285
          %v1292 = vmul.f32 %v1278, %v1285
          %v1293 = vmul.f32 %v1279, %v1285
          %v1294 = vsel %vm948, %v1286, 0.0
          %1295 = vadd.xlane.f32.xlu0 %v1294
          %v1296 = vpop.xlane.xlu0 %1295
          %v1297 = vsel %vm948, %v1287, 0.0
          %1298 = vadd.xlane.f32.xlu0 %v1297
          %v1299 = vpop.xlane.xlu0 %1298
          %v1300 = vsel %vm948, %v1288, 0.0
          %1301 = vadd.xlane.f32.xlu0 %v1300
          %v1302 = vpop.xlane.xlu0 %1301
          %v1303 = vsel %vm948, %v1289, 0.0
          %1304 = vadd.xlane.f32.xlu0 %v1303
          %v1305 = vpop.xlane.xlu0 %1304
          %v1306 = vsel %vm948, %v1290, 0.0
          %1307 = vadd.xlane.f32.xlu0 %v1306
          %v1308 = vpop.xlane.xlu0 %1307
          %v1309 = vsel %vm948, %v1291, 0.0
          %1310 = vadd.xlane.f32.xlu0 %v1309
          %v1311 = vpop.xlane.xlu0 %1310
          %v1312 = vsel %vm948, %v1292, 0.0
          %1313 = vadd.xlane.f32.xlu0 %v1312
          %v1314 = vpop.xlane.xlu0 %1313
          %v1315 = vsel %vm948, %v1293, 0.0
          %1316 = vadd.xlane.f32.xlu0 %v1315
          %v1317 = vpop.xlane.xlu0 %1316
          %v1318 = vrot.slane %v1296, 4
          %v1319 = vmax.f32 %v1296, %v1318
          %v1320 = vrot.slane %v1319, 2
          %v1321 = vmax.f32 %v1319, %v1320
          %v1322 = vrot.slane %v1321, 1
          %v1323 = vmax.f32 %v1321, %v1322
          %v1324 = vrot.slane %v1299, 4
          %v1325 = vmax.f32 %v1299, %v1324
          %v1326 = vrot.slane %v1325, 2
          %v1327 = vmax.f32 %v1325, %v1326
          %v1328 = vrot.slane %v1327, 1
          %v1329 = vmax.f32 %v1327, %v1328
          %v1330 = vrot.slane %v1302, 4
          %v1331 = vmax.f32 %v1302, %v1330
          %v1332 = vrot.slane %v1331, 2
          %v1333 = vmax.f32 %v1331, %v1332
          %v1334 = vrot.slane %v1333, 1
          %v1335 = vmax.f32 %v1333, %v1334
          %v1336 = vrot.slane %v1305, 4
          %v1337 = vmax.f32 %v1305, %v1336
          %v1338 = vrot.slane %v1337, 2
          %v1339 = vmax.f32 %v1337, %v1338
          %v1340 = vrot.slane %v1339, 1
          %v1341 = vmax.f32 %v1339, %v1340
          %v1342 = vrot.slane %v1308, 4
          %v1343 = vmax.f32 %v1308, %v1342
          %v1344 = vrot.slane %v1343, 2
          %v1345 = vmax.f32 %v1343, %v1344
          %v1346 = vrot.slane %v1345, 1
          %v1347 = vmax.f32 %v1345, %v1346
          %v1348 = vrot.slane %v1311, 4
          %v1349 = vmax.f32 %v1311, %v1348
          %v1350 = vrot.slane %v1349, 2
          %v1351 = vmax.f32 %v1349, %v1350
          %v1352 = vrot.slane %v1351, 1
          %v1353 = vmax.f32 %v1351, %v1352
          %v1354 = vrot.slane %v1314, 4
          %v1355 = vmax.f32 %v1314, %v1354
          %v1356 = vrot.slane %v1355, 2
          %v1357 = vmax.f32 %v1355, %v1356
          %v1358 = vrot.slane %v1357, 1
          %v1359 = vmax.f32 %v1357, %v1358
          %v1360 = vrot.slane %v1317, 4
          %v1361 = vmax.f32 %v1317, %v1360
          %v1362 = vrot.slane %v1361, 2
          %v1363 = vmax.f32 %v1361, %v1362
          %v1364 = vrot.slane %v1363, 1
          %v1365 = vmax.f32 %v1363, %v1364
          %v1366 = vsub.f32 %v1296, %v1323
          %v1367 = vsub.f32 %v1299, %v1329
          %v1368 = vsub.f32 %v1302, %v1335
          %v1369 = vsub.f32 %v1305, %v1341
          %v1370 = vsub.f32 %v1308, %v1347
          %v1371 = vsub.f32 %v1311, %v1353
          %v1372 = vsub.f32 %v1314, %v1359
          %v1373 = vsub.f32 %v1317, %v1365
          %v1374 = vmul.f32 %v1366, 1.442695
          %v1375 = vpow.pop %v1374
          %v1376 = vmul.f32 %v1367, 1.442695
          %v1377 = vpow.pop %v1376
          %v1378 = vmul.f32 %v1368, 1.442695
          %v1379 = vpow.pop %v1378
          %v1380 = vmul.f32 %v1369, 1.442695
          %v1381 = vpow.pop %v1380
          %v1382 = vmul.f32 %v1370, 1.442695
          %v1383 = vpow.pop %v1382
          %v1384 = vmul.f32 %v1371, 1.442695
          %v1385 = vpow.pop %v1384
          %v1386 = vmul.f32 %v1372, 1.442695
          %v1387 = vpow.pop %v1386
          %v1388 = vmul.f32 %v1373, 1.442695
          %v1389 = vpow.pop %v1388
          %v1390 = vrot.slane %v1375, 4
          %v1391 = vadd.f32 %v1375, %v1390
          %v1392 = vrot.slane %v1391, 2
          %v1393 = vadd.f32 %v1391, %v1392
          %v1394 = vrot.slane %v1393, 1
          %v1395 = vadd.f32 %v1393, %v1394
          %v1396 = vrot.slane %v1377, 4
          %v1397 = vadd.f32 %v1377, %v1396
          %v1398 = vrot.slane %v1397, 2
          %v1399 = vadd.f32 %v1397, %v1398
          %v1400 = vrot.slane %v1399, 1
          %v1401 = vadd.f32 %v1399, %v1400
          %v1402 = vrot.slane %v1379, 4
          %v1403 = vadd.f32 %v1379, %v1402
          %v1404 = vrot.slane %v1403, 2
          %v1405 = vadd.f32 %v1403, %v1404
          %v1406 = vrot.slane %v1405, 1
          %v1407 = vadd.f32 %v1405, %v1406
          %v1408 = vrot.slane %v1381, 4
          %v1409 = vadd.f32 %v1381, %v1408
          %v1410 = vrot.slane %v1409, 2
          %v1411 = vadd.f32 %v1409, %v1410
          %v1412 = vrot.slane %v1411, 1
          %v1413 = vadd.f32 %v1411, %v1412
          %v1414 = vrot.slane %v1383, 4
          %v1415 = vadd.f32 %v1383, %v1414
          %v1416 = vrot.slane %v1415, 2
          %v1417 = vadd.f32 %v1415, %v1416
          %v1418 = vrot.slane %v1417, 1
          %v1419 = vadd.f32 %v1417, %v1418
          %v1420 = vrot.slane %v1385, 4
          %v1421 = vadd.f32 %v1385, %v1420
          %v1422 = vrot.slane %v1421, 2
          %v1423 = vadd.f32 %v1421, %v1422
          %v1424 = vrot.slane %v1423, 1
          %v1425 = vadd.f32 %v1423, %v1424
          %v1426 = vrot.slane %v1387, 4
          %v1427 = vadd.f32 %v1387, %v1426
          %v1428 = vrot.slane %v1427, 2
          %v1429 = vadd.f32 %v1427, %v1428
          %v1430 = vrot.slane %v1429, 1
          %v1431 = vadd.f32 %v1429, %v1430
          %v1432 = vrot.slane %v1389, 4
          %v1433 = vadd.f32 %v1389, %v1432
          %v1434 = vrot.slane %v1433, 2
          %v1435 = vadd.f32 %v1433, %v1434
          %v1436 = vrot.slane %v1435, 1
          %v1437 = vadd.f32 %v1435, %v1436
          %v1438 = vrcp.pop %v1395
          %v1439 = vrcp.pop %v1401
          %v1440 = vrcp.pop %v1407
          %v1441 = vrcp.pop %v1413
          %v1442 = vrcp.pop %v1419
          %v1443 = vrcp.pop %v1425
          %v1444 = vrcp.pop %v1431
          %v1445 = vrcp.pop %v1437
          %v1446 = vmul.f32 %v1375, %v1438
          %v1447 = vmul.f32 %v1377, %v1439
          %v1448 = vmul.f32 %v1379, %v1440
          %v1449 = vmul.f32 %v1381, %v1441
          %v1450 = vmul.f32 %v1383, %v1442
          %v1451 = vmul.f32 %v1385, %v1443
          %v1452 = vmul.f32 %v1387, %v1444
          %v1453 = vmul.f32 %v1389, %v1445
          %v1454 = vmul.f32 %v1446, %v928
          %v1455 = vmul.f32 %v1447, %v929
          %v1456 = vmul.f32 %v1448, %v930
          %v1457 = vmul.f32 %v1449, %v931
          %v1458 = vmul.f32 %v1450, %v932
          %v1459 = vmul.f32 %v1451, %v933
          %v1460 = vmul.f32 %v1452, %v934
          %v1461 = vmul.f32 %v1453, %v935
          %v1462 = vsel %vm948, %v1454, 0.0
          %v1463 = vrot.slane %v1462, 4
          %v1464 = vadd.f32 %v1462, %v1463
          %v1465 = vrot.slane %v1464, 2
          %v1466 = vadd.f32 %v1464, %v1465
          %v1467 = vrot.slane %v1466, 1
          %v1468 = vadd.f32 %v1466, %v1467
          %v1469 = vsel %vm948, %v1455, 0.0
          %v1470 = vrot.slane %v1469, 4
          %v1471 = vadd.f32 %v1469, %v1470
          %v1472 = vrot.slane %v1471, 2
          %v1473 = vadd.f32 %v1471, %v1472
          %v1474 = vrot.slane %v1473, 1
          %v1475 = vadd.f32 %v1473, %v1474
          %v1476 = vsel %vm948, %v1456, 0.0
          %v1477 = vrot.slane %v1476, 4
          %v1478 = vadd.f32 %v1476, %v1477
          %v1479 = vrot.slane %v1478, 2
          %v1480 = vadd.f32 %v1478, %v1479
          %v1481 = vrot.slane %v1480, 1
          %v1482 = vadd.f32 %v1480, %v1481
          %v1483 = vsel %vm948, %v1457, 0.0
          %v1484 = vrot.slane %v1483, 4
          %v1485 = vadd.f32 %v1483, %v1484
          %v1486 = vrot.slane %v1485, 2
          %v1487 = vadd.f32 %v1485, %v1486
          %v1488 = vrot.slane %v1487, 1
          %v1489 = vadd.f32 %v1487, %v1488
          %v1490 = vsel %vm948, %v1458, 0.0
          %v1491 = vrot.slane %v1490, 4
          %v1492 = vadd.f32 %v1490, %v1491
          %v1493 = vrot.slane %v1492, 2
          %v1494 = vadd.f32 %v1492, %v1493
          %v1495 = vrot.slane %v1494, 1
          %v1496 = vadd.f32 %v1494, %v1495
          %v1497 = vsel %vm948, %v1459, 0.0
          %v1498 = vrot.slane %v1497, 4
          %v1499 = vadd.f32 %v1497, %v1498
          %v1500 = vrot.slane %v1499, 2
          %v1501 = vadd.f32 %v1499, %v1500
          %v1502 = vrot.slane %v1501, 1
          %v1503 = vadd.f32 %v1501, %v1502
          %v1504 = vsel %vm948, %v1460, 0.0
          %v1505 = vrot.slane %v1504, 4
          %v1506 = vadd.f32 %v1504, %v1505
          %v1507 = vrot.slane %v1506, 2
          %v1508 = vadd.f32 %v1506, %v1507
          %v1509 = vrot.slane %v1508, 1
          %v1510 = vadd.f32 %v1508, %v1509
          %v1511 = vsel %vm948, %v1461, 0.0
          %v1512 = vrot.slane %v1511, 4
          %v1513 = vadd.f32 %v1511, %v1512
          %v1514 = vrot.slane %v1513, 2
          %v1515 = vadd.f32 %v1513, %v1514
          %v1516 = vrot.slane %v1515, 1
          %v1517 = vadd.f32 %v1515, %v1516
          %v1518 = vld [vmem:[%s9] sm:$0xf]
          %v1519 = vld [vmem:[%s9 + $0x4] sm:$0xf]
          %v1520 = vld [vmem:[%s9 + $0x8] sm:$0xf]
          %v1521 = vld [vmem:[%s9 + $0xc] sm:$0xf]
          %v1522 = vunpack.c.l.bf16 %v1518
          %v1523 = vunpack.c.l.bf16 %v1519
          %v1524 = vunpack.c.l.bf16 %v1520
          %v1525 = vunpack.c.l.bf16 %v1521
          %v1526 = vld [vmem:[%s10] sm:$0xf]
          %v1527 = vld [vmem:[%s10 + $0x4] sm:$0xf]
          %v1528 = vld [vmem:[%s10 + $0x8] sm:$0xf]
          %v1529 = vld [vmem:[%s10 + $0xc] sm:$0xf]
          %v1530 = vunpack.c.l.bf16 %v1526
          %v1531 = vunpack.c.l.bf16 %v1527
          %v1532 = vunpack.c.l.bf16 %v1528
          %v1533 = vunpack.c.l.bf16 %v1529
          %v1535 = vsel %vm948, %v936, 0
          %1537 = vmatprep.subr.mxu0 0.0
          %1538 = vmatpush1.msra.mxu0 %v1530
          %1539 = vmatprep.subr.mxu0 0.0
          %1540 = vmatpush1.msra.mxu0 %v1531
          %1541 = vmatprep.subr.mxu0 0.0
          %1542 = vmatpush1.msra.mxu0 %v1532
          %1543 = vmatprep.subr.mxu0 0.0
          %1544 = vmatpush1.msra.mxu0 %v1533
          %1545 = vmatprep.subr.mxu0 0.0
          %1546 = vmatpush1.msra.mxu0 0.0
          %1547 = vmatprep.subr.mxu0 0.0
          %1548 = vmatpush1.msra.mxu0 0.0
          %1549 = vmatprep.subr.mxu0 0.0
          %1550 = vmatpush1.msra.mxu0 0.0
          %1551 = vmatprep.subr.mxu0 0.0
          %1552 = vmatpush1.msra.mxu0 0.0
          %1553 = vmatprep.subr.mxu0 0.0
          %1554 = vmatpush1.msra.mxu0 0.0
          %1555 = vmatprep.subr.mxu0 0.0
          %1556 = vmatpush1.msra.mxu0 0.0
          %1557 = vmatprep.subr.mxu0 0.0
          %1558 = vmatpush1.msra.mxu0 0.0
          %1559 = vmatprep.subr.mxu0 0.0
          %1560 = vmatpush1.msra.mxu0 0.0
          %1561 = vmatprep.subr.mxu0 0.0
          %1562 = vmatpush1.msra.mxu0 0.0
          %1563 = vmatprep.subr.mxu0 0.0
          %1564 = vmatpush1.msra.mxu0 0.0
          %1565 = vmatprep.subr.mxu0 0.0
          %1566 = vmatpush1.msra.mxu0 0.0
          %1567 = vmatprep.subr.mxu0 0.0
          %1568 = vmatpush1.msra.mxu0 0.0
          %1569 = vmatprep.subr.mxu0 0.0
          %1570 = vmatpush1.msra.mxu0 0.0
          %1571 = vmatprep.subr.mxu0 0.0
          %1572 = vmatpush1.msra.mxu0 0.0
          %1573 = vmatprep.subr.mxu0 0.0
          %1574 = vmatpush1.msra.mxu0 0.0
          %1575 = vmatprep.subr.mxu0 0.0
          %1576 = vmatpush1.msra.mxu0 0.0
          %1577 = vmatprep.subr.mxu0 0.0
          %1578 = vmatpush1.msra.mxu0 0.0
          %1579 = vmatprep.subr.mxu0 0.0
          %1580 = vmatpush1.msra.mxu0 0.0
          %1581 = vmatprep.subr.mxu0 0.0
          %1582 = vmatpush1.msra.mxu0 0.0
          %1583 = vmatprep.subr.mxu0 0.0
          %1584 = vmatpush1.msra.mxu0 0.0
          %1585 = vmatprep.subr.mxu0 0.0
          %1586 = vmatpush1.msra.mxu0 0.0
          %1587 = vmatprep.subr.mxu0 0.0
          %1588 = vmatpush1.msra.mxu0 0.0
          %1589 = vmatprep.subr.mxu0 0.0
          %1590 = vmatpush1.msra.mxu0 0.0
          %1591 = vmatprep.subr.mxu0 0.0
          %1592 = vmatpush1.msra.mxu0 0.0
          %1593 = vmatprep.subr.mxu0 0.0
          %1594 = vmatpush1.msra.mxu0 0.0
          %1595 = vmatprep.subr.mxu0 0.0
          %1596 = vmatpush1.msra.mxu0 0.0
          %1597 = vmatprep.subr.mxu0 0.0
          %1598 = vmatpush1.msra.mxu0 0.0
          %1599 = vmatprep.subr.mxu0 0.0
          %1600 = vmatpush1.msra.mxu0 0.0
          %1601 = vmatprep.mubr.f32.mxu0 0.0
          %1602 = vmatmul.mubr.f32.gmra.mrb[0].mxu0 %v1535
          %v1603 = vpop.f32.mrb[0].mxu0
          %v1604 = vadd.f32 0.0, %v1603
          %v1605 = vpop.f32.mrb[0].mxu0
          %1606 = vdwg.mxu0
          %vm1615 = vcmask 1041409
          %v1616 = vsel %vm1615, %v1475, %v1468
          %vm1617 = vcmask 1042434
          %v1618 = vsel %vm1617, %v1482, %v1616
          %vm1619 = vcmask 1043459
          %v1620 = vsel %vm1619, %v1489, %v1618
          %vm1621 = vcmask 1044484
          %v1622 = vsel %vm1621, %v1496, %v1620
          %vm1623 = vcmask 1045509
          %v1624 = vsel %vm1623, %v1503, %v1622
          %vm1625 = vcmask 1046534
          %v1626 = vsel %vm1625, %v1510, %v1624
          %vm1627 = vcmask 1047559
          %v1628 = vsel %vm1627, %v1517, %v1626
          %v1629 = vsel %vm948, %v1628, 0
          %1631 = vmatprep.subr.mxu0 0.0
          %1632 = vmatpush1.msra.mxu0 %v1522
          %1633 = vmatprep.subr.mxu0 0.0
          %1634 = vmatpush1.msra.mxu0 %v1523
          %1635 = vmatprep.subr.mxu0 0.0
          %1636 = vmatpush1.msra.mxu0 %v1524
          %1637 = vmatprep.subr.mxu0 0.0
          %1638 = vmatpush1.msra.mxu0 %v1525
          %1639 = vmatprep.subr.mxu0 0.0
          %1640 = vmatpush1.msra.mxu0 0.0
          %1641 = vmatprep.subr.mxu0 0.0
          %1642 = vmatpush1.msra.mxu0 0.0
          %1643 = vmatprep.subr.mxu0 0.0
          %1644 = vmatpush1.msra.mxu0 0.0
          %1645 = vmatprep.subr.mxu0 0.0
          %1646 = vmatpush1.msra.mxu0 0.0
          %1647 = vmatprep.subr.mxu0 0.0
          %1648 = vmatpush1.msra.mxu0 0.0
          %1649 = vmatprep.subr.mxu0 0.0
          %1650 = vmatpush1.msra.mxu0 0.0
          %1651 = vmatprep.subr.mxu0 0.0
          %1652 = vmatpush1.msra.mxu0 0.0
          %1653 = vmatprep.subr.mxu0 0.0
          %1654 = vmatpush1.msra.mxu0 0.0
          %1655 = vmatprep.subr.mxu0 0.0
          %1656 = vmatpush1.msra.mxu0 0.0
          %1657 = vmatprep.subr.mxu0 0.0
          %1658 = vmatpush1.msra.mxu0 0.0
          %1659 = vmatprep.subr.mxu0 0.0
          %1660 = vmatpush1.msra.mxu0 0.0
          %1661 = vmatprep.subr.mxu0 0.0
          %1662 = vmatpush1.msra.mxu0 0.0
          %1663 = vmatprep.subr.mxu0 0.0
          %1664 = vmatpush1.msra.mxu0 0.0
          %1665 = vmatprep.subr.mxu0 0.0
          %1666 = vmatpush1.msra.mxu0 0.0
          %1667 = vmatprep.subr.mxu0 0.0
          %1668 = vmatpush1.msra.mxu0 0.0
          %1669 = vmatprep.subr.mxu0 0.0
          %1670 = vmatpush1.msra.mxu0 0.0
          %1671 = vmatprep.subr.mxu0 0.0
          %1672 = vmatpush1.msra.mxu0 0.0
          %1673 = vmatprep.subr.mxu0 0.0
          %1674 = vmatpush1.msra.mxu0 0.0
          %1675 = vmatprep.subr.mxu0 0.0
          %1676 = vmatpush1.msra.mxu0 0.0
          %1677 = vmatprep.subr.mxu0 0.0
          %1678 = vmatpush1.msra.mxu0 0.0
          %1679 = vmatprep.subr.mxu0 0.0
          %1680 = vmatpush1.msra.mxu0 0.0
          %1681 = vmatprep.subr.mxu0 0.0
          %1682 = vmatpush1.msra.mxu0 0.0
          %1683 = vmatprep.subr.mxu0 0.0
          %1684 = vmatpush1.msra.mxu0 0.0
          %1685 = vmatprep.subr.mxu0 0.0
          %1686 = vmatpush1.msra.mxu0 0.0
          %1687 = vmatprep.subr.mxu0 0.0
          %1688 = vmatpush1.msra.mxu0 0.0
          %1689 = vmatprep.subr.mxu0 0.0
          %1690 = vmatpush1.msra.mxu0 0.0
          %1691 = vmatprep.subr.mxu0 0.0
          %1692 = vmatpush1.msra.mxu0 0.0
          %1693 = vmatprep.subr.mxu0 0.0
          %1694 = vmatpush1.msra.mxu0 0.0
          %1695 = vmatprep.mubr.f32.mxu0 0.0
          %1696 = vmatmul.mubr.f32.gmra.mrb[0].mxu0 %v1629
          %v1697 = vpop.f32.mrb[0].mxu0
          %v1698 = vadd.f32 %v1604, %v1697
          %v1699 = vpop.f32.mrb[0].mxu0
          %1700 = vdwg.mxu0
          %v1701 = vld [vmem:[#allocation7] sm:$0xf]
          %v1702 = vld [vmem:[#allocation7 + $0x4] sm:$0xf]
          %v1703 = vld [vmem:[#allocation7 + $0x8] sm:$0xf]
          %v1704 = vld [vmem:[#allocation7 + $0xc] sm:$0xf]
          %v1705 = vunpack.c.l.bf16 %v1701
          %v1706 = vunpack.c.l.bf16 %v1702
          %v1707 = vunpack.c.l.bf16 %v1703
          %v1708 = vunpack.c.l.bf16 %v1704
          %v1710 = vsel %vm948, %v937, 0
          %1712 = vmatprep.subr.mxu0 0.0
          %1713 = vmatpush1.msra.mxu0 %v1705
          %1714 = vmatprep.subr.mxu0 0.0
          %1715 = vmatpush1.msra.mxu0 %v1706
          %1716 = vmatprep.subr.mxu0 0.0
          %1717 = vmatpush1.msra.mxu0 %v1707
          %1718 = vmatprep.subr.mxu0 0.0
          %1719 = vmatpush1.msra.mxu0 %v1708
          %1720 = vmatprep.subr.mxu0 0.0
          %1721 = vmatpush1.msra.mxu0 0.0
          %1722 = vmatprep.subr.mxu0 0.0
          %1723 = vmatpush1.msra.mxu0 0.0
          %1724 = vmatprep.subr.mxu0 0.0
          %1725 = vmatpush1.msra.mxu0 0.0
          %1726 = vmatprep.subr.mxu0 0.0
          %1727 = vmatpush1.msra.mxu0 0.0
          %1728 = vmatprep.subr.mxu0 0.0
          %1729 = vmatpush1.msra.mxu0 0.0
          %1730 = vmatprep.subr.mxu0 0.0
          %1731 = vmatpush1.msra.mxu0 0.0
          %1732 = vmatprep.subr.mxu0 0.0
          %1733 = vmatpush1.msra.mxu0 0.0
          %1734 = vmatprep.subr.mxu0 0.0
          %1735 = vmatpush1.msra.mxu0 0.0
          %1736 = vmatprep.subr.mxu0 0.0
          %1737 = vmatpush1.msra.mxu0 0.0
          %1738 = vmatprep.subr.mxu0 0.0
          %1739 = vmatpush1.msra.mxu0 0.0
          %1740 = vmatprep.subr.mxu0 0.0
          %1741 = vmatpush1.msra.mxu0 0.0
          %1742 = vmatprep.subr.mxu0 0.0
          %1743 = vmatpush1.msra.mxu0 0.0
          %1744 = vmatprep.subr.mxu0 0.0
          %1745 = vmatpush1.msra.mxu0 0.0
          %1746 = vmatprep.subr.mxu0 0.0
          %1747 = vmatpush1.msra.mxu0 0.0
          %1748 = vmatprep.subr.mxu0 0.0
          %1749 = vmatpush1.msra.mxu0 0.0
          %1750 = vmatprep.subr.mxu0 0.0
          %1751 = vmatpush1.msra.mxu0 0.0
          %1752 = vmatprep.subr.mxu0 0.0
          %1753 = vmatpush1.msra.mxu0 0.0
          %1754 = vmatprep.subr.mxu0 0.0
          %1755 = vmatpush1.msra.mxu0 0.0
          %1756 = vmatprep.subr.mxu0 0.0
          %1757 = vmatpush1.msra.mxu0 0.0
          %1758 = vmatprep.subr.mxu0 0.0
          %1759 = vmatpush1.msra.mxu0 0.0
          %1760 = vmatprep.subr.mxu0 0.0
          %1761 = vmatpush1.msra.mxu0 0.0
          %1762 = vmatprep.subr.mxu0 0.0
          %1763 = vmatpush1.msra.mxu0 0.0
          %1764 = vmatprep.subr.mxu0 0.0
          %1765 = vmatpush1.msra.mxu0 0.0
          %1766 = vmatprep.subr.mxu0 0.0
          %1767 = vmatpush1.msra.mxu0 0.0
          %1768 = vmatprep.subr.mxu0 0.0
          %1769 = vmatpush1.msra.mxu0 0.0
          %1770 = vmatprep.subr.mxu0 0.0
          %1771 = vmatpush1.msra.mxu0 0.0
          %1772 = vmatprep.subr.mxu0 0.0
          %1773 = vmatpush1.msra.mxu0 0.0
          %1774 = vmatprep.subr.mxu0 0.0
          %1775 = vmatpush1.msra.mxu0 0.0
          %1776 = vmatprep.mubr.f32.mxu0 0.0
          %1777 = vmatmul.mubr.f32.gmra.mrb[0].mxu0 %v1710
          %v1778 = vpop.f32.mrb[0].mxu0
          %v1779 = vadd.f32 0.0, %v1778
          %v1780 = vpop.f32.mrb[0].mxu0
          %1781 = vdwg.mxu0
          %v1782 = vadd.f32 %v1698, %v1779
          %v1783 = vld [vmem:[%s12] sm:$0xf]
          %v1784 = vld [vmem:[%s12 + $0x4] sm:$0xf]
          %v1785 = vld [vmem:[%s12 + $0x8] sm:$0xf]
          %v1786 = vld [vmem:[%s12 + $0xc] sm:$0xf]
          %v1787 = vunpack.c.l.bf16 %v1783
          %v1788 = vunpack.c.l.bf16 %v1784
          %v1789 = vunpack.c.l.bf16 %v1785
          %v1790 = vunpack.c.l.bf16 %v1786
          %1791 = vmatprep.subr.mxu0 0.0
          %1792 = vmatpush1.msra.mxu0 %v1787
          %1793 = vmatprep.subr.mxu0 0.0
          %1794 = vmatpush1.msra.mxu0 %v1788
          %1795 = vmatprep.subr.mxu0 0.0
          %1796 = vmatpush1.msra.mxu0 %v1789
          %1797 = vmatprep.subr.mxu0 0.0
          %1798 = vmatpush1.msra.mxu0 %v1790
          %1799 = vmatprep.subr.mxu0 0.0
          %1800 = vmatpush1.msra.mxu0 0.0
          %1801 = vmatprep.subr.mxu0 0.0
          %1802 = vmatpush1.msra.mxu0 0.0
          %1803 = vmatprep.subr.mxu0 0.0
          %1804 = vmatpush1.msra.mxu0 0.0
          %1805 = vmatprep.subr.mxu0 0.0
          %1806 = vmatpush1.msra.mxu0 0.0
          %1807 = vmatprep.subr.mxu0 0.0
          %1808 = vmatpush1.msra.mxu0 0.0
          %1809 = vmatprep.subr.mxu0 0.0
          %1810 = vmatpush1.msra.mxu0 0.0
          %1811 = vmatprep.subr.mxu0 0.0
          %1812 = vmatpush1.msra.mxu0 0.0
          %1813 = vmatprep.subr.mxu0 0.0
          %1814 = vmatpush1.msra.mxu0 0.0
          %1815 = vmatprep.subr.mxu0 0.0
          %1816 = vmatpush1.msra.mxu0 0.0
          %1817 = vmatprep.subr.mxu0 0.0
          %1818 = vmatpush1.msra.mxu0 0.0
          %1819 = vmatprep.subr.mxu0 0.0
          %1820 = vmatpush1.msra.mxu0 0.0
          %1821 = vmatprep.subr.mxu0 0.0
          %1822 = vmatpush1.msra.mxu0 0.0
          %1823 = vmatprep.subr.mxu0 0.0
          %1824 = vmatpush1.msra.mxu0 0.0
          %1825 = vmatprep.subr.mxu0 0.0
          %1826 = vmatpush1.msra.mxu0 0.0
          %1827 = vmatprep.subr.mxu0 0.0
          %1828 = vmatpush1.msra.mxu0 0.0
          %1829 = vmatprep.subr.mxu0 0.0
          %1830 = vmatpush1.msra.mxu0 0.0
          %1831 = vmatprep.subr.mxu0 0.0
          %1832 = vmatpush1.msra.mxu0 0.0
          %1833 = vmatprep.subr.mxu0 0.0
          %1834 = vmatpush1.msra.mxu0 0.0
          %1835 = vmatprep.subr.mxu0 0.0
          %1836 = vmatpush1.msra.mxu0 0.0
          %1837 = vmatprep.subr.mxu0 0.0
          %1838 = vmatpush1.msra.mxu0 0.0
          %1839 = vmatprep.subr.mxu0 0.0
          %1840 = vmatpush1.msra.mxu0 0.0
          %1841 = vmatprep.subr.mxu0 0.0
          %1842 = vmatpush1.msra.mxu0 0.0
          %1843 = vmatprep.subr.mxu0 0.0
          %1844 = vmatpush1.msra.mxu0 0.0
          %1845 = vmatprep.subr.mxu0 0.0
          %1846 = vmatpush1.msra.mxu0 0.0
          %1847 = vmatprep.subr.mxu0 0.0
          %1848 = vmatpush1.msra.mxu0 0.0
          %1849 = vmatprep.subr.mxu0 0.0
          %1850 = vmatpush1.msra.mxu0 0.0
          %1851 = vmatprep.subr.mxu0 0.0
          %1852 = vmatpush1.msra.mxu0 0.0
          %1853 = vmatprep.subr.mxu0 0.0
          %1854 = vmatpush1.msra.mxu0 0.0
          %1855 = vmatprep.mubr.f32.mxu0 0.0
          %1856 = vmatmul.mubr.f32.gmra.mrb[0].mxu0 %v950
          %v1857 = vpop.f32.mrb[0].mxu0
          %v1858 = vadd.f32 0.0, %v1857
          %v1859 = vpop.f32.mrb[0].mxu0
          %1860 = vdwg.mxu0
          %v1861 = vadd.f32 %v1782, %v1858
          %v1862 = vld [vmem:[#allocation10] sm:$0x1]
          %v1864 = vlaneseq
          %v1865 = vshrl.u32 %v1864, 7
          %v1866 = vsub.s32 0, %v1865
          %v1867 = vrot.slane %v1862, %v1866
          %v1869 = vadd.f32 %v1861, %v1867
          %v1870 = vsub.f32 0.0, %v1869
          %v1871 = vmul.f32 %v1870, 1.442695
          %v1872 = vpow.pop %v1871
          %v1873 = vadd.f32 %v1872, 1.0
          %v1874 = vrcp.pop %v1873
          %v1875 = vtanh.pop %v1869
          %1877 = vrot.lane.b32.xlu0 %v939, 32
          %v1878 = vpop.permute.xlu0 %1877
          %v1880 = vmul.f32 %v1874, %v1878
          %1882 = vrot.lane.b32.xlu0 %v1875, 64
          %v1883 = vpop.permute.xlu0 %1882
          %v1885 = vmul.f32 %v1874, %v1883
          %1887 = vrot.lane.b32.xlu0 %v1885, 32
          %v1888 = vpop.permute.xlu0 %1887
          %v1890 = vadd.f32 %v1880, %v1888
          %v1891 = vtanh.pop %v1890
          %1893 = vrot.lane.b32.xlu0 %v1891, 64
          %v1894 = vpop.permute.xlu0 %1893
          %v1896 = vmul.f32 %v1874, %v1894
          %1898 = vrot.lane.b32.xlu0 %v1896, 32
          %v1899 = vpop.permute.xlu0 %1898
          %1901 = vst.msk [vmem:[%s917] sm:$0xff] %vm948, %v1899
          %1903 = vrot.lane.b32.xlu0 %v1890, 96
          %v1904 = vpop.permute.xlu0 %1903
          %1906 = vst.msk [vmem:[%s922] sm:$0xff] %vm948, %v1904
          %v1907 = vld [vmem:[#allocation9] sm:$0xf]
          %v1908 = vld [vmem:[#allocation9 + $0x4] sm:$0xf]
          %v1909 = vld [vmem:[#allocation9 + $0x8] sm:$0xf]
          %v1910 = vld [vmem:[#allocation9 + $0xc] sm:$0xf]
          %v1911 = vunpack.c.l.bf16 %v1907
          %v1912 = vunpack.c.l.bf16 %v1908
          %v1913 = vunpack.c.l.bf16 %v1909
          %v1914 = vunpack.c.l.bf16 %v1910
          %s1915 = scalar_lea.vmem %s3, 8
          %v1916 = vld [vmem:[%s1915] sm:$0xff]
          %s1917 = scalar_lea.vmem %s12, 16
          %v1918 = vld [vmem:[%s1917] sm:$0xf]
          %v1919 = vld [vmem:[%s1917 + $0x4] sm:$0xf]
          %v1920 = vld [vmem:[%s1917 + $0x8] sm:$0xf]
          %v1921 = vld [vmem:[%s1917 + $0xc] sm:$0xf]
          %v1922 = vunpack.c.l.bf16 %v1918
          %v1923 = vunpack.c.l.bf16 %v1919
          %v1924 = vunpack.c.l.bf16 %v1920
          %v1925 = vunpack.c.l.bf16 %v1921
          %v1927 = vsel %vm948, %v1916, 0
          %1929 = vmatprep.subr.mxu0 0.0
          %1930 = vmatpush1.msra.mxu0 %v1922
          %1931 = vmatprep.subr.mxu0 0.0
          %1932 = vmatpush1.msra.mxu0 %v1923
          %1933 = vmatprep.subr.mxu0 0.0
          %1934 = vmatpush1.msra.mxu0 %v1924
          %1935 = vmatprep.subr.mxu0 0.0
          %1936 = vmatpush1.msra.mxu0 %v1925
          %1937 = vmatprep.subr.mxu0 0.0
          %1938 = vmatpush1.msra.mxu0 0.0
          %1939 = vmatprep.subr.mxu0 0.0
          %1940 = vmatpush1.msra.mxu0 0.0
          %1941 = vmatprep.subr.mxu0 0.0
          %1942 = vmatpush1.msra.mxu0 0.0
          %1943 = vmatprep.subr.mxu0 0.0
          %1944 = vmatpush1.msra.mxu0 0.0
          %1945 = vmatprep.subr.mxu0 0.0
          %1946 = vmatpush1.msra.mxu0 0.0
          %1947 = vmatprep.subr.mxu0 0.0
          %1948 = vmatpush1.msra.mxu0 0.0
          %1949 = vmatprep.subr.mxu0 0.0
          %1950 = vmatpush1.msra.mxu0 0.0
          %1951 = vmatprep.subr.mxu0 0.0
          %1952 = vmatpush1.msra.mxu0 0.0
          %1953 = vmatprep.subr.mxu0 0.0
          %1954 = vmatpush1.msra.mxu0 0.0
          %1955 = vmatprep.subr.mxu0 0.0
          %1956 = vmatpush1.msra.mxu0 0.0
          %1957 = vmatprep.subr.mxu0 0.0
          %1958 = vmatpush1.msra.mxu0 0.0
          %1959 = vmatprep.subr.mxu0 0.0
          %1960 = vmatpush1.msra.mxu0 0.0
          %1961 = vmatprep.subr.mxu0 0.0
          %1962 = vmatpush1.msra.mxu0 0.0
          %1963 = vmatprep.subr.mxu0 0.0
          %1964 = vmatpush1.msra.mxu0 0.0
          %1965 = vmatprep.subr.mxu0 0.0
          %1966 = vmatpush1.msra.mxu0 0.0
          %1967 = vmatprep.subr.mxu0 0.0
          %1968 = vmatpush1.msra.mxu0 0.0
          %1969 = vmatprep.subr.mxu0 0.0
          %1970 = vmatpush1.msra.mxu0 0.0
          %1971 = vmatprep.subr.mxu0 0.0
          %1972 = vmatpush1.msra.mxu0 0.0
          %1973 = vmatprep.subr.mxu0 0.0
          %1974 = vmatpush1.msra.mxu0 0.0
          %1975 = vmatprep.subr.mxu0 0.0
          %1976 = vmatpush1.msra.mxu0 0.0
          %1977 = vmatprep.subr.mxu0 0.0
          %1978 = vmatpush1.msra.mxu0 0.0
          %1979 = vmatprep.subr.mxu0 0.0
          %1980 = vmatpush1.msra.mxu0 0.0
          %1981 = vmatprep.subr.mxu0 0.0
          %1982 = vmatpush1.msra.mxu0 0.0
          %1983 = vmatprep.subr.mxu0 0.0
          %1984 = vmatpush1.msra.mxu0 0.0
          %1985 = vmatprep.subr.mxu0 0.0
          %1986 = vmatpush1.msra.mxu0 0.0
          %1987 = vmatprep.subr.mxu0 0.0
          %1988 = vmatpush1.msra.mxu0 0.0
          %1989 = vmatprep.subr.mxu0 0.0
          %1990 = vmatpush1.msra.mxu0 0.0
          %1991 = vmatprep.subr.mxu0 0.0
          %1992 = vmatpush1.msra.mxu0 0.0
          %1993 = vmatprep.mubr.f32.mxu0 0.0
          %1994 = vmatmul.mubr.f32.gmra.mrb[0].mxu0 %v1927
          %v1995 = vpop.f32.mrb[0].mxu0
          %v1996 = vadd.f32 0.0, %v1995
          %v1997 = vpop.f32.mrb[0].mxu0
          %1998 = vdwg.mxu0
          %v1999 = vsel %vm948, %v1899, 0
          %2001 = vmatprep.subr.mxu0 0.0
          %2002 = vmatpush1.msra.mxu0 %v1911
          %2003 = vmatprep.subr.mxu0 0.0
          %2004 = vmatpush1.msra.mxu0 %v1912
          %2005 = vmatprep.subr.mxu0 0.0
          %2006 = vmatpush1.msra.mxu0 %v1913
          %2007 = vmatprep.subr.mxu0 0.0
          %2008 = vmatpush1.msra.mxu0 %v1914
          %2009 = vmatprep.subr.mxu0 0.0
          %2010 = vmatpush1.msra.mxu0 0.0
          %2011 = vmatprep.subr.mxu0 0.0
          %2012 = vmatpush1.msra.mxu0 0.0
          %2013 = vmatprep.subr.mxu0 0.0
          %2014 = vmatpush1.msra.mxu0 0.0
          %2015 = vmatprep.subr.mxu0 0.0
          %2016 = vmatpush1.msra.mxu0 0.0
          %2017 = vmatprep.subr.mxu0 0.0
          %2018 = vmatpush1.msra.mxu0 0.0
          %2019 = vmatprep.subr.mxu0 0.0
          %2020 = vmatpush1.msra.mxu0 0.0
          %2021 = vmatprep.subr.mxu0 0.0
          %2022 = vmatpush1.msra.mxu0 0.0
          %2023 = vmatprep.subr.mxu0 0.0
          %2024 = vmatpush1.msra.mxu0 0.0
          %2025 = vmatprep.subr.mxu0 0.0
          %2026 = vmatpush1.msra.mxu0 0.0
          %2027 = vmatprep.subr.mxu0 0.0
          %2028 = vmatpush1.msra.mxu0 0.0
          %2029 = vmatprep.subr.mxu0 0.0
          %2030 = vmatpush1.msra.mxu0 0.0
          %2031 = vmatprep.subr.mxu0 0.0
          %2032 = vmatpush1.msra.mxu0 0.0
          %2033 = vmatprep.subr.mxu0 0.0
          %2034 = vmatpush1.msra.mxu0 0.0
          %2035 = vmatprep.subr.mxu0 0.0
          %2036 = vmatpush1.msra.mxu0 0.0
          %2037 = vmatprep.subr.mxu0 0.0
          %2038 = vmatpush1.msra.mxu0 0.0
          %2039 = vmatprep.subr.mxu0 0.0
          %2040 = vmatpush1.msra.mxu0 0.0
          %2041 = vmatprep.subr.mxu0 0.0
          %2042 = vmatpush1.msra.mxu0 0.0
          %2043 = vmatprep.subr.mxu0 0.0
          %2044 = vmatpush1.msra.mxu0 0.0
          %2045 = vmatprep.subr.mxu0 0.0
          %2046 = vmatpush1.msra.mxu0 0.0
          %2047 = vmatprep.subr.mxu0 0.0
          %2048 = vmatpush1.msra.mxu0 0.0
          %2049 = vmatprep.subr.mxu0 0.0
          %2050 = vmatpush1.msra.mxu0 0.0
          %2051 = vmatprep.subr.mxu0 0.0
          %2052 = vmatpush1.msra.mxu0 0.0
          %2053 = vmatprep.subr.mxu0 0.0
          %2054 = vmatpush1.msra.mxu0 0.0
          %2055 = vmatprep.subr.mxu0 0.0
          %2056 = vmatpush1.msra.mxu0 0.0
          %2057 = vmatprep.subr.mxu0 0.0
          %2058 = vmatpush1.msra.mxu0 0.0
          %2059 = vmatprep.subr.mxu0 0.0
          %2060 = vmatpush1.msra.mxu0 0.0
          %2061 = vmatprep.subr.mxu0 0.0
          %2062 = vmatpush1.msra.mxu0 0.0
          %2063 = vmatprep.subr.mxu0 0.0
          %2064 = vmatpush1.msra.mxu0 0.0
          %2065 = vmatprep.mubr.f32.mxu0 0.0
          %2066 = vmatmul.mubr.f32.gmra.mrb[0].mxu0 %v1999
          %v2067 = vpop.f32.mrb[0].mxu0
          %v2068 = vadd.f32 %v1996, %v2067
          %v2069 = vpop.f32.mrb[0].mxu0
          %2070 = vdwg.mxu0
          %s2071 = scalar_lea.vmem [#allocation10], 1
          %v2072 = vld [vmem:[%s2071] sm:$0x1]
          %v2074 = vlaneseq
          %v2075 = vshrl.u32 %v2074, 7
          %v2076 = vsub.s32 0, %v2075
          %v2077 = vrot.slane %v2072, %v2076
          %v2079 = vadd.f32 %v2068, %v2077
          %s2080 = scalar_lea.vmem %s4, 8
          %v2081 = vld [vmem:[%s2080] sm:$0xff]
          %v2082 = vsub.f32 0.0, %v2079
          %v2083 = vmul.f32 %v2082, 1.442695
          %v2084 = vpow.pop %v2083
          %v2085 = vadd.f32 %v2084, 1.0
          %v2086 = vrcp.pop %v2085
          %v2087 = vtanh.pop %v2079
          %2089 = vrot.lane.b32.xlu0 %v2081, 32
          %v2090 = vpop.permute.xlu0 %2089
          %v2092 = vmul.f32 %v2086, %v2090
          %2094 = vrot.lane.b32.xlu0 %v2087, 64
          %v2095 = vpop.permute.xlu0 %2094
          %v2097 = vmul.f32 %v2086, %v2095
          %2099 = vrot.lane.b32.xlu0 %v2097, 32
          %v2100 = vpop.permute.xlu0 %2099
          %v2102 = vadd.f32 %v2092, %v2100
          %v2103 = vtanh.pop %v2102
          %2105 = vrot.lane.b32.xlu0 %v2103, 64
          %v2106 = vpop.permute.xlu0 %2105
          %v2108 = vmul.f32 %v2086, %v2106
          %2110 = vrot.lane.b32.xlu0 %v2108, 32
          %v2111 = vpop.permute.xlu0 %2110
          %s2113 = scalar_lea.vmem %s917, 8
          %2114 = vst.msk [vmem:[%s2113] sm:$0xff] %vm948, %v2111
          %2116 = vrot.lane.b32.xlu0 %v2102, 96
          %v2117 = vpop.permute.xlu0 %2116
          %s2119 = scalar_lea.vmem %s922, 8
          %2120 = vst.msk [vmem:[%s2119] sm:$0xff] %vm948, %v2117
          %v2121 = vld [vmem:[#allocation12] sm:$0xf]
          %v2122 = vld [vmem:[#allocation12 + $0x4] sm:$0xf]
          %v2123 = vld [vmem:[#allocation12 + $0x8] sm:$0xf]
          %v2124 = vld [vmem:[#allocation12 + $0xc] sm:$0xf]
          %v2125 = vunpack.c.l.bf16 %v2121
          %v2126 = vunpack.c.l.bf16 %v2122
          %v2127 = vunpack.c.l.bf16 %v2123
          %v2128 = vunpack.c.l.bf16 %v2124
          %v2129 = vld [vmem:[#allocation13] sm:$0x1]
          %v2131 = vlaneseq
          %v2132 = vshrl.u32 %v2131, 7
          %v2133 = vsub.s32 0, %v2132
          %v2134 = vrot.slane %v2129, %v2133
          %v2136 = vsel %vm948, %v2111, 0
          %2138 = vmatprep.subr.mxu0 0.0
          %2139 = vmatpush1.msra.mxu0 %v2125
          %2140 = vmatprep.subr.mxu0 0.0
          %2141 = vmatpush1.msra.mxu0 %v2126
          %2142 = vmatprep.subr.mxu0 0.0
          %2143 = vmatpush1.msra.mxu0 %v2127
          %2144 = vmatprep.subr.mxu0 0.0
          %2145 = vmatpush1.msra.mxu0 %v2128
          %2146 = vmatprep.subr.mxu0 0.0
          %2147 = vmatpush1.msra.mxu0 0.0
          %2148 = vmatprep.subr.mxu0 0.0
          %2149 = vmatpush1.msra.mxu0 0.0
          %2150 = vmatprep.subr.mxu0 0.0
          %2151 = vmatpush1.msra.mxu0 0.0
          %2152 = vmatprep.subr.mxu0 0.0
          %2153 = vmatpush1.msra.mxu0 0.0
          %2154 = vmatprep.subr.mxu0 0.0
          %2155 = vmatpush1.msra.mxu0 0.0
          %2156 = vmatprep.subr.mxu0 0.0
          %2157 = vmatpush1.msra.mxu0 0.0
          %2158 = vmatprep.subr.mxu0 0.0
          %2159 = vmatpush1.msra.mxu0 0.0
          %2160 = vmatprep.subr.mxu0 0.0
          %2161 = vmatpush1.msra.mxu0 0.0
          %2162 = vmatprep.subr.mxu0 0.0
          %2163 = vmatpush1.msra.mxu0 0.0
          %2164 = vmatprep.subr.mxu0 0.0
          %2165 = vmatpush1.msra.mxu0 0.0
          %2166 = vmatprep.subr.mxu0 0.0
          %2167 = vmatpush1.msra.mxu0 0.0
          %2168 = vmatprep.subr.mxu0 0.0
          %2169 = vmatpush1.msra.mxu0 0.0
          %2170 = vmatprep.subr.mxu0 0.0
          %2171 = vmatpush1.msra.mxu0 0.0
          %2172 = vmatprep.subr.mxu0 0.0
          %2173 = vmatpush1.msra.mxu0 0.0
          %2174 = vmatprep.subr.mxu0 0.0
          %2175 = vmatpush1.msra.mxu0 0.0
          %2176 = vmatprep.subr.mxu0 0.0
          %2177 = vmatpush1.msra.mxu0 0.0
          %2178 = vmatprep.subr.mxu0 0.0
          %2179 = vmatpush1.msra.mxu0 0.0
          %2180 = vmatprep.subr.mxu0 0.0
          %2181 = vmatpush1.msra.mxu0 0.0
          %2182 = vmatprep.subr.mxu0 0.0
          %2183 = vmatpush1.msra.mxu0 0.0
          %2184 = vmatprep.subr.mxu0 0.0
          %2185 = vmatpush1.msra.mxu0 0.0
          %2186 = vmatprep.subr.mxu0 0.0
          %2187 = vmatpush1.msra.mxu0 0.0
          %2188 = vmatprep.subr.mxu0 0.0
          %2189 = vmatpush1.msra.mxu0 0.0
          %2190 = vmatprep.subr.mxu0 0.0
          %2191 = vmatpush1.msra.mxu0 0.0
          %2192 = vmatprep.subr.mxu0 0.0
          %2193 = vmatpush1.msra.mxu0 0.0
          %2194 = vmatprep.subr.mxu0 0.0
          %2195 = vmatpush1.msra.mxu0 0.0
          %2196 = vmatprep.subr.mxu0 0.0
          %2197 = vmatpush1.msra.mxu0 0.0
          %2198 = vmatprep.subr.mxu0 0.0
          %2199 = vmatpush1.msra.mxu0 0.0
          %2200 = vmatprep.subr.mxu0 0.0
          %2201 = vmatpush1.msra.mxu0 0.0
          %2202 = vmatprep.mubr.f32.mxu0 0.0
          %2203 = vmatmul.mubr.f32.gmra.mrb[0].mxu0 %v2136
          %v2204 = vpop.f32.mrb[0].mxu0
          %v2205 = vadd.f32 %v2134, %v2204
          %v2206 = vpop.f32.mrb[0].mxu0
          %2207 = vdwg.mxu0
          %v2208 = vpack.c.bf16 %v2205, %v2205
          %vm2209 = vcmask 257024
          %2210 = vst.msk [vmem:[#allocation2] sm:$0xf] %vm2209, %v2208
          %vm2211 = vcmask 7168
          %2212 = vst.msk [vmem:[#allocation3] sm:$0xff] %vm2211, -inf
          %2213 = vst.msk [vmem:[#allocation4] sm:$0xff] %vm2211, 0.0
        $region169: #{_lambda_.1} parent=132 // pred_fallthru
          _
        %v2214 = vld [vmem:[#allocation2] sm:$0xf]
        %v2215 = vld [vmem:[%s811] sm:$0xf]
        %v2216 = vld [vmem:[%s811 + $0x4] sm:$0xf]
        %v2217 = vld [vmem:[%s811 + $0x8] sm:$0xf]
        %v2218 = vld [vmem:[%s811 + $0xc] sm:$0xf]
        %v2219 = vld [vmem:[%s818] sm:$0x1]
        %v2221 = vlaneseq
        %v2222 = vshrl.u32 %v2221, 7
        %v2223 = vsub.s32 0, %v2222
        %v2224 = vrot.slane %v2219, %v2223
        %v2230 = vunpack.c.l.b16 %v2215
        %v2231 = vunpack.c.l.b16 %v2216
        %v2232 = vunpack.c.l.b16 %v2217
        %v2233 = vunpack.c.l.b16 %v2218
        %v2234 = vpack.c.b16 %v2231, %v2230
        %v2235 = vpack.c.b16 %v2233, %v2232
        %vm2238 = vcmask 261120
        %v2240 = vsel %vm2238, %v2214, 0
        %2242 = vmatprep.subr.bf16.mxu0 0
        %2243 = vmatpush1.bf16.msra.mxu0 %v2234
        %2244 = vmatprep.subr.bf16.mxu0 0
        %2245 = vmatpush1.bf16.msra.mxu0 %v2235
        %2246 = vmatprep.subr.bf16.mxu0 0
        %2247 = vmatpush1.bf16.msra.mxu0 0
        %2248 = vmatprep.subr.bf16.mxu0 0
        %2249 = vmatpush1.bf16.msra.mxu0 0
        %2250 = vmatprep.subr.bf16.mxu0 0
        %2251 = vmatpush1.bf16.msra.mxu0 0
        %2252 = vmatprep.subr.bf16.mxu0 0
        %2253 = vmatpush1.bf16.msra.mxu0 0
        %2254 = vmatprep.subr.bf16.mxu0 0
        %2255 = vmatpush1.bf16.msra.mxu0 0
        %2256 = vmatprep.subr.bf16.mxu0 0
        %2257 = vmatpush1.bf16.msra.mxu0 0
        %2258 = vmatprep.subr.bf16.mxu0 0
        %2259 = vmatpush1.bf16.msra.mxu0 0
        %2260 = vmatprep.subr.bf16.mxu0 0
        %2261 = vmatpush1.bf16.msra.mxu0 0
        %2262 = vmatprep.subr.bf16.mxu0 0
        %2263 = vmatpush1.bf16.msra.mxu0 0
        %2264 = vmatprep.subr.bf16.mxu0 0
        %2265 = vmatpush1.bf16.msra.mxu0 0
        %2266 = vmatprep.subr.bf16.mxu0 0
        %2267 = vmatpush1.bf16.msra.mxu0 0
        %2268 = vmatprep.subr.bf16.mxu0 0
        %2269 = vmatpush1.bf16.msra.mxu0 0
        %2270 = vmatprep.subr.bf16.mxu0 0
        %2271 = vmatpush1.bf16.msra.mxu0 0
        %2272 = vmatprep.subr.bf16.mxu0 0
        %2273 = vmatpush1.bf16.msra.mxu0 0
        %2274 = vmatprep.mubr.bf16.mxu0 0
        %2275 = vmatmul.mubr.bf16.gmra.mrb[0].mxu0 %v2240
        %v2276 = vpop.f32.mrb[0].mxu0
        %v2277 = vadd.f32 %v2224, %v2276
        %v2278 = vpop.f32.mrb[0].mxu0
        %v2279 = vpop.f32.mrb[0].mxu0
        %v2280 = vpop.f32.mrb[0].mxu0
        %2281 = vdwg.mxu0
        %v2282 = vld [vmem:[#allocation3] sm:$0xff]
        %2283 = vmax.xlane.f32.xlu0 %v2277
        %v2284 = vpop.xlane.xlu0 %2283
        %v2285 = vmax.f32 %v2282, %v2284
        %v2286 = vld [vmem:[#allocation4] sm:$0xff]
        %v2287 = vsub.f32 %v2282, %v2285
        %v2288 = vmul.f32 %v2287, 1.442695
        %v2289 = vpow.pop %v2288
        %v2290 = vmul.f32 %v2286, %v2289
        %2292 = vset.pattern.permute.xlu0 0
        %2293 = vperm.xlu0 %2292, %v2285
        %v2294 = vpop.permute.xlu0 %2293
        %v2296 = vsub.f32 %v2277, %v2294
        %v2297 = vmul.f32 %v2296, 1.442695
        %v2298 = vpow.pop %v2297
        %2299 = vadd.xlane.f32.xlu0 %v2298
        %v2300 = vpop.xlane.xlu0 %2299
        %v2301 = vadd.f32 %v2290, %v2300
        %vm2302 = vcmask 7168
        %2303 = vst.msk [vmem:[#allocation4] sm:$0xff] %vm2302, %v2301
        %2304 = vst.msk [vmem:[#allocation3] sm:$0xff] %vm2302, %v2285
        %2305 = vst [vmem:[%s906] sm:$0xff] %v2277
        %p2306 = scmp.eq.s32.totalorder %s43, 1
        // Predicated region
        $region170: #{_lambda_.1} parent=132 // pred_check
          %p2307 = pneg %p2306
        $region171: #{_lambda_.1} parent=132 // pred_check_branch
          %2309 = sbr.rel (%p2307) target = $region173
        $region172: #{_lambda_.1} parent=132 // pred_region
          %v2310 = vld [vmem:[#allocation3] sm:$0xff]
          %v2311 = vld [vmem:[#allocation4] sm:$0xff]
          %v2312 = vlog2.pop %v2311
          %v2313 = vmul.f32 %v2312, 0.6931472
          %v2314 = vadd.f32 %v2310, %v2313
          %2315 = vst.msk [vmem:[%s912] sm:$0xff] %vm2302, %v2314
        $region173: #{_lambda_.1} parent=132 // pred_fallthru
          _
        %s2316 = smul.u32 %s42, 2
        %s2317 = sadd.s32 %s2316, %s43
        %p2318 = scmp.lt.s32.totalorder %s2317, 3
        %s2319 = scalar_select %p2318, %s2317, 3
        %s2320 = smul.addr %s2319, 8
        %s2321 = scalar_lea.vmem %s19, %s2320
        %p2322 = scmp.lt.s32.totalorder %s42, 1
        %s2323 = scalar_select %p2322, %s42, 1
        %s2324 = smul.addr %s2323, 8
        %s2325 = scalar_lea.vmem %s20, %s2324
        %p2326 = scmp.lt.s32.totalorder %s42, 1
        %s2327 = scalar_select %p2326, %s42, 1
        %s2328 = smul.addr %s2327, 2
        %s2329 = smul.addr %s2328, 8
        %s2330 = scalar_lea.vmem %s21, %s2329
        %p2331 = scmp.lt.s32.totalorder %s42, 1
        %s2332 = scalar_select %p2331, %s42, 1
        %s2333 = smul.addr %s2332, 2
        %s2334 = smul.addr %s2333, 8
        %s2335 = scalar_lea.vmem %s22, %s2334
        // Predicated region
        $region174: #{_lambda_.1} parent=132 // pred_check
          %p2336 = pneg %p489
        $region175: #{_lambda_.1} parent=132 // pred_check_branch
          %2338 = sbr.rel (%p2336) target = $region177
        $region176: #{_lambda_.1} parent=132 // pred_region
          %s2339 = smul.u32 %s42, 2
          %s2340 = sadd.s32 %s2339, %s43
        $region177: #{_lambda_.1} parent=132 // pred_fallthru
          _
        // Predicated region
        $region178: #{_lambda_.1} parent=132 // pred_check
          %p2341 = pneg %p515
        $region179: #{_lambda_.1} parent=132 // pred_check_branch
          %2343 = sbr.rel (%p2341) target = $region181
        $region180: #{_lambda_.1} parent=132 // pred_region
          _
        $region181: #{_lambda_.1} parent=132 // pred_fallthru
          _
        // Predicated region
        $region182: #{_lambda_.1} parent=132 // pred_check
          %p2344 = pneg %p541
        $region183: #{_lambda_.1} parent=132 // pred_check_branch
          %2346 = sbr.rel (%p2344) target = $region185
        $region184: #{_lambda_.1} parent=132 // pred_region
          _
        $region185: #{_lambda_.1} parent=132 // pred_fallthru
          _
        // Predicated region
        $region186: #{_lambda_.1} parent=132 // pred_check
          %p2347 = pneg %p567
        $region187: #{_lambda_.1} parent=132 // pred_check_branch
          %2349 = sbr.rel (%p2347) target = $region189
        $region188: #{_lambda_.1} parent=132 // pred_region
          _
        $region189: #{_lambda_.1} parent=132 // pred_fallthru
          _
      $region133: #{_lambda_.1} parent=5 // pred_fallthru
        _
      %p2350 = scmp.le.s32.totalorder 2, %s33
      // Predicated region
      $region190: #{_lambda_.1} parent=5 // pred_check
        %p2351 = pneg %p2350
      $region191: #{_lambda_.1} parent=5 // pred_check_branch
        %2353 = sbr.rel (%p2351) target = $region193
      $region192: #{_lambda_.1} parent=5 // pred_region
        %s2354 = ssub.s32 %s33, 2
        // Predicated region
        $region194: #{_lambda_.1} parent=192 // pred_check
          %p2355 = pneg %p495
        $region195: #{_lambda_.1} parent=192 // pred_check_branch
          %2357 = sbr.rel (%p2355) target = $region197
        $region196: #{_lambda_.1} parent=192 // pred_region
          %s2358 = smul.u32 %s44, 2
          %s2359 = sadd.s32 %s2358, %s45
          %p2360 = scmp.lt.s32.totalorder %s2359, 3
          %s2361 = scalar_select %p2360, %s2359, 3
          %s2362 = smul.addr %s2361, 8
          %s2363 = scalar_lea.vmem %s19, %s2362
        $region197: #{_lambda_.1} parent=192 // pred_fallthru
          _
        // Predicated region
        $region198: #{_lambda_.1} parent=192 // pred_check
          %p2364 = pneg %p521
        $region199: #{_lambda_.1} parent=192 // pred_check_branch
          %2366 = sbr.rel (%p2364) target = $region201
        $region200: #{_lambda_.1} parent=192 // pred_region
          %p2367 = scmp.lt.s32.totalorder %s44, 1
          %s2368 = scalar_select %p2367, %s44, 1
          %s2369 = smul.addr %s2368, 8
          %s2370 = scalar_lea.vmem %s20, %s2369
        $region201: #{_lambda_.1} parent=192 // pred_fallthru
          _
        // Predicated region
        $region202: #{_lambda_.1} parent=192 // pred_check
          %p2371 = pneg %p547
        $region203: #{_lambda_.1} parent=192 // pred_check_branch
          %2373 = sbr.rel (%p2371) target = $region205
        $region204: #{_lambda_.1} parent=192 // pred_region
          %p2374 = scmp.lt.s32.totalorder %s44, 1
          %s2375 = scalar_select %p2374, %s44, 1
          %s2376 = smul.addr %s2375, 2
          %s2377 = smul.addr %s2376, 8
          %s2378 = scalar_lea.vmem %s21, %s2377
        $region205: #{_lambda_.1} parent=192 // pred_fallthru
          _
        // Predicated region
        $region206: #{_lambda_.1} parent=192 // pred_check
          %p2379 = pneg %p573
        $region207: #{_lambda_.1} parent=192 // pred_check_branch
          %2381 = sbr.rel (%p2379) target = $region209
        $region208: #{_lambda_.1} parent=192 // pred_region
          %p2382 = scmp.lt.s32.totalorder %s44, 1
          %s2383 = scalar_select %p2382, %s44, 1
          %s2384 = smul.addr %s2383, 2
          %s2385 = smul.addr %s2384, 8
          %s2386 = scalar_lea.vmem %s22, %s2385
        $region209: #{_lambda_.1} parent=192 // pred_fallthru
          _
      $region193: #{_lambda_.1} parent=5 // pred_fallthru
        _
    $region6: #{_lambda_.1} parent=1 // loop_footer
      %s37 = sadd.s32 1, %s33
    $region7: #{_lambda_.1} parent=1 // loop_footer_branch
      %32 = sbr.rel target = $region3
    $region8: #{_lambda_.1} parent=1 // loop_exit
      _
    %2387 = vsyncpa [#allocation6], 1
    %s2388 = scalar_lea.sflag [#allocation6], 1
    %2389 = vsyncpa %s2388, 1
    %2390 = vsyncpa [#allocation8], 1
    %2391 = vsyncpa [#allocation11], 1
    %2392 = vsyncpa [#allocation14], 1

</llo_original>
